<compile_context>
chip_gen: v7x
topology: tpu7x:2x2x1
jax: 0.10.0
libtpu: 0.0.40
codegen_flags: <defaults>
</compile_context>

<pallas_src>
import functools

import numpy as np
import jax
import jax.numpy as jnp
from jax import lax
from jax.experimental import pallas as pl
from jax.experimental.pallas import tpu as pltpu

EPSILON = 1.0e12  # fp16=False branch of EffiGlobalPointer


def _round_up(x, m):
    return ((x + m - 1) // m) * m


def _pick_ent_block(ent_type_size, seq_pad, budget_bytes=4 * 1024 * 1024):
    """Largest divisor of ent_type_size whose output block stays under budget."""
    per_ent = seq_pad * seq_pad * 4
    best = 1
    for d in range(1, ent_type_size + 1):
        if ent_type_size % d == 0 and d * per_ent <= budget_bytes:
            best = d
    return best


def _egp_kernel(h_ref, mrow_ref, mcol_ref,
                w_fused_ref, b_fused_ref, w2a_ref, b2a_ref,
                cos_ref, sin_ref,
                out_ref,
                qkb_sc, valid_sc, biasa_sc, biasb_sc,
                *, inner_dim, ent_type_size, ent_block):
    L = h_ref.shape[1]
    eb = pl.program_id(1)

    # ---- per-batch work: run once (ent axis is the inner, "arbitrary" axis).
    @pl.when(eb == 0)
    def _():
        h = h_ref[0]                                            # (L, H)

        # fused dense_1 (q, k halves; columns pre-permuted & pre-scaled in the
        # wrapper) + dense_2 row-bias term, one wide MXU matmul.
        proj = (jnp.dot(h, w_fused_ref[...], preferred_element_type=jnp.float32)
                + b_fused_ref[...])                             # (L, 2*inner+ent)
        qw = proj[:, :inner_dim]                                # already * 1/sqrt(inner)
        kw = proj[:, inner_dim:2 * inner_dim]
        biasb_sc[...] = proj[:, 2 * inner_dim:]                 # (L, ent), already * 0.5

        # dense_2 col-bias term, produced directly transposed: (ent, L).
        biasa_sc[...] = (lax.dot_general(w2a_ref[...], h,
                                         (((0,), (1,)), ((), ())),
                                         preferred_element_type=jnp.float32)
                         + b2a_ref[...])                        # (ent, L), already * 0.5

        # RoPE on the halves ("NeoX") layout (the wrapper permuted interleaved
        # pairs into halves; the qk inner product is invariant to that).
        half = inner_dim // 2
        cos = cos_ref[...]                                      # (L, inner/2)
        sin = sin_ref[...]
        q1, q2 = qw[:, :half], qw[:, half:]
        k1, k2 = kw[:, :half], kw[:, half:]
        q_rot = jnp.concatenate([q1 * cos - q2 * sin, q2 * cos + q1 * sin], axis=-1)
        k_rot = jnp.concatenate([k1 * cos - k2 * sin, k2 * cos + k1 * sin], axis=-1)

        # single full-depth contraction (K = inner_dim) on the MXU.
        qk = lax.dot_general(q_rot, k_rot, (((1,), (1,)), ((), ())),
                             preferred_element_type=jnp.float32)  # (L, L)

        # combined sequence mask + tril, computed once per batch.
        mrow = mrow_ref[0]                                      # (L, 1)
        mcol = mcol_ref[0]                                      # (1, L)
        valid = mrow * mcol                                     # (L, L)
        row = lax.broadcasted_iota(jnp.int32, (L, L), 0)
        col = lax.broadcasted_iota(jnp.int32, (L, L), 1)
        tril_eps = jnp.where(row > col, jnp.float32(EPSILON), jnp.float32(0.0))

        valid_sc[...] = valid
        # qk*valid - EPS*(1-valid) - tril*EPS   (exact add_mask_tril semantics)
        qkb_sc[...] = qk * valid + (valid - 1.0) * EPSILON - tril_eps

    # ---- per-ent-block slices: rank-1 bias broadcasts + cached mask, store.
    idx = lax.broadcasted_iota(jnp.int32, (L, ent_type_size), 1)  # hoisted iota
    for j in range(ent_block):                                    # small static loop
        e = eb * ent_block + j
        ba = biasa_sc[pl.ds(e, 1), :]                             # (1, L) col term
        bb = jnp.sum(jnp.where(idx == e, biasb_sc[...], 0.0),
                     axis=1, keepdims=True)                       # (L, 1) row term
        out_ref[0, j] = ((ba + bb) * valid_sc[...] + qkb_sc[...]).astype(out_ref.dtype)


def effi_global_pointer(last_hidden_state, token_mask, params, *,
                        ent_type_size, inner_dim, seq_pad_multiple=128):
    B, L, H = last_hidden_state.shape
    W1, b1, W2, b2 = params["W1"], params["b1"], params["W2"], params["b2"]

    # Pad the sequence to a lane multiple so output stores are unmasked.
    # Padded positions carry mask=0 and are sliced off afterwards, so the
    # retained entries are exactly the unpadded result.
    Lp = _round_up(L, seq_pad_multiple)
    if Lp != L:
        last_hidden_state = jnp.pad(last_hidden_state, ((0, 0), (0, Lp - L), (0, 0)))
        token_mask = jnp.pad(token_mask, ((0, 0), (0, Lp - L)))

    # torch nn.Linear: y = x @ W.T + b   (W1: (2*inner, H), W2: (2*ent, H))
    W1T, W2T = W1.T, W2.T

    # outputs[..., ::2] -> qw,  outputs[..., 1::2] -> kw; then permute RoPE
    # interleaved pairs (2i, 2i+1) into halves so the kernel avoids strided
    # lane slicing (qk contraction is invariant to this permutation).
    def perm_halves(w, b):
        return (jnp.concatenate([w[:, 0::2], w[:, 1::2]], axis=1),
                jnp.concatenate([b[0::2], b[1::2]], axis=0))

    scale = jnp.float32(1.0 / (inner_dim ** 0.5))
    W1q, b1q = perm_halves(W1T[:, 0::2], b1[0::2])
    W1k, b1k = perm_halves(W1T[:, 1::2], b1[1::2])
    W1q, b1q = W1q * scale, b1q * scale            # fold 1/sqrt(inner) into q

    W2a, b2a = W2T[:, 0::2] * 0.5, b2[0::2] * 0.5  # col-term half (bias[:, ::2])
    W2b, b2b = W2T[:, 1::2] * 0.5, b2[1::2] * 0.5  # row-term half (bias[:, 1::2])

    # fused projection: [ q | k | row-bias ]  -> one wide MXU matmul in-kernel
    W_fused = jnp.concatenate([W1q, W1k, W2b], axis=1)          # (H, 2*inner+ent)
    b_fused = jnp.concatenate([b1q, b1k, b2b], axis=0).reshape(1, -1)
    b2a_col = b2a.reshape(-1, 1)                                # (ent, 1)

    # SinusoidalPositionEmbedding angles (merge_mode='zero')
    pos = jnp.arange(Lp, dtype=jnp.float32)
    idx = jnp.arange(inner_dim // 2, dtype=jnp.float32)
    theta = jnp.power(10000.0, -2.0 * idx / inner_dim)
    ang = pos[:, None] * theta[None, :]                         # (Lp, inner/2)
    cos_p = jnp.cos(ang)
    sin_p = jnp.sin(ang)

    # mask in both layouts (avoids in-kernel lane<->sublane transpose)
    mask_f = token_mask.astype(jnp.float32)
    mask_row = mask_f.reshape(B, Lp, 1)
    mask_col = mask_f.reshape(B, 1, Lp)

    nf = 2 * inner_dim + ent_type_size
    ent_block = _pick_ent_block(ent_type_size, Lp)
    kernel = functools.partial(_egp_kernel, inner_dim=inner_dim,
                               ent_type_size=ent_type_size, ent_block=ent_block)

    grid_spec = pltpu.PrefetchScalarGridSpec(
        num_scalar_prefetch=0,
        grid=(B, ent_type_size // ent_block),
        in_specs=[
            pl.BlockSpec((1, Lp, H), lambda b, e: (b, 0, 0)),          # h
            pl.BlockSpec((1, Lp, 1), lambda b, e: (b, 0, 0)),          # mask rows
            pl.BlockSpec((1, 1, Lp), lambda b, e: (b, 0, 0)),          # mask cols
            pl.BlockSpec((H, nf), lambda b, e: (0, 0)),                # W_fused
            pl.BlockSpec((1, nf), lambda b, e: (0, 0)),                # b_fused
            pl.BlockSpec((H, ent_type_size), lambda b, e: (0, 0)),     # W2a
            pl.BlockSpec((ent_type_size, 1), lambda b, e: (0, 0)),     # b2a
            pl.BlockSpec((Lp, inner_dim // 2), lambda b, e: (0, 0)),   # cos
            pl.BlockSpec((Lp, inner_dim // 2), lambda b, e: (0, 0)),   # sin
        ],
        out_specs=pl.BlockSpec((1, ent_block, Lp, Lp), lambda b, e: (b, e, 0, 0)),
        scratch_shapes=[
            pltpu.VMEM((Lp, Lp), jnp.float32),               # qk*valid + mask/tril base
            pltpu.VMEM((Lp, Lp), jnp.float32),               # valid mask
            pltpu.VMEM((ent_type_size, Lp), jnp.float32),    # col-bias (transposed)
            pltpu.VMEM((Lp, ent_type_size), jnp.float32),    # row-bias
        ],
    )

    out = pl.pallas_call(
        kernel,
        out_shape=jax.ShapeDtypeStruct((B, ent_type_size, Lp, Lp), jnp.float32),
        grid_spec=grid_spec,
        compiler_params=pltpu.CompilerParams(
            dimension_semantics=("parallel", "arbitrary"),
            vmem_limit_bytes=64 * 1024 * 1024,
        ),
    )(last_hidden_state, mask_row, mask_col,
      W_fused, b_fused, W2a, b2a_col, cos_p, sin_p)

    if Lp != L:
        out = out[:, :, :L, :L]
    return out


def reference_forward(h, mask, W1, b1, W2, b2, *, inner_dim):
    """Pure-JAX replica of the PyTorch forward (interleaved layout)."""
    B, L, H = h.shape
    outputs = h @ W1.T + b1
    qw, kw = outputs[..., 0::2], outputs[..., 1::2]
    pos_ids = jnp.arange(L, dtype=jnp.float32)
    idx = jnp.arange(inner_dim // 2, dtype=jnp.float32)
    theta = jnp.power(10000.0, -2.0 * idx / inner_dim)
    ang = pos_ids[:, None] * theta[None, :]
    pos = jnp.stack([jnp.sin(ang), jnp.cos(ang)], axis=-1).reshape(L, inner_dim)
    cos_pos = jnp.repeat(pos[:, 1::2], 2, axis=-1)
    sin_pos = jnp.repeat(pos[:, 0::2], 2, axis=-1)

    def rot(x):
        x2 = jnp.stack([-x[..., 1::2], x[..., 0::2]], axis=-1).reshape(x.shape)
        return x * cos_pos + x2 * sin_pos

    qw, kw = rot(qw), rot(kw)
    logits = jnp.einsum('bmd,bnd->bmn', qw, kw) / (inner_dim ** 0.5)
    bias = jnp.einsum('bnh->bhn', h @ W2.T + b2) / 2
    logits = logits[:, None] + bias[:, 0::2, None] + bias[:, 1::2, :, None]
    m = mask.astype(logits.dtype)
    mm = m[:, None, :, None]
    mn = m[:, None, None, :]
    logits = logits * mm + (-EPSILON) * (1.0 - mm)
    logits = logits * mn + (-EPSILON) * (1.0 - mn)
    tril = jnp.tril(jnp.ones((L, L), logits.dtype), k=-1)
    logits = logits - tril * EPSILON
    return logits


if __name__ == "__main__":
    B, L, H = 2, 8, 32
    ent_type_size, inner_dim = 4, 16

    key = jax.random.PRNGKey(0)
    k1, k2, k3, k4, k5 = jax.random.split(key, 5)
    last_hidden_state = jax.random.normal(k1, (B, L, H), dtype=jnp.float32)
    W1 = 0.02 * jax.random.normal(k2, (2 * inner_dim, H), dtype=jnp.float32)
    b1 = 0.02 * jax.random.normal(k3, (2 * inner_dim,), dtype=jnp.float32)
    W2 = 0.02 * jax.random.normal(k4, (2 * ent_type_size, H), dtype=jnp.float32)
    b2 = 0.02 * jax.random.normal(k5, (2 * ent_type_size,), dtype=jnp.float32)

    lengths = jnp.array([L, 5], dtype=jnp.int32)
    token_mask = (jnp.arange(L)[None, :] < lengths[:, None]).astype(jnp.float32)

    params = {"W1": W1, "b1": b1, "W2": W2, "b2": b2}
    out = effi_global_pointer(last_hidden_state, token_mask, params,
                              ent_type_size=ent_type_size, inner_dim=inner_dim)
    out = jax.block_until_ready(out)

    ref = reference_forward(last_hidden_state, token_mask, W1, b1, W2, b2,
                            inner_dim=inner_dim)
    np.testing.assert_allclose(np.asarray(out), np.asarray(ref),
                               rtol=3e-5, atol=1e-3)
    print("KERNEL_OK")
</pallas_src>

<mosaic_0001>
module attributes {stable_mosaic.version = 11 : i64} {
  func.func @_egp_kernel(%arg0: i32, %arg1: i32, %arg2: memref<1x128x32xf32, #tpu.memory_space<vmem>>, %arg3: memref<1x128x1xf32, #tpu.memory_space<vmem>>, %arg4: memref<1x1x128xf32, #tpu.memory_space<vmem>>, %arg5: memref<32x36xf32, #tpu.memory_space<vmem>>, %arg6: memref<1x36xf32, #tpu.memory_space<vmem>>, %arg7: memref<32x4xf32, #tpu.memory_space<vmem>>, %arg8: memref<4x1xf32, #tpu.memory_space<vmem>>, %arg9: memref<128x8xf32, #tpu.memory_space<vmem>>, %arg10: memref<128x8xf32, #tpu.memory_space<vmem>>, %arg11: memref<1x4x128x128xf32, #tpu.memory_space<vmem>>, %arg12: memref<128x128xf32, #tpu.memory_space<vmem>>, %arg13: memref<128x128xf32, #tpu.memory_space<vmem>>, %arg14: memref<4x128xf32, #tpu.memory_space<vmem>>, %arg15: memref<128x4xf32, #tpu.memory_space<vmem>>) attributes {dimension_semantics = [#tpu.dimension_semantics<parallel>, #tpu.dimension_semantics<arbitrary>], iteration_bounds = array<i64: 2, 1>, scalar_prefetch = 0 : i64, scratch_operands = 4 : i64, tpu.core_type = #tpu.core_type<tc>, window_params = [{transform_indices = @transform_0, window_bounds = array<i64: 1, 128, 32>}, {transform_indices = @transform_1, window_bounds = array<i64: 1, 128, 1>}, {transform_indices = @transform_2, window_bounds = array<i64: 1, 1, 128>}, {pipeline_mode = #tpu.pipeline_mode<synchronous>, transform_indices = @transform_3, window_bounds = array<i64: 32, 36>}, {pipeline_mode = #tpu.pipeline_mode<synchronous>, transform_indices = @transform_4, window_bounds = array<i64: 1, 36>}, {pipeline_mode = #tpu.pipeline_mode<synchronous>, transform_indices = @transform_5, window_bounds = array<i64: 32, 4>}, {pipeline_mode = #tpu.pipeline_mode<synchronous>, transform_indices = @transform_6, window_bounds = array<i64: 4, 1>}, {pipeline_mode = #tpu.pipeline_mode<synchronous>, transform_indices = @transform_7, window_bounds = array<i64: 128, 8>}, {pipeline_mode = #tpu.pipeline_mode<synchronous>, transform_indices = @transform_8, window_bounds = array<i64: 128, 8>}, {transform_indices = @transform_9, window_bounds = array<i64: 1, 4, 128, 128>}]} {
    %c0_i32 = arith.constant 0 : i32
    %0 = arith.cmpi eq, %arg1, %c0_i32 : i32
    %1 = arith.extui %0 : i1 to i32
    %c0_i32_0 = arith.constant 0 : i32
    %2 = arith.cmpi ne, %1, %c0_i32_0 : i32
    scf.if %2 {
      %c0_52 = arith.constant 0 : index
      %c0_53 = arith.constant 0 : index
      %c0_54 = arith.constant 0 : index
      %88 = vector.load %arg2[%c0_52, %c0_53, %c0_54] : memref<1x128x32xf32, #tpu.memory_space<vmem>>, vector<1x128x32xf32>
      %89 = vector.shape_cast %88 : vector<1x128x32xf32> to vector<128x32xf32>
      %c0_55 = arith.constant 0 : index
      %c0_56 = arith.constant 0 : index
      %90 = vector.load %arg5[%c0_55, %c0_56] : memref<32x36xf32, #tpu.memory_space<vmem>>, vector<32x36xf32>
      %cst_57 = arith.constant dense<0.000000e+00> : vector<128x36xf32>
      %91 = tpu.matmul %89, %90, %cst_57 {dimension_numbers = #tpu.dot_dimension_numbers<[1], [0], [0], [1], [0, 0, 1, 1], [], []>} : vector<128x32xf32>, vector<32x36xf32>, vector<128x36xf32> -> vector<128x36xf32>
      %c0_58 = arith.constant 0 : index
      %c0_59 = arith.constant 0 : index
      %92 = vector.load %arg6[%c0_58, %c0_59] : memref<1x36xf32, #tpu.memory_space<vmem>>, vector<1x36xf32>
      %93 = vector.broadcast %92 : vector<1x36xf32> to vector<128x36xf32>
      %94 = arith.addf %91, %93 : vector<128x36xf32>
      %95 = vector.extract_strided_slice %94 {offsets = [0, 0], sizes = [128, 16], strides = [1, 1]} : vector<128x36xf32> to vector<128x16xf32>
      %96 = vector.extract_strided_slice %94 {offsets = [0, 16], sizes = [128, 16], strides = [1, 1]} : vector<128x36xf32> to vector<128x16xf32>
      %97 = vector.extract_strided_slice %94 {offsets = [0, 32], sizes = [128, 4], strides = [1, 1]} : vector<128x36xf32> to vector<128x4xf32>
      %c0_60 = arith.constant 0 : index
      %c0_61 = arith.constant 0 : index
      %98 = vector.load %arg15[%c0_60, %c0_61] : memref<128x4xf32, #tpu.memory_space<vmem>>, vector<128x4xf32>
      tpu.vector_store %arg15[%c0_60, %c0_61], %97 {strides = array<i32>} : memref<128x4xf32, #tpu.memory_space<vmem>>, vector<128x4xf32>,
      %c0_62 = arith.constant 0 : index
      %c0_63 = arith.constant 0 : index
      %99 = vector.load %arg7[%c0_62, %c0_63] : memref<32x4xf32, #tpu.memory_space<vmem>>, vector<32x4xf32>
      %cst_64 = arith.constant dense<0.000000e+00> : vector<4x128xf32>
      %100 = tpu.matmul %99, %89, %cst_64 {dimension_numbers = #tpu.dot_dimension_numbers<[0], [1], [1], [0], [0, 1, 1, 0], [], []>} : vector<32x4xf32>, vector<128x32xf32>, vector<4x128xf32> -> vector<4x128xf32>
      %c0_65 = arith.constant 0 : index
      %c0_66 = arith.constant 0 : index
      %101 = vector.load %arg8[%c0_65, %c0_66] : memref<4x1xf32, #tpu.memory_space<vmem>>, vector<4x1xf32>
      %102 = vector.broadcast %101 : vector<4x1xf32> to vector<4x128xf32>
      %103 = arith.addf %100, %102 : vector<4x128xf32>
      %c0_67 = arith.constant 0 : index
      %c0_68 = arith.constant 0 : index
      %104 = vector.load %arg14[%c0_67, %c0_68] : memref<4x128xf32, #tpu.memory_space<vmem>>, vector<4x128xf32>
      tpu.vector_store %arg14[%c0_67, %c0_68], %103 {strides = array<i32>} : memref<4x128xf32, #tpu.memory_space<vmem>>, vector<4x128xf32>,
      %c0_69 = arith.constant 0 : index
      %c0_70 = arith.constant 0 : index
      %105 = vector.load %arg9[%c0_69, %c0_70] : memref<128x8xf32, #tpu.memory_space<vmem>>, vector<128x8xf32>
      %c0_71 = arith.constant 0 : index
      %c0_72 = arith.constant 0 : index
      %106 = vector.load %arg10[%c0_71, %c0_72] : memref<128x8xf32, #tpu.memory_space<vmem>>, vector<128x8xf32>
      %107 = vector.extract_strided_slice %95 {offsets = [0, 0], sizes = [128, 8], strides = [1, 1]} : vector<128x16xf32> to vector<128x8xf32>
      %108 = vector.extract_strided_slice %95 {offsets = [0, 8], sizes = [128, 8], strides = [1, 1]} : vector<128x16xf32> to vector<128x8xf32>
      %109 = vector.extract_strided_slice %96 {offsets = [0, 0], sizes = [128, 8], strides = [1, 1]} : vector<128x16xf32> to vector<128x8xf32>
      %110 = vector.extract_strided_slice %96 {offsets = [0, 8], sizes = [128, 8], strides = [1, 1]} : vector<128x16xf32> to vector<128x8xf32>
      %111 = arith.mulf %107, %105 : vector<128x8xf32>
      %112 = arith.mulf %108, %106 : vector<128x8xf32>
      %113 = arith.subf %111, %112 : vector<128x8xf32>
      %114 = arith.mulf %108, %105 : vector<128x8xf32>
      %115 = arith.mulf %107, %106 : vector<128x8xf32>
      %116 = arith.addf %114, %115 : vector<128x8xf32>
      %117 = tpu.concatenate %113, %116 in 1 : vector<128x8xf32>, vector<128x8xf32> -> vector<128x16xf32>
      %118 = arith.mulf %109, %105 : vector<128x8xf32>
      %119 = arith.mulf %110, %106 : vector<128x8xf32>
      %120 = arith.subf %118, %119 : vector<128x8xf32>
      %121 = arith.mulf %110, %105 : vector<128x8xf32>
      %122 = arith.mulf %109, %106 : vector<128x8xf32>
      %123 = arith.addf %121, %122 : vector<128x8xf32>
      %124 = tpu.concatenate %120, %123 in 1 : vector<128x8xf32>, vector<128x8xf32> -> vector<128x16xf32>
      %cst_73 = arith.constant dense<0.000000e+00> : vector<128x128xf32>
      %125 = tpu.matmul %117, %124, %cst_73 {dimension_numbers = #tpu.dot_dimension_numbers<[1], [1], [0], [0], [0, 0, 1, 0], [], []>} : vector<128x16xf32>, vector<128x16xf32>, vector<128x128xf32> -> vector<128x128xf32>
      %c0_74 = arith.constant 0 : index
      %c0_75 = arith.constant 0 : index
      %c0_76 = arith.constant 0 : index
      %126 = vector.load %arg3[%c0_74, %c0_75, %c0_76] : memref<1x128x1xf32, #tpu.memory_space<vmem>>, vector<1x128x1xf32>
      %127 = vector.shape_cast %126 : vector<1x128x1xf32> to vector<128x1xf32>
      %c0_77 = arith.constant 0 : index
      %c0_78 = arith.constant 0 : index
      %c0_79 = arith.constant 0 : index
      %128 = vector.load %arg4[%c0_77, %c0_78, %c0_79] : memref<1x1x128xf32, #tpu.memory_space<vmem>>, vector<1x1x128xf32>
      %129 = vector.shape_cast %128 : vector<1x1x128xf32> to vector<1x128xf32>
      %130 = vector.broadcast %127 : vector<128x1xf32> to vector<128x128xf32>
      %131 = vector.broadcast %129 : vector<1x128xf32> to vector<128x128xf32>
      %132 = arith.mulf %130, %131 : vector<128x128xf32>
      %133 = tpu.iota {dimensions = array<i32: 0>} : vector<128x128xi32>
      %134 = tpu.iota {dimensions = array<i32: 1>} : vector<128x128xi32>
      %135 = arith.cmpi sgt, %133, %134 : vector<128x128xi32>
      %cst_80 = arith.constant 9.99999995E+11 : f32
      %cst_81 = arith.constant 0.000000e+00 : f32
      %136 = vector.broadcast %cst_80 : f32 to vector<128x128xf32>
      %137 = vector.broadcast %cst_81 : f32 to vector<128x128xf32>
      %138 = arith.select %135, %136, %137 : vector<128x128xi1>, vector<128x128xf32>
      %c0_82 = arith.constant 0 : index
      %c0_83 = arith.constant 0 : index
      %139 = vector.load %arg13[%c0_82, %c0_83] : memref<128x128xf32, #tpu.memory_space<vmem>>, vector<128x128xf32>
      tpu.vector_store %arg13[%c0_82, %c0_83], %132 {strides = array<i32>} : memref<128x128xf32, #tpu.memory_space<vmem>>, vector<128x128xf32>,
      %140 = arith.mulf %125, %132 : vector<128x128xf32>
      %cst_84 = arith.constant 1.000000e+00 : f32
      %141 = vector.broadcast %cst_84 : f32 to vector<128x128xf32>
      %142 = arith.subf %132, %141 : vector<128x128xf32>
      %cst_85 = arith.constant 9.99999995E+11 : f32
      %143 = vector.broadcast %cst_85 : f32 to vector<128x128xf32>
      %144 = arith.mulf %142, %143 : vector<128x128xf32>
      %145 = arith.addf %140, %144 : vector<128x128xf32>
      %146 = arith.subf %145, %138 : vector<128x128xf32>
      %c0_86 = arith.constant 0 : index
      %c0_87 = arith.constant 0 : index
      %147 = vector.load %arg12[%c0_86, %c0_87] : memref<128x128xf32, #tpu.memory_space<vmem>>, vector<128x128xf32>
      tpu.vector_store %arg12[%c0_86, %c0_87], %146 {strides = array<i32>} : memref<128x128xf32, #tpu.memory_space<vmem>>, vector<128x128xf32>,
    } else {
    }
    %3 = tpu.iota {dimensions = array<i32: 1>} : vector<128x4xi32>
    %c4_i32 = arith.constant 4 : i32
    %4 = arith.muli %arg1, %c4_i32 : i32
    %c0_i32_1 = arith.constant 0 : i32
    %5 = arith.addi %4, %c0_i32_1 : i32
    %6 = arith.index_cast %5 : i32 to index
    %c0 = arith.constant 0 : index
    %7 = vector.load %arg14[%6, %c0] : memref<4x128xf32, #tpu.memory_space<vmem>>, vector<1x128xf32>
    %8 = vector.broadcast %5 : i32 to vector<128x4xi32>
    %9 = arith.cmpi eq, %3, %8 : vector<128x4xi32>
    %c0_2 = arith.constant 0 : index
    %c0_3 = arith.constant 0 : index
    %10 = vector.load %arg15[%c0_2, %c0_3] : memref<128x4xf32, #tpu.memory_space<vmem>>, vector<128x4xf32>
    %cst = arith.constant 0.000000e+00 : f32
    %11 = vector.broadcast %cst : f32 to vector<128x4xf32>
    %12 = arith.select %9, %10, %11 : vector<128x4xi1>, vector<128x4xf32>
    %cst_4 = arith.constant dense<0.000000e+00> : vector<128xf32>
    %13 = vector.multi_reduction <add>, %12, %cst_4 [1] : vector<128x4xf32> to vector<128xf32>
    %14 = vector.shape_cast %13 : vector<128xf32> to vector<128x1xf32>
    %15 = vector.broadcast %7 : vector<1x128xf32> to vector<128x128xf32>
    %16 = vector.broadcast %14 : vector<128x1xf32> to vector<128x128xf32>
    %17 = arith.addf %15, %16 : vector<128x128xf32>
    %c0_5 = arith.constant 0 : index
    %c0_6 = arith.constant 0 : index
    %18 = vector.load %arg13[%c0_5, %c0_6] : memref<128x128xf32, #tpu.memory_space<vmem>>, vector<128x128xf32>
    %19 = arith.mulf %17, %18 : vector<128x128xf32>
    %c0_7 = arith.constant 0 : index
    %c0_8 = arith.constant 0 : index
    %20 = vector.load %arg12[%c0_7, %c0_8] : memref<128x128xf32, #tpu.memory_space<vmem>>, vector<128x128xf32>
    %21 = arith.addf %19, %20 : vector<128x128xf32>
    %c0_9 = arith.constant 0 : index
    %c0_10 = arith.constant 0 : index
    %c0_11 = arith.constant 0 : index
    %c0_12 = arith.constant 0 : index
    %22 = vector.load %arg11[%c0_9, %c0_10, %c0_11, %c0_12] : memref<1x4x128x128xf32, #tpu.memory_space<vmem>>, vector<1x1x128x128xf32>
    %23 = vector.shape_cast %22 : vector<1x1x128x128xf32> to vector<128x128xf32>
    %24 = vector.shape_cast %21 : vector<128x128xf32> to vector<1x1x128x128xf32>
    tpu.vector_store %arg11[%c0_9, %c0_10, %c0_11, %c0_12], %24 {strides = array<i32>} : memref<1x4x128x128xf32, #tpu.memory_space<vmem>>, vector<1x1x128x128xf32>,
    %c4_i32_13 = arith.constant 4 : i32
    %25 = arith.muli %arg1, %c4_i32_13 : i32
    %c1_i32 = arith.constant 1 : i32
    %26 = arith.addi %25, %c1_i32 : i32
    %27 = arith.index_cast %26 : i32 to index
    %c0_14 = arith.constant 0 : index
    %28 = vector.load %arg14[%27, %c0_14] : memref<4x128xf32, #tpu.memory_space<vmem>>, vector<1x128xf32>
    %29 = vector.broadcast %26 : i32 to vector<128x4xi32>
    %30 = arith.cmpi eq, %3, %29 : vector<128x4xi32>
    %c0_15 = arith.constant 0 : index
    %c0_16 = arith.constant 0 : index
    %31 = vector.load %arg15[%c0_15, %c0_16] : memref<128x4xf32, #tpu.memory_space<vmem>>, vector<128x4xf32>
    %cst_17 = arith.constant 0.000000e+00 : f32
    %32 = vector.broadcast %cst_17 : f32 to vector<128x4xf32>
    %33 = arith.select %30, %31, %32 : vector<128x4xi1>, vector<128x4xf32>
    %cst_18 = arith.constant dense<0.000000e+00> : vector<128xf32>
    %34 = vector.multi_reduction <add>, %33, %cst_18 [1] : vector<128x4xf32> to vector<128xf32>
    %35 = vector.shape_cast %34 : vector<128xf32> to vector<128x1xf32>
    %36 = vector.broadcast %28 : vector<1x128xf32> to vector<128x128xf32>
    %37 = vector.broadcast %35 : vector<128x1xf32> to vector<128x128xf32>
    %38 = arith.addf %36, %37 : vector<128x128xf32>
    %c0_19 = arith.constant 0 : index
    %c0_20 = arith.constant 0 : index
    %39 = vector.load %arg13[%c0_19, %c0_20] : memref<128x128xf32, #tpu.memory_space<vmem>>, vector<128x128xf32>
    %40 = arith.mulf %38, %39 : vector<128x128xf32>
    %c0_21 = arith.constant 0 : index
    %c0_22 = arith.constant 0 : index
    %41 = vector.load %arg12[%c0_21, %c0_22] : memref<128x128xf32, #tpu.memory_space<vmem>>, vector<128x128xf32>
    %42 = arith.addf %40, %41 : vector<128x128xf32>
    %c0_23 = arith.constant 0 : index
    %c1 = arith.constant 1 : index
    %c0_24 = arith.constant 0 : index
    %c0_25 = arith.constant 0 : index
    %43 = vector.load %arg11[%c0_23, %c1, %c0_24, %c0_25] : memref<1x4x128x128xf32, #tpu.memory_space<vmem>>, vector<1x1x128x128xf32>
    %44 = vector.shape_cast %43 : vector<1x1x128x128xf32> to vector<128x128xf32>
    %45 = vector.shape_cast %42 : vector<128x128xf32> to vector<1x1x128x128xf32>
    tpu.vector_store %arg11[%c0_23, %c1, %c0_24, %c0_25], %45 {strides = array<i32>} : memref<1x4x128x128xf32, #tpu.memory_space<vmem>>, vector<1x1x128x128xf32>,
    %c4_i32_26 = arith.constant 4 : i32
    %46 = arith.muli %arg1, %c4_i32_26 : i32
    %c2_i32 = arith.constant 2 : i32
    %47 = arith.addi %46, %c2_i32 : i32
    %48 = arith.index_cast %47 : i32 to index
    %c0_27 = arith.constant 0 : index
    %49 = vector.load %arg14[%48, %c0_27] : memref<4x128xf32, #tpu.memory_space<vmem>>, vector<1x128xf32>
    %50 = vector.broadcast %47 : i32 to vector<128x4xi32>
    %51 = arith.cmpi eq, %3, %50 : vector<128x4xi32>
    %c0_28 = arith.constant 0 : index
    %c0_29 = arith.constant 0 : index
    %52 = vector.load %arg15[%c0_28, %c0_29] : memref<128x4xf32, #tpu.memory_space<vmem>>, vector<128x4xf32>
    %cst_30 = arith.constant 0.000000e+00 : f32
    %53 = vector.broadcast %cst_30 : f32 to vector<128x4xf32>
    %54 = arith.select %51, %52, %53 : vector<128x4xi1>, vector<128x4xf32>
    %cst_31 = arith.constant dense<0.000000e+00> : vector<128xf32>
    %55 = vector.multi_reduction <add>, %54, %cst_31 [1] : vector<128x4xf32> to vector<128xf32>
    %56 = vector.shape_cast %55 : vector<128xf32> to vector<128x1xf32>
    %57 = vector.broadcast %49 : vector<1x128xf32> to vector<128x128xf32>
    %58 = vector.broadcast %56 : vector<128x1xf32> to vector<128x128xf32>
    %59 = arith.addf %57, %58 : vector<128x128xf32>
    %c0_32 = arith.constant 0 : index
    %c0_33 = arith.constant 0 : index
    %60 = vector.load %arg13[%c0_32, %c0_33] : memref<128x128xf32, #tpu.memory_space<vmem>>, vector<128x128xf32>
    %61 = arith.mulf %59, %60 : vector<128x128xf32>
    %c0_34 = arith.constant 0 : index
    %c0_35 = arith.constant 0 : index
    %62 = vector.load %arg12[%c0_34, %c0_35] : memref<128x128xf32, #tpu.memory_space<vmem>>, vector<128x128xf32>
    %63 = arith.addf %61, %62 : vector<128x128xf32>
    %c0_36 = arith.constant 0 : index
    %c2 = arith.constant 2 : index
    %c0_37 = arith.constant 0 : index
    %c0_38 = arith.constant 0 : index
    %64 = vector.load %arg11[%c0_36, %c2, %c0_37, %c0_38] : memref<1x4x128x128xf32, #tpu.memory_space<vmem>>, vector<1x1x128x128xf32>
    %65 = vector.shape_cast %64 : vector<1x1x128x128xf32> to vector<128x128xf32>
    %66 = vector.shape_cast %63 : vector<128x128xf32> to vector<1x1x128x128xf32>
    tpu.vector_store %arg11[%c0_36, %c2, %c0_37, %c0_38], %66 {strides = array<i32>} : memref<1x4x128x128xf32, #tpu.memory_space<vmem>>, vector<1x1x128x128xf32>,
    %c4_i32_39 = arith.constant 4 : i32
    %67 = arith.muli %arg1, %c4_i32_39 : i32
    %c3_i32 = arith.constant 3 : i32
    %68 = arith.addi %67, %c3_i32 : i32
    %69 = arith.index_cast %68 : i32 to index
    %c0_40 = arith.constant 0 : index
    %70 = vector.load %arg14[%69, %c0_40] : memref<4x128xf32, #tpu.memory_space<vmem>>, vector<1x128xf32>
    %71 = vector.broadcast %68 : i32 to vector<128x4xi32>
    %72 = arith.cmpi eq, %3, %71 : vector<128x4xi32>
    %c0_41 = arith.constant 0 : index
    %c0_42 = arith.constant 0 : index
    %73 = vector.load %arg15[%c0_41, %c0_42] : memref<128x4xf32, #tpu.memory_space<vmem>>, vector<128x4xf32>
    %cst_43 = arith.constant 0.000000e+00 : f32
    %74 = vector.broadcast %cst_43 : f32 to vector<128x4xf32>
    %75 = arith.select %72, %73, %74 : vector<128x4xi1>, vector<128x4xf32>
    %cst_44 = arith.constant dense<0.000000e+00> : vector<128xf32>
    %76 = vector.multi_reduction <add>, %75, %cst_44 [1] : vector<128x4xf32> to vector<128xf32>
    %77 = vector.shape_cast %76 : vector<128xf32> to vector<128x1xf32>
    %78 = vector.broadcast %70 : vector<1x128xf32> to vector<128x128xf32>
    %79 = vector.broadcast %77 : vector<128x1xf32> to vector<128x128xf32>
    %80 = arith.addf %78, %79 : vector<128x128xf32>
    %c0_45 = arith.constant 0 : index
    %c0_46 = arith.constant 0 : index
    %81 = vector.load %arg13[%c0_45, %c0_46] : memref<128x128xf32, #tpu.memory_space<vmem>>, vector<128x128xf32>
    %82 = arith.mulf %80, %81 : vector<128x128xf32>
    %c0_47 = arith.constant 0 : index
    %c0_48 = arith.constant 0 : index
    %83 = vector.load %arg12[%c0_47, %c0_48] : memref<128x128xf32, #tpu.memory_space<vmem>>, vector<128x128xf32>
    %84 = arith.addf %82, %83 : vector<128x128xf32>
    %c0_49 = arith.constant 0 : index
    %c3 = arith.constant 3 : index
    %c0_50 = arith.constant 0 : index
    %c0_51 = arith.constant 0 : index
    %85 = vector.load %arg11[%c0_49, %c3, %c0_50, %c0_51] : memref<1x4x128x128xf32, #tpu.memory_space<vmem>>, vector<1x1x128x128xf32>
    %86 = vector.shape_cast %85 : vector<1x1x128x128xf32> to vector<128x128xf32>
    %87 = vector.shape_cast %84 : vector<128x128xf32> to vector<1x1x128x128xf32>
    tpu.vector_store %arg11[%c0_49, %c3, %c0_50, %c0_51], %87 {strides = array<i32>} : memref<1x4x128x128xf32, #tpu.memory_space<vmem>>, vector<1x1x128x128xf32>,
    return
  }
  func.func @transform_0(%arg0: i32, %arg1: i32) -> (i32, i32, i32) {
    %c0_i32 = arith.constant 0 : i32
    %c0_i32_0 = arith.constant 0 : i32
    %c0_i32_1 = arith.constant 0 : i32
    return %arg0, %c0_i32, %c0_i32_0 : i32, i32, i32
  }
  func.func @transform_1(%arg0: i32, %arg1: i32) -> (i32, i32, i32) {
    %c0_i32 = arith.constant 0 : i32
    %c0_i32_0 = arith.constant 0 : i32
    %c0_i32_1 = arith.constant 0 : i32
    return %arg0, %c0_i32, %c0_i32_0 : i32, i32, i32
  }
  func.func @transform_2(%arg0: i32, %arg1: i32) -> (i32, i32, i32) {
    %c0_i32 = arith.constant 0 : i32
    %c0_i32_0 = arith.constant 0 : i32
    %c0_i32_1 = arith.constant 0 : i32
    return %arg0, %c0_i32, %c0_i32_0 : i32, i32, i32
  }
  func.func @transform_3(%arg0: i32, %arg1: i32) -> (i32, i32) {
    %c0_i32 = arith.constant 0 : i32
    %c0_i32_0 = arith.constant 0 : i32
    %c0_i32_1 = arith.constant 0 : i32
    return %c0_i32, %c0_i32_0 : i32, i32
  }
  func.func @transform_4(%arg0: i32, %arg1: i32) -> (i32, i32) {
    %c0_i32 = arith.constant 0 : i32
    %c0_i32_0 = arith.constant 0 : i32
    %c0_i32_1 = arith.constant 0 : i32
    return %c0_i32, %c0_i32_0 : i32, i32
  }
  func.func @transform_5(%arg0: i32, %arg1: i32) -> (i32, i32) {
    %c0_i32 = arith.constant 0 : i32
    %c0_i32_0 = arith.constant 0 : i32
    %c0_i32_1 = arith.constant 0 : i32
    return %c0_i32, %c0_i32_0 : i32, i32
  }
  func.func @transform_6(%arg0: i32, %arg1: i32) -> (i32, i32) {
    %c0_i32 = arith.constant 0 : i32
    %c0_i32_0 = arith.constant 0 : i32
    %c0_i32_1 = arith.constant 0 : i32
    return %c0_i32, %c0_i32_0 : i32, i32
  }
  func.func @transform_7(%arg0: i32, %arg1: i32) -> (i32, i32) {
    %c0_i32 = arith.constant 0 : i32
    %c0_i32_0 = arith.constant 0 : i32
    %c0_i32_1 = arith.constant 0 : i32
    return %c0_i32, %c0_i32_0 : i32, i32
  }
  func.func @transform_8(%arg0: i32, %arg1: i32) -> (i32, i32) {
    %c0_i32 = arith.constant 0 : i32
    %c0_i32_0 = arith.constant 0 : i32
    %c0_i32_1 = arith.constant 0 : i32
    return %c0_i32, %c0_i32_0 : i32, i32
  }
  func.func @transform_9(%arg0: i32, %arg1: i32) -> (i32, i32, i32, i32) {
    %c0_i32 = arith.constant 0 : i32
    %c0_i32_0 = arith.constant 0 : i32
    %c0_i32_1 = arith.constant 0 : i32
    return %arg0, %arg1, %c0_i32, %c0_i32_0 : i32, i32, i32, i32
  }
}

</mosaic_0001>

<llo_original>
// kernel: tpu_custom_call.1
$region0: #{tpu_custom_call.1}
  #allocation0 [shape = 'u32[]', space=smem, size = 0x4, offset = 0x4, fixed_abs, tag = 'smem constant byte address 0x4 - core index']
  #allocation1 [shape = 'u32[144,128]{1,0:T(1,128)}', space=vmem, size = 0x12000, scoped, tag = 'internal scratch']
  #allocation2 [shape = 'f32[128,128]{1,0:T(8,128)}', space=vmem, size = 0x10000, scoped, tag = 'scratch operand']
  #allocation3 [shape = 'f32[128,128]{1,0:T(8,128)}', space=vmem, size = 0x10000, scoped, tag = 'scratch operand']
  #allocation4 [shape = 'f32[4,128]{1,0:T(4,128)}', space=vmem, size = 0x800, scoped, tag = 'scratch operand']
  #allocation5 [shape = 'f32[128,4]{1,0:T(8,128)}', space=vmem, size = 0x10000, scoped, tag = 'scratch operand']
  %s0 = inlined_call_operand.hbm [shape: f32[2,128,32], index: 0, kind: input, shape index: {}]
  %s1 = inlined_call_operand.hbm [shape: f32[2,128,1], index: 1, kind: input, shape index: {}]
  %s2 = inlined_call_operand.hbm [shape: f32[2,1,128], index: 2, kind: input, shape index: {}]
  %s3 = inlined_call_operand.hbm [shape: f32[32,36], index: 3, kind: input, shape index: {}]
  %s4 = inlined_call_operand.hbm [shape: f32[1,36], index: 4, kind: input, shape index: {}]
  %s5 = inlined_call_operand.hbm [shape: f32[32,4], index: 5, kind: input, shape index: {}]
  %s6 = inlined_call_operand.hbm [shape: f32[4,1], index: 6, kind: input, shape index: {}]
  %s7 = inlined_call_operand.hbm [shape: f32[128,8], index: 7, kind: input, shape index: {}]
  %s8 = inlined_call_operand.hbm [shape: f32[128,8], index: 8, kind: input, shape index: {}]
  %s9 = inlined_call_operand.hbm [shape: f32[2,4,128,128], index: 9, kind: output, shape index: {}]
  %s10 = sld [smem:[#allocation0]]
  $region109: #{tpu_custom_call.1} parent=0
    _
  %s12 = ssub.s32 1, %s10
  %s13 = scalar_select 0, %s12, %s10
  $region1: #{tpu_custom_call.1} parent=0
    #allocation6 [shape = 'u8[131072]{0}', space=vmem, size = 0x20000, scoped, tag = 'input window, operand 0']
    #allocation7 [shape = 's32[2]{0}', space=sflag, size = 0x8, scoped, tag = 'scoped memory for tpu_custom_call.1']
    #allocation8 [shape = 's32[2]{0}', space=sflag, size = 0x8, scoped, tag = 'scoped memory for tpu_custom_call.1']
    #allocation9 [shape = 'u8[131072]{0}', space=vmem, size = 0x20000, scoped, tag = 'input window, operand 1']
    #allocation10 [shape = 's32[2]{0}', space=sflag, size = 0x8, scoped, tag = 'scoped memory for tpu_custom_call.1']
    #allocation11 [shape = 'u8[1024]{0}', space=vmem, size = 0x400, scoped, tag = 'input window, operand 2']
    #allocation12 [shape = 'u8[16384]{0}', space=vmem, size = 0x4000, scoped, tag = 'input window, operand 3, single buffered']
    #allocation13 [shape = 's32[1]{0}', space=sflag, size = 0x4, scoped, tag = 'scoped memory for tpu_custom_call.1']
    #allocation14 [shape = 'u8[512]{0}', space=vmem, size = 0x400, scoped, tag = 'input window, operand 4, single buffered']
    #allocation15 [shape = 'u8[16384]{0}', space=vmem, size = 0x4000, scoped, tag = 'input window, operand 5, single buffered']
    #allocation16 [shape = 's32[1]{0}', space=sflag, size = 0x4, scoped, tag = 'scoped memory for tpu_custom_call.1']
    #allocation17 [shape = 'u8[2048]{0}', space=vmem, size = 0x800, scoped, tag = 'input window, operand 6, single buffered']
    #allocation18 [shape = 'u8[65536]{0}', space=vmem, size = 0x10000, scoped, tag = 'input window, operand 7, single buffered']
    #allocation19 [shape = 's32[1]{0}', space=sflag, size = 0x4, scoped, tag = 'scoped memory for tpu_custom_call.1']
    #allocation20 [shape = 'u8[65536]{0}', space=vmem, size = 0x10000, scoped, tag = 'input window, operand 8, single buffered']
    #allocation21 [shape = 'u8[524288]{0}', space=vmem, size = 0x80000, scoped, tag = 'output window, operand 0']
    %14 = vsyncpa [#allocation7], 0
    %s15 = scalar_lea.sflag [#allocation7], 1
    %16 = vsyncpa %s15, 0
    %17 = vsyncpa [#allocation10], 0
    %s18 = scalar_lea.sflag [#allocation10], 1
    %19 = vsyncpa %s18, 0
    %20 = vsyncpa [#allocation13], 0
    %21 = vsyncpa [#allocation16], 0
    %22 = vsyncpa [#allocation19], 0
    %23 = vsyncpa [#allocation8], 0
    %s24 = scalar_lea.sflag [#allocation8], 1
    %25 = vsyncpa %s24, 0
    loop: start=0, step=1, limit=4
    $region2: #{tpu_custom_call.1} parent=1 // loop_pre_header
      _
    $region3: #{tpu_custom_call.1} parent=1 // loop_header
      %s27 = sphi 0, %s31
      %p28 = scmp.ge.s32.totalorder %s27, 4
      %s34 = sphi 0, %s46
      %s35 = sphi 0, %s42
      %s36 = sphi 0, %s34
      %s37 = sphi 0, %s35
      %s38 = sphi 0, %s36
      %s39 = sphi 0, %s37
      %s49 = sphi 0, %s51
      %s52 = sphi 0, %s49
      %s53 = sphi 0, %s52
      %s69 = sphi 0, %s53
      %s75 = sphi 0, %s77
      %s78 = sphi 0, %s75
      %s79 = sphi 0, %s78
      %s95 = sphi 0, %s79
      %s101 = sphi 0, %s103
      %s104 = sphi 0, %s101
      %s105 = sphi 0, %s104
      %s121 = sphi 0, %s105
      %s125 = sphi 0, %s125
      %s127 = sphi 0, %s125
      %s128 = sphi 0, %s127
      %s142 = sphi 0, %s128
      %s146 = sphi 0, %s146
      %s148 = sphi 0, %s146
      %s149 = sphi 0, %s148
      %s163 = sphi 0, %s149
      %s167 = sphi 0, %s167
      %s169 = sphi 0, %s167
      %s170 = sphi 0, %s169
      %s184 = sphi 0, %s170
      %s188 = sphi 0, %s188
      %s190 = sphi 0, %s188
      %s191 = sphi 0, %s190
      %s205 = sphi 0, %s191
      %s209 = sphi 0, %s209
      %s211 = sphi 0, %s209
      %s212 = sphi 0, %s211
      %s226 = sphi 0, %s212
      %s230 = sphi 0, %s230
      %s232 = sphi 0, %s230
      %s233 = sphi 0, %s232
      %s247 = sphi 0, %s233
      %s255 = sphi 0, %s257
      %s258 = sphi 0, %s255
      %s259 = sphi 0, %s258
      %s275 = sphi 0, %s259
    $region4: #{tpu_custom_call.1} parent=1 // loop_header_branch
      %30 = sbr.rel (%p28) target = $region8
    $region5: #{tpu_custom_call.1} parent=1 // loop_body
      %s32 = ssub.s32 %s27, 1
      %s33 = ssub.s32 %s27, 2
      %s40 = sadd.s32 1, %s35
      %p41 = scmp.ge.s32.totalorder %s40, 1
      %s42 = scalar_select %p41, 0, %s40
      %s43 = sadd.s32 1, %s34
      %s44 = scalar_select %p41, %s43, %s34
      %p45 = scmp.ge.s32.totalorder %s44, 2
      %s46 = scalar_select %p45, 0, %s44
      %s47 = ssub.s32 %s34, %s46
      %p48 = scmp.eq.s32.totalorder %s47, 0
      %s50 = sadd.s32 %s49, 1
      %s51 = scalar_select %p48, %s49, %s50
      %p54 = pneg %p48
      %p55 = scmp.eq.s32.totalorder %s27, 1
      %p56 = por %p54, %p55
      %p57 = scmp.ne.s32.totalorder %s49, %s52
      %p58 = scmp.eq.s32.totalorder %s27, 0
      %p59 = por %p57, %p58
      %p60 = scmp.ne.s32.totalorder %s49, %s52
      %p61 = scmp.eq.s32.totalorder %s32, 1
      %p62 = por %p60, %p61
      %p63 = scmp.ne.s32.totalorder %s52, %s53
      %p64 = scmp.eq.s32.totalorder %s32, 0
      %p65 = por %p63, %p64
      %p66 = scmp.ne.s32.totalorder %s52, %s53
      %p67 = scmp.eq.s32.totalorder %s33, 1
      %p68 = por %p66, %p67
      %p70 = scmp.ne.s32.totalorder %s53, %s69
      %p71 = scmp.eq.s32.totalorder %s33, 0
      %p72 = por %p70, %p71
      %s73 = ssub.s32 %s34, %s46
      %p74 = scmp.eq.s32.totalorder %s73, 0
      %s76 = sadd.s32 %s75, 1
      %s77 = scalar_select %p74, %s75, %s76
      %p80 = pneg %p74
      %p81 = scmp.eq.s32.totalorder %s27, 1
      %p82 = por %p80, %p81
      %p83 = scmp.ne.s32.totalorder %s75, %s78
      %p84 = scmp.eq.s32.totalorder %s27, 0
      %p85 = por %p83, %p84
      %p86 = scmp.ne.s32.totalorder %s75, %s78
      %p87 = scmp.eq.s32.totalorder %s32, 1
      %p88 = por %p86, %p87
      %p89 = scmp.ne.s32.totalorder %s78, %s79
      %p90 = scmp.eq.s32.totalorder %s32, 0
      %p91 = por %p89, %p90
      %p92 = scmp.ne.s32.totalorder %s78, %s79
      %p93 = scmp.eq.s32.totalorder %s33, 1
      %p94 = por %p92, %p93
      %p96 = scmp.ne.s32.totalorder %s79, %s95
      %p97 = scmp.eq.s32.totalorder %s33, 0
      %p98 = por %p96, %p97
      %s99 = ssub.s32 %s34, %s46
      %p100 = scmp.eq.s32.totalorder %s99, 0
      %s102 = sadd.s32 %s101, 1
      %s103 = scalar_select %p100, %s101, %s102
      %p106 = pneg %p100
      %p107 = scmp.eq.s32.totalorder %s27, 1
      %p108 = por %p106, %p107
      %p109 = scmp.ne.s32.totalorder %s101, %s104
      %p110 = scmp.eq.s32.totalorder %s27, 0
      %p111 = por %p109, %p110
      %p112 = scmp.ne.s32.totalorder %s101, %s104
      %p113 = scmp.eq.s32.totalorder %s32, 1
      %p114 = por %p112, %p113
      %p115 = scmp.ne.s32.totalorder %s104, %s105
      %p116 = scmp.eq.s32.totalorder %s32, 0
      %p117 = por %p115, %p116
      %p118 = scmp.ne.s32.totalorder %s104, %s105
      %p119 = scmp.eq.s32.totalorder %s33, 1
      %p120 = por %p118, %p119
      %p122 = scmp.ne.s32.totalorder %s105, %s121
      %p123 = scmp.eq.s32.totalorder %s33, 0
      %p124 = por %p122, %p123
      %s126 = sadd.s32 %s125, 1
      %p129 = scmp.eq.s32.totalorder %s27, 1
      %p130 = scmp.ne.s32.totalorder %s125, %s127
      %p131 = scmp.eq.s32.totalorder %s27, 0
      %p132 = por %p130, %p131
      %p133 = scmp.ne.s32.totalorder %s125, %s127
      %p134 = scmp.eq.s32.totalorder %s32, 1
      %p135 = por %p133, %p134
      %p136 = scmp.ne.s32.totalorder %s127, %s128
      %p137 = scmp.eq.s32.totalorder %s32, 0
      %p138 = por %p136, %p137
      %p139 = scmp.ne.s32.totalorder %s127, %s128
      %p140 = scmp.eq.s32.totalorder %s33, 1
      %p141 = por %p139, %p140
      %p143 = scmp.ne.s32.totalorder %s128, %s142
      %p144 = scmp.eq.s32.totalorder %s33, 0
      %p145 = por %p143, %p144
      %s147 = sadd.s32 %s146, 1
      %p150 = scmp.eq.s32.totalorder %s27, 1
      %p151 = scmp.ne.s32.totalorder %s146, %s148
      %p152 = scmp.eq.s32.totalorder %s27, 0
      %p153 = por %p151, %p152
      %p154 = scmp.ne.s32.totalorder %s146, %s148
      %p155 = scmp.eq.s32.totalorder %s32, 1
      %p156 = por %p154, %p155
      %p157 = scmp.ne.s32.totalorder %s148, %s149
      %p158 = scmp.eq.s32.totalorder %s32, 0
      %p159 = por %p157, %p158
      %p160 = scmp.ne.s32.totalorder %s148, %s149
      %p161 = scmp.eq.s32.totalorder %s33, 1
      %p162 = por %p160, %p161
      %p164 = scmp.ne.s32.totalorder %s149, %s163
      %p165 = scmp.eq.s32.totalorder %s33, 0
      %p166 = por %p164, %p165
      %s168 = sadd.s32 %s167, 1
      %p171 = scmp.eq.s32.totalorder %s27, 1
      %p172 = scmp.ne.s32.totalorder %s167, %s169
      %p173 = scmp.eq.s32.totalorder %s27, 0
      %p174 = por %p172, %p173
      %p175 = scmp.ne.s32.totalorder %s167, %s169
      %p176 = scmp.eq.s32.totalorder %s32, 1
      %p177 = por %p175, %p176
      %p178 = scmp.ne.s32.totalorder %s169, %s170
      %p179 = scmp.eq.s32.totalorder %s32, 0
      %p180 = por %p178, %p179
      %p181 = scmp.ne.s32.totalorder %s169, %s170
      %p182 = scmp.eq.s32.totalorder %s33, 1
      %p183 = por %p181, %p182
      %p185 = scmp.ne.s32.totalorder %s170, %s184
      %p186 = scmp.eq.s32.totalorder %s33, 0
      %p187 = por %p185, %p186
      %s189 = sadd.s32 %s188, 1
      %p192 = scmp.eq.s32.totalorder %s27, 1
      %p193 = scmp.ne.s32.totalorder %s188, %s190
      %p194 = scmp.eq.s32.totalorder %s27, 0
      %p195 = por %p193, %p194
      %p196 = scmp.ne.s32.totalorder %s188, %s190
      %p197 = scmp.eq.s32.totalorder %s32, 1
      %p198 = por %p196, %p197
      %p199 = scmp.ne.s32.totalorder %s190, %s191
      %p200 = scmp.eq.s32.totalorder %s32, 0
      %p201 = por %p199, %p200
      %p202 = scmp.ne.s32.totalorder %s190, %s191
      %p203 = scmp.eq.s32.totalorder %s33, 1
      %p204 = por %p202, %p203
      %p206 = scmp.ne.s32.totalorder %s191, %s205
      %p207 = scmp.eq.s32.totalorder %s33, 0
      %p208 = por %p206, %p207
      %s210 = sadd.s32 %s209, 1
      %p213 = scmp.eq.s32.totalorder %s27, 1
      %p214 = scmp.ne.s32.totalorder %s209, %s211
      %p215 = scmp.eq.s32.totalorder %s27, 0
      %p216 = por %p214, %p215
      %p217 = scmp.ne.s32.totalorder %s209, %s211
      %p218 = scmp.eq.s32.totalorder %s32, 1
      %p219 = por %p217, %p218
      %p220 = scmp.ne.s32.totalorder %s211, %s212
      %p221 = scmp.eq.s32.totalorder %s32, 0
      %p222 = por %p220, %p221
      %p223 = scmp.ne.s32.totalorder %s211, %s212
      %p224 = scmp.eq.s32.totalorder %s33, 1
      %p225 = por %p223, %p224
      %p227 = scmp.ne.s32.totalorder %s212, %s226
      %p228 = scmp.eq.s32.totalorder %s33, 0
      %p229 = por %p227, %p228
      %s231 = sadd.s32 %s230, 1
      %p234 = scmp.eq.s32.totalorder %s27, 1
      %p235 = scmp.ne.s32.totalorder %s230, %s232
      %p236 = scmp.eq.s32.totalorder %s27, 0
      %p237 = por %p235, %p236
      %p238 = scmp.ne.s32.totalorder %s230, %s232
      %p239 = scmp.eq.s32.totalorder %s32, 1
      %p240 = por %p238, %p239
      %p241 = scmp.ne.s32.totalorder %s232, %s233
      %p242 = scmp.eq.s32.totalorder %s32, 0
      %p243 = por %p241, %p242
      %p244 = scmp.ne.s32.totalorder %s232, %s233
      %p245 = scmp.eq.s32.totalorder %s33, 1
      %p246 = por %p244, %p245
      %p248 = scmp.ne.s32.totalorder %s233, %s247
      %p249 = scmp.eq.s32.totalorder %s33, 0
      %p250 = por %p248, %p249
      %s251 = ssub.s32 %s34, %s46
      %s252 = ssub.s32 %s35, %s42
      %s253 = sor.u32 %s251, %s252
      %p254 = scmp.eq.s32.totalorder %s253, 0
      %s256 = sadd.s32 %s255, 1
      %s257 = scalar_select %p254, %s255, %s256
      %p260 = pneg %p254
      %p261 = scmp.eq.s32.totalorder %s27, 1
      %p262 = por %p260, %p261
      %p263 = scmp.ne.s32.totalorder %s255, %s258
      %p264 = scmp.eq.s32.totalorder %s27, 0
      %p265 = por %p263, %p264
      %p266 = scmp.ne.s32.totalorder %s255, %s258
      %p267 = scmp.eq.s32.totalorder %s32, 1
      %p268 = por %p266, %p267
      %p269 = scmp.ne.s32.totalorder %s258, %s259
      %p270 = scmp.eq.s32.totalorder %s32, 0
      %p271 = por %p269, %p270
      %p272 = scmp.ne.s32.totalorder %s258, %s259
      %p273 = scmp.eq.s32.totalorder %s33, 1
      %p274 = por %p272, %p273
      %p276 = scmp.ne.s32.totalorder %s259, %s275
      %p277 = scmp.eq.s32.totalorder %s33, 0
      %p278 = por %p276, %p277
      %p279 = scmp.le.s32.totalorder 1, %s27
      %p280 = scmp.lt.s32.totalorder %s27, 3
      %p281 = pnand %p279, %p280
      %p282 = pneg %p281
      // Predicated region
      $region9: #{tpu_custom_call.1} parent=5 // pred_check
        _
      $region10: #{tpu_custom_call.1} parent=5 // pred_check_branch
        %284 = sbr.rel (%p281) target = $region12
      $region11: #{tpu_custom_call.1} parent=5 // pred_region
        %s285 = ssub.s32 %s27, 1
        // Predicated region
        $region13: #{tpu_custom_call.1} parent=11 // pred_check
          %p286 = pneg %p138
        $region14: #{tpu_custom_call.1} parent=11 // pred_check_branch
          %288 = sbr.rel (%p286) target = $region16
        $region15: #{tpu_custom_call.1} parent=11 // pred_region
          %s290 = ssub.s32 512, 512
          %291 = vsyncadd [#allocation13], %s290
          %s292 = sshll.u32 [#allocation12], 4
          %s293 = int_to_ptr.vmem [resolvable:$true] %s292
          %298 = dma.hbm_to_vmem [thread:$0]  %s3, 512, %s293, [#allocation13], 128, 128, 8
        $region16: #{tpu_custom_call.1} parent=11 // pred_fallthru
          _
        // Predicated region
        $region17: #{tpu_custom_call.1} parent=11 // pred_check
          %p299 = pneg %p159
        $region18: #{tpu_custom_call.1} parent=11 // pred_check_branch
          %301 = sbr.rel (%p299) target = $region20
        $region19: #{tpu_custom_call.1} parent=11 // pred_region
          %s303 = ssub.s32 16, 16
          %304 = vsyncadd [#allocation13], %s303
          %s306 = sshll.u32 [#allocation14], 4
          %s307 = int_to_ptr.vmem [resolvable:$true] %s306
          %309 = dma.hbm_to_vmem [thread:$0]  %s4, 16, %s307, [#allocation13]
        $region20: #{tpu_custom_call.1} parent=11 // pred_fallthru
          _
        // Predicated region
        $region21: #{tpu_custom_call.1} parent=11 // pred_check
          %p310 = pneg %p180
        $region22: #{tpu_custom_call.1} parent=11 // pred_check_branch
          %312 = sbr.rel (%p310) target = $region24
        $region23: #{tpu_custom_call.1} parent=11 // pred_region
          %s314 = ssub.s32 512, 512
          %315 = vsyncadd [#allocation16], %s314
          %s316 = sshll.u32 [#allocation15], 4
          %s317 = int_to_ptr.vmem [resolvable:$true] %s316
          %322 = dma.hbm_to_vmem [thread:$0]  %s5, 512, %s317, [#allocation16], 128, 128, 8
        $region24: #{tpu_custom_call.1} parent=11 // pred_fallthru
          _
        // Predicated region
        $region25: #{tpu_custom_call.1} parent=11 // pred_check
          %p323 = pneg %p201
        $region26: #{tpu_custom_call.1} parent=11 // pred_check_branch
          %325 = sbr.rel (%p323) target = $region28
        $region27: #{tpu_custom_call.1} parent=11 // pred_region
          %s327 = ssub.s32 64, 64
          %328 = vsyncadd [#allocation16], %s327
          %s330 = sshll.u32 [#allocation17], 4
          %s331 = int_to_ptr.vmem [resolvable:$true] %s330
          %333 = dma.hbm_to_vmem [thread:$0]  %s6, 64, %s331, [#allocation16]
        $region28: #{tpu_custom_call.1} parent=11 // pred_fallthru
          _
        // Predicated region
        $region29: #{tpu_custom_call.1} parent=11 // pred_check
          %p334 = pneg %p222
        $region30: #{tpu_custom_call.1} parent=11 // pred_check_branch
          %336 = sbr.rel (%p334) target = $region32
        $region31: #{tpu_custom_call.1} parent=11 // pred_region
          %s338 = ssub.s32 2048, 2048
          %339 = vsyncadd [#allocation19], %s338
          %s340 = sshll.u32 [#allocation18], 4
          %s341 = int_to_ptr.vmem [resolvable:$true] %s340
          %346 = dma.hbm_to_vmem [thread:$0]  %s7, 2048, %s341, [#allocation19], 128, 128, 8
        $region32: #{tpu_custom_call.1} parent=11 // pred_fallthru
          _
        // Predicated region
        $region33: #{tpu_custom_call.1} parent=11 // pred_check
          %p347 = pneg %p243
        $region34: #{tpu_custom_call.1} parent=11 // pred_check_branch
          %349 = sbr.rel (%p347) target = $region36
        $region35: #{tpu_custom_call.1} parent=11 // pred_region
          %s351 = ssub.s32 2048, 2048
          %352 = vsyncadd [#allocation19], %s351
          %s353 = sshll.u32 [#allocation20], 4
          %s354 = int_to_ptr.vmem [resolvable:$true] %s353
          %359 = dma.hbm_to_vmem [thread:$0]  %s8, 2048, %s354, [#allocation19], 128, 128, 8
        $region36: #{tpu_custom_call.1} parent=11 // pred_fallthru
          _
      $region12: #{tpu_custom_call.1} parent=5 // pred_fallthru
        _
      %p360 = scmp.lt.s32.totalorder %s27, 2
      // Predicated region
      $region37: #{tpu_custom_call.1} parent=5 // pred_check
        %p361 = pneg %p360
      $region38: #{tpu_custom_call.1} parent=5 // pred_check_branch
        %363 = sbr.rel (%p361) target = $region40
      $region39: #{tpu_custom_call.1} parent=5 // pred_region
        // Predicated region
        $region41: #{tpu_custom_call.1} parent=39 // pred_check
          %p364 = pneg %p59
        $region42: #{tpu_custom_call.1} parent=39 // pred_check_branch
          %366 = sbr.rel (%p364) target = $region44
        $region43: #{tpu_custom_call.1} parent=39 // pred_region
          %s367 = sand.u32 %s49, 1
          %s368 = scalar_lea.sflag [#allocation7], %s367
          %s369 = sand.u32 %s49, 1
          %s370 = smul.addr %s369, 128
          %s371 = scalar_lea.vmem [#allocation6], %s370
          %s373 = ssub.s32 2048, 2048
          %374 = vsyncadd %s368, %s373
          %s375 = smul.addr %s34, 16
          %s376 = smul.addr %s375, 128
          %s377 = scalar_lea.hbm %s0, %s376
          %s378 = sshll.u32 %s371, 4
          %s379 = int_to_ptr.vmem [resolvable:$true] %s378
          %384 = dma.hbm_to_vmem [thread:$0]  %s377, 2048, %s379, %s368, 128, 128, 8
        $region44: #{tpu_custom_call.1} parent=39 // pred_fallthru
          _
        // Predicated region
        $region45: #{tpu_custom_call.1} parent=39 // pred_check
          %p385 = pneg %p85
        $region46: #{tpu_custom_call.1} parent=39 // pred_check_branch
          %387 = sbr.rel (%p385) target = $region48
        $region47: #{tpu_custom_call.1} parent=39 // pred_region
          %s388 = sand.u32 %s27, 1
          %s389 = scalar_lea.sflag [#allocation10], %s388
          %s390 = sand.u32 %s75, 1
          %s391 = smul.addr %s390, 128
          %s392 = scalar_lea.vmem [#allocation9], %s391
          %s394 = ssub.s32 2048, 2048
          %395 = vsyncadd %s389, %s394
          %s396 = smul.addr %s34, 16
          %s397 = smul.addr %s396, 128
          %s398 = scalar_lea.hbm %s1, %s397
          %s399 = sshll.u32 %s392, 4
          %s400 = int_to_ptr.vmem [resolvable:$true] %s399
          %405 = dma.hbm_to_vmem [thread:$0]  %s398, 2048, %s400, %s389, 128, 128, 8
        $region48: #{tpu_custom_call.1} parent=39 // pred_fallthru
          _
        // Predicated region
        $region49: #{tpu_custom_call.1} parent=39 // pred_check
          %p406 = pneg %p111
        $region50: #{tpu_custom_call.1} parent=39 // pred_check_branch
          %408 = sbr.rel (%p406) target = $region52
        $region51: #{tpu_custom_call.1} parent=39 // pred_region
          %s409 = sand.u32 %s27, 1
          %s410 = scalar_lea.sflag [#allocation10], %s409
          %s411 = sand.u32 %s101, 1
          %s412 = scalar_lea.vmem [#allocation11], %s411
          %s414 = ssub.s32 16, 16
          %415 = vsyncadd %s410, %s414
          %s416 = smul.addr %s34, 16
          %s417 = scalar_lea.hbm %s2, %s416
          %s419 = sshll.u32 %s412, 4
          %s420 = int_to_ptr.vmem [resolvable:$true] %s419
          %422 = dma.hbm_to_vmem [thread:$0]  %s417, 16, %s420, %s410
        $region52: #{tpu_custom_call.1} parent=39 // pred_fallthru
          _
      $region40: #{tpu_custom_call.1} parent=5 // pred_fallthru
        _
      %p423 = scmp.le.s32.totalorder 1, %s27
      %p424 = scmp.lt.s32.totalorder %s27, 3
      %p425 = pnand %p423, %p424
      %p426 = pneg %p425
      // Predicated region
      $region53: #{tpu_custom_call.1} parent=5 // pred_check
        _
      $region54: #{tpu_custom_call.1} parent=5 // pred_check_branch
        %428 = sbr.rel (%p425) target = $region56
      $region55: #{tpu_custom_call.1} parent=5 // pred_region
        %s429 = ssub.s32 %s27, 1
        %s430 = sand.u32 %s52, 1
        %s431 = scalar_lea.sflag [#allocation7], %s430
        %s432 = sand.u32 %s52, 1
        %s433 = smul.addr %s432, 128
        %s434 = scalar_lea.vmem [#allocation6], %s433
        // Predicated region
        $region57: #{tpu_custom_call.1} parent=55 // pred_check
          %p435 = pneg %p65
        $region58: #{tpu_custom_call.1} parent=55 // pred_check_branch
          %437 = sbr.rel (%p435) target = $region60
        $region59: #{tpu_custom_call.1} parent=55 // pred_region
          %438 = dma.done %s431, 2048
        $region60: #{tpu_custom_call.1} parent=55 // pred_fallthru
          _
        %s439 = sand.u32 %s32, 1
        %s440 = scalar_lea.sflag [#allocation10], %s439
        %s441 = sand.u32 %s78, 1
        %s442 = smul.addr %s441, 128
        %s443 = scalar_lea.vmem [#allocation9], %s442
        // Predicated region
        $region61: #{tpu_custom_call.1} parent=55 // pred_check
          %p444 = pneg %p91
        $region62: #{tpu_custom_call.1} parent=55 // pred_check_branch
          %446 = sbr.rel (%p444) target = $region64
        $region63: #{tpu_custom_call.1} parent=55 // pred_region
          %447 = dma.done %s440, 2048
        $region64: #{tpu_custom_call.1} parent=55 // pred_fallthru
          _
        %s448 = sand.u32 %s32, 1
        %s449 = scalar_lea.sflag [#allocation10], %s448
        %s450 = sand.u32 %s104, 1
        %s451 = scalar_lea.vmem [#allocation11], %s450
        // Predicated region
        $region65: #{tpu_custom_call.1} parent=55 // pred_check
          %p452 = pneg %p117
        $region66: #{tpu_custom_call.1} parent=55 // pred_check_branch
          %454 = sbr.rel (%p452) target = $region68
        $region67: #{tpu_custom_call.1} parent=55 // pred_region
          %455 = dma.done %s449, 16
        $region68: #{tpu_custom_call.1} parent=55 // pred_fallthru
          _
        // Predicated region
        $region69: #{tpu_custom_call.1} parent=55 // pred_check
          %p456 = pneg %p138
        $region70: #{tpu_custom_call.1} parent=55 // pred_check_branch
          %458 = sbr.rel (%p456) target = $region72
        $region71: #{tpu_custom_call.1} parent=55 // pred_region
          %459 = dma.done [#allocation13], 512
        $region72: #{tpu_custom_call.1} parent=55 // pred_fallthru
          _
        // Predicated region
        $region73: #{tpu_custom_call.1} parent=55 // pred_check
          %p460 = pneg %p159
        $region74: #{tpu_custom_call.1} parent=55 // pred_check_branch
          %462 = sbr.rel (%p460) target = $region76
        $region75: #{tpu_custom_call.1} parent=55 // pred_region
          %463 = dma.done [#allocation13], 16
        $region76: #{tpu_custom_call.1} parent=55 // pred_fallthru
          _
        // Predicated region
        $region77: #{tpu_custom_call.1} parent=55 // pred_check
          %p464 = pneg %p180
        $region78: #{tpu_custom_call.1} parent=55 // pred_check_branch
          %466 = sbr.rel (%p464) target = $region80
        $region79: #{tpu_custom_call.1} parent=55 // pred_region
          %467 = dma.done [#allocation16], 512
        $region80: #{tpu_custom_call.1} parent=55 // pred_fallthru
          _
        // Predicated region
        $region81: #{tpu_custom_call.1} parent=55 // pred_check
          %p468 = pneg %p201
        $region82: #{tpu_custom_call.1} parent=55 // pred_check_branch
          %470 = sbr.rel (%p468) target = $region84
        $region83: #{tpu_custom_call.1} parent=55 // pred_region
          %471 = dma.done [#allocation16], 64
        $region84: #{tpu_custom_call.1} parent=55 // pred_fallthru
          _
        // Predicated region
        $region85: #{tpu_custom_call.1} parent=55 // pred_check
          %p472 = pneg %p222
        $region86: #{tpu_custom_call.1} parent=55 // pred_check_branch
          %474 = sbr.rel (%p472) target = $region88
        $region87: #{tpu_custom_call.1} parent=55 // pred_region
          %475 = dma.done [#allocation19], 2048
        $region88: #{tpu_custom_call.1} parent=55 // pred_fallthru
          _
        // Predicated region
        $region89: #{tpu_custom_call.1} parent=55 // pred_check
          %p476 = pneg %p243
        $region90: #{tpu_custom_call.1} parent=55 // pred_check_branch
          %478 = sbr.rel (%p476) target = $region92
        $region91: #{tpu_custom_call.1} parent=55 // pred_region
          %479 = dma.done [#allocation19], 2048
        $region92: #{tpu_custom_call.1} parent=55 // pred_fallthru
          _
        %s480 = sand.u32 %s52, 1
        %s481 = scalar_lea.sflag [#allocation7], %s480
        %s482 = sand.u32 %s52, 1
        %s483 = smul.addr %s482, 128
        %s484 = scalar_lea.vmem [#allocation6], %s483
        %p485 = pneg %p65
        %p486 = pneg %p62
        %s487 = sand.u32 %s32, 1
        %s488 = scalar_lea.sflag [#allocation10], %s487
        %s489 = sand.u32 %s78, 1
        %s490 = smul.addr %s489, 128
        %s491 = scalar_lea.vmem [#allocation9], %s490
        %p492 = pneg %p91
        %p493 = pneg %p88
        %s494 = sand.u32 %s32, 1
        %s495 = scalar_lea.sflag [#allocation10], %s494
        %s496 = sand.u32 %s104, 1
        %s497 = scalar_lea.vmem [#allocation11], %s496
        %p498 = pneg %p117
        %p499 = pneg %p114
        %p500 = pneg %p138
        %p501 = pneg %p135
        %p502 = pneg %p159
        %p503 = pneg %p156
        %p504 = pneg %p180
        %p505 = pneg %p177
        %p506 = pneg %p201
        %p507 = pneg %p198
        %p508 = pneg %p222
        %p509 = pneg %p219
        %p510 = pneg %p243
        %p511 = pneg %p240
        %p512 = pneg %p271
        %p513 = pneg %p268
        %s514 = sand.u32 %s258, 1
        %s515 = scalar_lea.sflag [#allocation8], %s514
        %s516 = sand.u32 %s258, 1
        %s517 = smul.addr %s516, 512
        %s518 = scalar_lea.vmem [#allocation21], %s517
        %s519 = smul.u32 4, %s37
        %p520 = scmp.eq.s32.totalorder %s37, 0
        // Predicated region
        $region93: #{tpu_custom_call.1} parent=55 // pred_check
          %p521 = pneg %p520
        $region94: #{tpu_custom_call.1} parent=55 // pred_check_branch
          %523 = sbr.rel (%p521) target = $region96
        $region95: #{tpu_custom_call.1} parent=55 // pred_region
          %v524 = vld [vmem:[%s434] sm:$0xff]
          %v525 = vld [vmem:[%s434 + $0x8] sm:$0xff]
          %v526 = vld [vmem:[%s434 + $0x10] sm:$0xff]
          %v527 = vld [vmem:[%s434 + $0x18] sm:$0xff]
          %v528 = vld [vmem:[%s434 + $0x20] sm:$0xff]
          %v529 = vld [vmem:[%s434 + $0x28] sm:$0xff]
          %v530 = vld [vmem:[%s434 + $0x30] sm:$0xff]
          %v531 = vld [vmem:[%s434 + $0x38] sm:$0xff]
          %v532 = vld [vmem:[%s434 + $0x40] sm:$0xff]
          %v533 = vld [vmem:[%s434 + $0x48] sm:$0xff]
          %v534 = vld [vmem:[%s434 + $0x50] sm:$0xff]
          %v535 = vld [vmem:[%s434 + $0x58] sm:$0xff]
          %v536 = vld [vmem:[%s434 + $0x60] sm:$0xff]
          %v537 = vld [vmem:[%s434 + $0x68] sm:$0xff]
          %v538 = vld [vmem:[%s434 + $0x70] sm:$0xff]
          %v539 = vld [vmem:[%s434 + $0x78] sm:$0xff]
          %v540 = vld [vmem:[#allocation12] sm:$0xff]
          %v541 = vld [vmem:[#allocation12 + $0x8] sm:$0xff]
          %v542 = vld [vmem:[#allocation12 + $0x10] sm:$0xff]
          %v543 = vld [vmem:[#allocation12 + $0x18] sm:$0xff]
          %v544 = vld [vmem:[#allocation14] sm:$0x1]
          %v546 = vlaneseq
          %v547 = vshrl.u32 %v546, 7
          %v548 = vsub.s32 0, %v547
          %v549 = vrot.slane %v544, %v548
          %vm551 = vcmask 261120
          %v553 = vsel %vm551, %v524, 0
          %v556 = vsel %vm551, %v525, 0
          %v559 = vsel %vm551, %v526, 0
          %v562 = vsel %vm551, %v527, 0
          %v565 = vsel %vm551, %v528, 0
          %v568 = vsel %vm551, %v529, 0
          %v571 = vsel %vm551, %v530, 0
          %v574 = vsel %vm551, %v531, 0
          %v577 = vsel %vm551, %v532, 0
          %v580 = vsel %vm551, %v533, 0
          %v583 = vsel %vm551, %v534, 0
          %v586 = vsel %vm551, %v535, 0
          %v589 = vsel %vm551, %v536, 0
          %v592 = vsel %vm551, %v537, 0
          %v595 = vsel %vm551, %v538, 0
          %v598 = vsel %vm551, %v539, 0
          %600 = vmatprep.subr.mxu0 0.0
          %601 = vmatpush1.msra.mxu0 %v540
          %602 = vmatprep.subr.mxu0 0.0
          %603 = vmatpush1.msra.mxu0 %v541
          %604 = vmatprep.subr.mxu0 0.0
          %605 = vmatpush1.msra.mxu0 %v542
          %606 = vmatprep.subr.mxu0 0.0
          %607 = vmatpush1.msra.mxu0 %v543
          %608 = vmatprep.subr.mxu0 0.0
          %609 = vmatpush1.msra.mxu0 0.0
          %610 = vmatprep.subr.mxu0 0.0
          %611 = vmatpush1.msra.mxu0 0.0
          %612 = vmatprep.subr.mxu0 0.0
          %613 = vmatpush1.msra.mxu0 0.0
          %614 = vmatprep.subr.mxu0 0.0
          %615 = vmatpush1.msra.mxu0 0.0
          %616 = vmatprep.subr.mxu0 0.0
          %617 = vmatpush1.msra.mxu0 0.0
          %618 = vmatprep.subr.mxu0 0.0
          %619 = vmatpush1.msra.mxu0 0.0
          %620 = vmatprep.subr.mxu0 0.0
          %621 = vmatpush1.msra.mxu0 0.0
          %622 = vmatprep.subr.mxu0 0.0
          %623 = vmatpush1.msra.mxu0 0.0
          %624 = vmatprep.subr.mxu0 0.0
          %625 = vmatpush1.msra.mxu0 0.0
          %626 = vmatprep.subr.mxu0 0.0
          %627 = vmatpush1.msra.mxu0 0.0
          %628 = vmatprep.subr.mxu0 0.0
          %629 = vmatpush1.msra.mxu0 0.0
          %630 = vmatprep.subr.mxu0 0.0
          %631 = vmatpush1.msra.mxu0 0.0
          %632 = vmatprep.subr.mxu0 0.0
          %633 = vmatpush1.msra.mxu0 0.0
          %634 = vmatprep.subr.mxu0 0.0
          %635 = vmatpush1.msra.mxu0 0.0
          %636 = vmatprep.subr.mxu0 0.0
          %637 = vmatpush1.msra.mxu0 0.0
          %638 = vmatprep.subr.mxu0 0.0
          %639 = vmatpush1.msra.mxu0 0.0
          %640 = vmatprep.subr.mxu0 0.0
          %641 = vmatpush1.msra.mxu0 0.0
          %642 = vmatprep.subr.mxu0 0.0
          %643 = vmatpush1.msra.mxu0 0.0
          %644 = vmatprep.subr.mxu0 0.0
          %645 = vmatpush1.msra.mxu0 0.0
          %646 = vmatprep.subr.mxu0 0.0
          %647 = vmatpush1.msra.mxu0 0.0
          %648 = vmatprep.subr.mxu0 0.0
          %649 = vmatpush1.msra.mxu0 0.0
          %650 = vmatprep.subr.mxu0 0.0
          %651 = vmatpush1.msra.mxu0 0.0
          %652 = vmatprep.subr.mxu0 0.0
          %653 = vmatpush1.msra.mxu0 0.0
          %654 = vmatprep.subr.mxu0 0.0
          %655 = vmatpush1.msra.mxu0 0.0
          %656 = vmatprep.subr.mxu0 0.0
          %657 = vmatpush1.msra.mxu0 0.0
          %658 = vmatprep.subr.mxu0 0.0
          %659 = vmatpush1.msra.mxu0 0.0
          %660 = vmatprep.subr.mxu0 0.0
          %661 = vmatpush1.msra.mxu0 0.0
          %662 = vmatprep.subr.mxu0 0.0
          %663 = vmatpush1.msra.mxu0 0.0
          %664 = vmatprep.mubr.f32.mxu0 0.0
          %665 = vmatmul.mubr.f32.gmra.mrb[0].mxu0 %v553
          %v666 = vpop.f32.mrb[0].mxu0
          %v667 = vadd.f32 %v549, %v666
          %v668 = vpop.f32.mrb[0].mxu0
          %669 = vmatprep.mubr.f32.mxu0 0.0
          %670 = vmatmul.mubr.f32.gmra.mrb[0].mxu0 %v556
          %v671 = vpop.f32.mrb[0].mxu0
          %v672 = vadd.f32 %v549, %v671
          %v673 = vpop.f32.mrb[0].mxu0
          %674 = vmatprep.mubr.f32.mxu0 0.0
          %675 = vmatmul.mubr.f32.gmra.mrb[0].mxu0 %v559
          %v676 = vpop.f32.mrb[0].mxu0
          %v677 = vadd.f32 %v549, %v676
          %v678 = vpop.f32.mrb[0].mxu0
          %679 = vmatprep.mubr.f32.mxu0 0.0
          %680 = vmatmul.mubr.f32.gmra.mrb[0].mxu0 %v562
          %v681 = vpop.f32.mrb[0].mxu0
          %v682 = vadd.f32 %v549, %v681
          %v683 = vpop.f32.mrb[0].mxu0
          %684 = vmatprep.mubr.f32.mxu0 0.0
          %685 = vmatmul.mubr.f32.gmra.mrb[0].mxu0 %v565
          %v686 = vpop.f32.mrb[0].mxu0
          %v687 = vadd.f32 %v549, %v686
          %v688 = vpop.f32.mrb[0].mxu0
          %689 = vmatprep.mubr.f32.mxu0 0.0
          %690 = vmatmul.mubr.f32.gmra.mrb[0].mxu0 %v568
          %v691 = vpop.f32.mrb[0].mxu0
          %v692 = vadd.f32 %v549, %v691
          %v693 = vpop.f32.mrb[0].mxu0
          %694 = vmatprep.mubr.f32.mxu0 0.0
          %695 = vmatmul.mubr.f32.gmra.mrb[0].mxu0 %v571
          %v696 = vpop.f32.mrb[0].mxu0
          %v697 = vadd.f32 %v549, %v696
          %v698 = vpop.f32.mrb[0].mxu0
          %699 = vmatprep.mubr.f32.mxu0 0.0
          %700 = vmatmul.mubr.f32.gmra.mrb[0].mxu0 %v574
          %v701 = vpop.f32.mrb[0].mxu0
          %v702 = vadd.f32 %v549, %v701
          %v703 = vpop.f32.mrb[0].mxu0
          %704 = vmatprep.mubr.f32.mxu0 0.0
          %705 = vmatmul.mubr.f32.gmra.mrb[0].mxu0 %v577
          %v706 = vpop.f32.mrb[0].mxu0
          %v707 = vadd.f32 %v549, %v706
          %v708 = vpop.f32.mrb[0].mxu0
          %709 = vmatprep.mubr.f32.mxu0 0.0
          %710 = vmatmul.mubr.f32.gmra.mrb[0].mxu0 %v580
          %v711 = vpop.f32.mrb[0].mxu0
          %v712 = vadd.f32 %v549, %v711
          %v713 = vpop.f32.mrb[0].mxu0
          %714 = vmatprep.mubr.f32.mxu0 0.0
          %715 = vmatmul.mubr.f32.gmra.mrb[0].mxu0 %v583
          %v716 = vpop.f32.mrb[0].mxu0
          %v717 = vadd.f32 %v549, %v716
          %v718 = vpop.f32.mrb[0].mxu0
          %719 = vmatprep.mubr.f32.mxu0 0.0
          %720 = vmatmul.mubr.f32.gmra.mrb[0].mxu0 %v586
          %v721 = vpop.f32.mrb[0].mxu0
          %v722 = vadd.f32 %v549, %v721
          %v723 = vpop.f32.mrb[0].mxu0
          %724 = vmatprep.mubr.f32.mxu0 0.0
          %725 = vmatmul.mubr.f32.gmra.mrb[0].mxu0 %v589
          %v726 = vpop.f32.mrb[0].mxu0
          %v727 = vadd.f32 %v549, %v726
          %v728 = vpop.f32.mrb[0].mxu0
          %729 = vmatprep.mubr.f32.mxu0 0.0
          %730 = vmatmul.mubr.f32.gmra.mrb[0].mxu0 %v592
          %v731 = vpop.f32.mrb[0].mxu0
          %v732 = vadd.f32 %v549, %v731
          %v733 = vpop.f32.mrb[0].mxu0
          %734 = vmatprep.mubr.f32.mxu0 0.0
          %735 = vmatmul.mubr.f32.gmra.mrb[0].mxu0 %v595
          %v736 = vpop.f32.mrb[0].mxu0
          %v737 = vadd.f32 %v549, %v736
          %v738 = vpop.f32.mrb[0].mxu0
          %739 = vmatprep.mubr.f32.mxu0 0.0
          %740 = vmatmul.mubr.f32.gmra.mrb[0].mxu0 %v598
          %v741 = vpop.f32.mrb[0].mxu0
          %v742 = vadd.f32 %v549, %v741
          %v743 = vpop.f32.mrb[0].mxu0
          %744 = vdwg.mxu0
          %761 = vrot.lane.b32.xlu0 %v667, 96
          %v762 = vpop.permute.xlu0 %761
          %763 = vrot.lane.b32.xlu0 %v672, 96
          %v764 = vpop.permute.xlu0 %763
          %765 = vrot.lane.b32.xlu0 %v677, 96
          %v766 = vpop.permute.xlu0 %765
          %767 = vrot.lane.b32.xlu0 %v682, 96
          %v768 = vpop.permute.xlu0 %767
          %769 = vrot.lane.b32.xlu0 %v687, 96
          %v770 = vpop.permute.xlu0 %769
          %771 = vrot.lane.b32.xlu0 %v692, 96
          %v772 = vpop.permute.xlu0 %771
          %773 = vrot.lane.b32.xlu0 %v697, 96
          %v774 = vpop.permute.xlu0 %773
          %775 = vrot.lane.b32.xlu0 %v702, 96
          %v776 = vpop.permute.xlu0 %775
          %777 = vrot.lane.b32.xlu0 %v707, 96
          %v778 = vpop.permute.xlu0 %777
          %779 = vrot.lane.b32.xlu0 %v712, 96
          %v780 = vpop.permute.xlu0 %779
          %781 = vrot.lane.b32.xlu0 %v717, 96
          %v782 = vpop.permute.xlu0 %781
          %783 = vrot.lane.b32.xlu0 %v722, 96
          %v784 = vpop.permute.xlu0 %783
          %785 = vrot.lane.b32.xlu0 %v727, 96
          %v786 = vpop.permute.xlu0 %785
          %787 = vrot.lane.b32.xlu0 %v732, 96
          %v788 = vpop.permute.xlu0 %787
          %789 = vrot.lane.b32.xlu0 %v737, 96
          %v790 = vpop.permute.xlu0 %789
          %791 = vrot.lane.b32.xlu0 %v742, 96
          %v792 = vpop.permute.xlu0 %791
          %vm809 = vcmask 31744
          %810 = vst.msk [vmem:[#allocation5] sm:$0xff] %vm809, %v762
          %811 = vst.msk [vmem:[#allocation5 + $0x8] sm:$0xff] %vm809, %v764
          %812 = vst.msk [vmem:[#allocation5 + $0x10] sm:$0xff] %vm809, %v766
          %813 = vst.msk [vmem:[#allocation5 + $0x18] sm:$0xff] %vm809, %v768
          %814 = vst.msk [vmem:[#allocation5 + $0x20] sm:$0xff] %vm809, %v770
          %815 = vst.msk [vmem:[#allocation5 + $0x28] sm:$0xff] %vm809, %v772
          %816 = vst.msk [vmem:[#allocation5 + $0x30] sm:$0xff] %vm809, %v774
          %817 = vst.msk [vmem:[#allocation5 + $0x38] sm:$0xff] %vm809, %v776
          %818 = vst.msk [vmem:[#allocation5 + $0x40] sm:$0xff] %vm809, %v778
          %819 = vst.msk [vmem:[#allocation5 + $0x48] sm:$0xff] %vm809, %v780
          %820 = vst.msk [vmem:[#allocation5 + $0x50] sm:$0xff] %vm809, %v782
          %821 = vst.msk [vmem:[#allocation5 + $0x58] sm:$0xff] %vm809, %v784
          %822 = vst.msk [vmem:[#allocation5 + $0x60] sm:$0xff] %vm809, %v786
          %823 = vst.msk [vmem:[#allocation5 + $0x68] sm:$0xff] %vm809, %v788
          %824 = vst.msk [vmem:[#allocation5 + $0x70] sm:$0xff] %vm809, %v790
          %825 = vst.msk [vmem:[#allocation5 + $0x78] sm:$0xff] %vm809, %v792
          %v826 = vld [vmem:[#allocation15] sm:$0xff]
          %v827 = vld [vmem:[#allocation15 + $0x8] sm:$0xff]
          %v828 = vld [vmem:[#allocation15 + $0x10] sm:$0xff]
          %v829 = vld [vmem:[#allocation15 + $0x18] sm:$0xff]
          %v830 = vld [vmem:[#allocation17] sm:$0xf]
          %832 = vset.pattern.permute.xlu0 0
          %833 = vperm.xlu0 %832, %v830
          %v834 = vpop.permute.xlu0 %833
          %836 = vxpose.xlu0.b32.start [1/16] %v826, 128
          %837 = vxpose.xlu0.b32.cont [2/16] %v827, 128
          %838 = vxpose.xlu0.b32.cont [3/16] %v828, 128
          %839 = vxpose.xlu0.b32.cont [4/16] %v829, 128
          %840 = vxpose.xlu0.b32.cont [5/16] 0.0, 128
          %841 = vxpose.xlu0.b32.cont [6/16] 0.0, 128
          %842 = vxpose.xlu0.b32.cont [7/16] 0.0, 128
          %843 = vxpose.xlu0.b32.cont [8/16] 0.0, 128
          %844 = vxpose.xlu0.b32.cont [9/16] 0.0, 128
          %845 = vxpose.xlu0.b32.cont [10/16] 0.0, 128
          %846 = vxpose.xlu0.b32.cont [11/16] 0.0, 128
          %847 = vxpose.xlu0.b32.cont [12/16] 0.0, 128
          %848 = vxpose.xlu0.b32.cont [13/16] 0.0, 128
          %849 = vxpose.xlu0.b32.cont [14/16] 0.0, 128
          %850 = vxpose.xlu0.b32.cont [15/16] 0.0, 128
          %851 = vxpose.xlu0.b32.end [16/16] 0.0, 128
          %v852 = vpop.trf.xlu0
          %v853 = vpop.trf.xlu0
          %v854 = vpop.trf.xlu0
          %v855 = vpop.trf.xlu0
          %v856 = vpop.trf.xlu0
          %v857 = vpop.trf.xlu0
          %v858 = vpop.trf.xlu0
          %v859 = vpop.trf.xlu0
          %v860 = vpop.trf.xlu0
          %v861 = vpop.trf.xlu0
          %v862 = vpop.trf.xlu0
          %v863 = vpop.trf.xlu0
          %v864 = vpop.trf.xlu0
          %v865 = vpop.trf.xlu0
          %v866 = vpop.trf.xlu0
          %v867 = vpop.trf.xlu0
          %v869 = vsel %vm551, %v852, 0
          %871 = vmatprep.subr.mxu0 0.0
          %872 = vmatpush1.xpose.msra.mxu0 %v553
          %873 = vmatprep.subr.mxu0 0.0
          %874 = vmatpush1.xpose.msra.mxu0 %v556
          %875 = vmatprep.subr.mxu0 0.0
          %876 = vmatpush1.xpose.msra.mxu0 %v559
          %877 = vmatprep.subr.mxu0 0.0
          %878 = vmatpush1.xpose.msra.mxu0 %v562
          %879 = vmatprep.subr.mxu0 0.0
          %880 = vmatpush1.xpose.msra.mxu0 %v565
          %881 = vmatprep.subr.mxu0 0.0
          %882 = vmatpush1.xpose.msra.mxu0 %v568
          %883 = vmatprep.subr.mxu0 0.0
          %884 = vmatpush1.xpose.msra.mxu0 %v571
          %885 = vmatprep.subr.mxu0 0.0
          %886 = vmatpush1.xpose.msra.mxu0 %v574
          %887 = vmatprep.subr.mxu0 0.0
          %888 = vmatpush1.xpose.msra.mxu0 %v577
          %889 = vmatprep.subr.mxu0 0.0
          %890 = vmatpush1.xpose.msra.mxu0 %v580
          %891 = vmatprep.subr.mxu0 0.0
          %892 = vmatpush1.xpose.msra.mxu0 %v583
          %893 = vmatprep.subr.mxu0 0.0
          %894 = vmatpush1.xpose.msra.mxu0 %v586
          %895 = vmatprep.subr.mxu0 0.0
          %896 = vmatpush1.xpose.msra.mxu0 %v589
          %897 = vmatprep.subr.mxu0 0.0
          %898 = vmatpush1.xpose.msra.mxu0 %v592
          %899 = vmatprep.subr.mxu0 0.0
          %900 = vmatpush1.xpose.msra.mxu0 %v595
          %901 = vmatprep.subr.mxu0 0.0
          %902 = vmatpush1.xpose.msra.mxu0 %v598
          %903 = vmatprep.subr.mxu0 0.0
          %904 = vmatpush1.xpose.msra.mxu0 0.0
          %905 = vmatprep.subr.mxu0 0.0
          %906 = vmatpush1.xpose.msra.mxu0 0.0
          %907 = vmatprep.subr.mxu0 0.0
          %908 = vmatpush1.xpose.msra.mxu0 0.0
          %909 = vmatprep.subr.mxu0 0.0
          %910 = vmatpush1.xpose.msra.mxu0 0.0
          %911 = vmatprep.subr.mxu0 0.0
          %912 = vmatpush1.xpose.msra.mxu0 0.0
          %913 = vmatprep.subr.mxu0 0.0
          %914 = vmatpush1.xpose.msra.mxu0 0.0
          %915 = vmatprep.subr.mxu0 0.0
          %916 = vmatpush1.xpose.msra.mxu0 0.0
          %917 = vmatprep.subr.mxu0 0.0
          %918 = vmatpush1.xpose.msra.mxu0 0.0
          %919 = vmatprep.subr.mxu0 0.0
          %920 = vmatpush1.xpose.msra.mxu0 0.0
          %921 = vmatprep.subr.mxu0 0.0
          %922 = vmatpush1.xpose.msra.mxu0 0.0
          %923 = vmatprep.subr.mxu0 0.0
          %924 = vmatpush1.xpose.msra.mxu0 0.0
          %925 = vmatprep.subr.mxu0 0.0
          %926 = vmatpush1.xpose.msra.mxu0 0.0
          %927 = vmatprep.subr.mxu0 0.0
          %928 = vmatpush1.xpose.msra.mxu0 0.0
          %929 = vmatprep.subr.mxu0 0.0
          %930 = vmatpush1.xpose.msra.mxu0 0.0
          %931 = vmatprep.subr.mxu0 0.0
          %932 = vmatpush1.xpose.msra.mxu0 0.0
          %933 = vmatprep.subr.mxu0 0.0
          %934 = vmatpush1.xpose.msra.mxu0 0.0
          %935 = vmatprep.mubr.f32.mxu0 0.0
          %936 = vmatmul.mubr.f32.gmra.mrb[0].mxu0 %v869
          %v937 = vpop.f32.mrb[0].mxu0
          %v938 = vadd.f32 %v834, %v937
          %v939 = vpop.f32.mrb[0].mxu0
          %940 = vdwg.mxu0
          %941 = vst [vmem:[#allocation4] sm:$0xf] %v938
          %v942 = vld [vmem:[#allocation18] sm:$0xff]
          %v943 = vld [vmem:[#allocation18 + $0x8] sm:$0xff]
          %v944 = vld [vmem:[#allocation18 + $0x10] sm:$0xff]
          %v945 = vld [vmem:[#allocation18 + $0x18] sm:$0xff]
          %v946 = vld [vmem:[#allocation18 + $0x20] sm:$0xff]
          %v947 = vld [vmem:[#allocation18 + $0x28] sm:$0xff]
          %v948 = vld [vmem:[#allocation18 + $0x30] sm:$0xff]
          %v949 = vld [vmem:[#allocation18 + $0x38] sm:$0xff]
          %v950 = vld [vmem:[#allocation18 + $0x40] sm:$0xff]
          %v951 = vld [vmem:[#allocation18 + $0x48] sm:$0xff]
          %v952 = vld [vmem:[#allocation18 + $0x50] sm:$0xff]
          %v953 = vld [vmem:[#allocation18 + $0x58] sm:$0xff]
          %v954 = vld [vmem:[#allocation18 + $0x60] sm:$0xff]
          %v955 = vld [vmem:[#allocation18 + $0x68] sm:$0xff]
          %v956 = vld [vmem:[#allocation18 + $0x70] sm:$0xff]
          %v957 = vld [vmem:[#allocation18 + $0x78] sm:$0xff]
          %v958 = vld [vmem:[#allocation20] sm:$0xff]
          %v959 = vld [vmem:[#allocation20 + $0x8] sm:$0xff]
          %v960 = vld [vmem:[#allocation20 + $0x10] sm:$0xff]
          %v961 = vld [vmem:[#allocation20 + $0x18] sm:$0xff]
          %v962 = vld [vmem:[#allocation20 + $0x20] sm:$0xff]
          %v963 = vld [vmem:[#allocation20 + $0x28] sm:$0xff]
          %v964 = vld [vmem:[#allocation20 + $0x30] sm:$0xff]
          %v965 = vld [vmem:[#allocation20 + $0x38] sm:$0xff]
          %v966 = vld [vmem:[#allocation20 + $0x40] sm:$0xff]
          %v967 = vld [vmem:[#allocation20 + $0x48] sm:$0xff]
          %v968 = vld [vmem:[#allocation20 + $0x50] sm:$0xff]
          %v969 = vld [vmem:[#allocation20 + $0x58] sm:$0xff]
          %v970 = vld [vmem:[#allocation20 + $0x60] sm:$0xff]
          %v971 = vld [vmem:[#allocation20 + $0x68] sm:$0xff]
          %v972 = vld [vmem:[#allocation20 + $0x70] sm:$0xff]
          %v973 = vld [vmem:[#allocation20 + $0x78] sm:$0xff]
          %v974 = vmul.f32 %v667, %v942
          %v975 = vmul.f32 %v672, %v943
          %v976 = vmul.f32 %v677, %v944
          %v977 = vmul.f32 %v682, %v945
          %v978 = vmul.f32 %v687, %v946
          %v979 = vmul.f32 %v692, %v947
          %v980 = vmul.f32 %v697, %v948
          %v981 = vmul.f32 %v702, %v949
          %v982 = vmul.f32 %v707, %v950
          %v983 = vmul.f32 %v712, %v951
          %v984 = vmul.f32 %v717, %v952
          %v985 = vmul.f32 %v722, %v953
          %v986 = vmul.f32 %v727, %v954
          %v987 = vmul.f32 %v732, %v955
          %v988 = vmul.f32 %v737, %v956
          %v989 = vmul.f32 %v742, %v957
          %1006 = vrot.lane.b32.xlu0 %v958, 8
          %v1007 = vpop.permute.xlu0 %1006
          %1008 = vrot.lane.b32.xlu0 %v959, 8
          %v1009 = vpop.permute.xlu0 %1008
          %1010 = vrot.lane.b32.xlu0 %v960, 8
          %v1011 = vpop.permute.xlu0 %1010
          %1012 = vrot.lane.b32.xlu0 %v961, 8
          %v1013 = vpop.permute.xlu0 %1012
          %1014 = vrot.lane.b32.xlu0 %v962, 8
          %v1015 = vpop.permute.xlu0 %1014
          %1016 = vrot.lane.b32.xlu0 %v963, 8
          %v1017 = vpop.permute.xlu0 %1016
          %1018 = vrot.lane.b32.xlu0 %v964, 8
          %v1019 = vpop.permute.xlu0 %1018
          %1020 = vrot.lane.b32.xlu0 %v965, 8
          %v1021 = vpop.permute.xlu0 %1020
          %1022 = vrot.lane.b32.xlu0 %v966, 8
          %v1023 = vpop.permute.xlu0 %1022
          %1024 = vrot.lane.b32.xlu0 %v967, 8
          %v1025 = vpop.permute.xlu0 %1024
          %1026 = vrot.lane.b32.xlu0 %v968, 8
          %v1027 = vpop.permute.xlu0 %1026
          %1028 = vrot.lane.b32.xlu0 %v969, 8
          %v1029 = vpop.permute.xlu0 %1028
          %1030 = vrot.lane.b32.xlu0 %v970, 8
          %v1031 = vpop.permute.xlu0 %1030
          %1032 = vrot.lane.b32.xlu0 %v971, 8
          %v1033 = vpop.permute.xlu0 %1032
          %1034 = vrot.lane.b32.xlu0 %v972, 8
          %v1035 = vpop.permute.xlu0 %1034
          %1036 = vrot.lane.b32.xlu0 %v973, 8
          %v1037 = vpop.permute.xlu0 %1036
          %v1054 = vmul.f32 %v667, %v1007
          %v1055 = vmul.f32 %v672, %v1009
          %v1056 = vmul.f32 %v677, %v1011
          %v1057 = vmul.f32 %v682, %v1013
          %v1058 = vmul.f32 %v687, %v1015
          %v1059 = vmul.f32 %v692, %v1017
          %v1060 = vmul.f32 %v697, %v1019
          %v1061 = vmul.f32 %v702, %v1021
          %v1062 = vmul.f32 %v707, %v1023
          %v1063 = vmul.f32 %v712, %v1025
          %v1064 = vmul.f32 %v717, %v1027
          %v1065 = vmul.f32 %v722, %v1029
          %v1066 = vmul.f32 %v727, %v1031
          %v1067 = vmul.f32 %v732, %v1033
          %v1068 = vmul.f32 %v737, %v1035
          %v1069 = vmul.f32 %v742, %v1037
          %1086 = vrot.lane.b32.xlu0 %v1054, 120
          %v1087 = vpop.permute.xlu0 %1086
          %1088 = vrot.lane.b32.xlu0 %v1055, 120
          %v1089 = vpop.permute.xlu0 %1088
          %1090 = vrot.lane.b32.xlu0 %v1056, 120
          %v1091 = vpop.permute.xlu0 %1090
          %1092 = vrot.lane.b32.xlu0 %v1057, 120
          %v1093 = vpop.permute.xlu0 %1092
          %1094 = vrot.lane.b32.xlu0 %v1058, 120
          %v1095 = vpop.permute.xlu0 %1094
          %1096 = vrot.lane.b32.xlu0 %v1059, 120
          %v1097 = vpop.permute.xlu0 %1096
          %1098 = vrot.lane.b32.xlu0 %v1060, 120
          %v1099 = vpop.permute.xlu0 %1098
          %1100 = vrot.lane.b32.xlu0 %v1061, 120
          %v1101 = vpop.permute.xlu0 %1100
          %1102 = vrot.lane.b32.xlu0 %v1062, 120
          %v1103 = vpop.permute.xlu0 %1102
          %1104 = vrot.lane.b32.xlu0 %v1063, 120
          %v1105 = vpop.permute.xlu0 %1104
          %1106 = vrot.lane.b32.xlu0 %v1064, 120
          %v1107 = vpop.permute.xlu0 %1106
          %1108 = vrot.lane.b32.xlu0 %v1065, 120
          %v1109 = vpop.permute.xlu0 %1108
          %1110 = vrot.lane.b32.xlu0 %v1066, 120
          %v1111 = vpop.permute.xlu0 %1110
          %1112 = vrot.lane.b32.xlu0 %v1067, 120
          %v1113 = vpop.permute.xlu0 %1112
          %1114 = vrot.lane.b32.xlu0 %v1068, 120
          %v1115 = vpop.permute.xlu0 %1114
          %1116 = vrot.lane.b32.xlu0 %v1069, 120
          %v1117 = vpop.permute.xlu0 %1116
          %v1134 = vsub.f32 %v974, %v1087
          %v1135 = vsub.f32 %v975, %v1089
          %v1136 = vsub.f32 %v976, %v1091
          %v1137 = vsub.f32 %v977, %v1093
          %v1138 = vsub.f32 %v978, %v1095
          %v1139 = vsub.f32 %v979, %v1097
          %v1140 = vsub.f32 %v980, %v1099
          %v1141 = vsub.f32 %v981, %v1101
          %v1142 = vsub.f32 %v982, %v1103
          %v1143 = vsub.f32 %v983, %v1105
          %v1144 = vsub.f32 %v984, %v1107
          %v1145 = vsub.f32 %v985, %v1109
          %v1146 = vsub.f32 %v986, %v1111
          %v1147 = vsub.f32 %v987, %v1113
          %v1148 = vsub.f32 %v988, %v1115
          %v1149 = vsub.f32 %v989, %v1117
          %1166 = vrot.lane.b32.xlu0 %v942, 8
          %v1167 = vpop.permute.xlu0 %1166
          %1168 = vrot.lane.b32.xlu0 %v943, 8
          %v1169 = vpop.permute.xlu0 %1168
          %1170 = vrot.lane.b32.xlu0 %v944, 8
          %v1171 = vpop.permute.xlu0 %1170
          %1172 = vrot.lane.b32.xlu0 %v945, 8
          %v1173 = vpop.permute.xlu0 %1172
          %1174 = vrot.lane.b32.xlu0 %v946, 8
          %v1175 = vpop.permute.xlu0 %1174
          %1176 = vrot.lane.b32.xlu0 %v947, 8
          %v1177 = vpop.permute.xlu0 %1176
          %1178 = vrot.lane.b32.xlu0 %v948, 8
          %v1179 = vpop.permute.xlu0 %1178
          %1180 = vrot.lane.b32.xlu0 %v949, 8
          %v1181 = vpop.permute.xlu0 %1180
          %1182 = vrot.lane.b32.xlu0 %v950, 8
          %v1183 = vpop.permute.xlu0 %1182
          %1184 = vrot.lane.b32.xlu0 %v951, 8
          %v1185 = vpop.permute.xlu0 %1184
          %1186 = vrot.lane.b32.xlu0 %v952, 8
          %v1187 = vpop.permute.xlu0 %1186
          %1188 = vrot.lane.b32.xlu0 %v953, 8
          %v1189 = vpop.permute.xlu0 %1188
          %1190 = vrot.lane.b32.xlu0 %v954, 8
          %v1191 = vpop.permute.xlu0 %1190
          %1192 = vrot.lane.b32.xlu0 %v955, 8
          %v1193 = vpop.permute.xlu0 %1192
          %1194 = vrot.lane.b32.xlu0 %v956, 8
          %v1195 = vpop.permute.xlu0 %1194
          %1196 = vrot.lane.b32.xlu0 %v957, 8
          %v1197 = vpop.permute.xlu0 %1196
          %v1214 = vmul.f32 %v667, %v1167
          %v1215 = vmul.f32 %v672, %v1169
          %v1216 = vmul.f32 %v677, %v1171
          %v1217 = vmul.f32 %v682, %v1173
          %v1218 = vmul.f32 %v687, %v1175
          %v1219 = vmul.f32 %v692, %v1177
          %v1220 = vmul.f32 %v697, %v1179
          %v1221 = vmul.f32 %v702, %v1181
          %v1222 = vmul.f32 %v707, %v1183
          %v1223 = vmul.f32 %v712, %v1185
          %v1224 = vmul.f32 %v717, %v1187
          %v1225 = vmul.f32 %v722, %v1189
          %v1226 = vmul.f32 %v727, %v1191
          %v1227 = vmul.f32 %v732, %v1193
          %v1228 = vmul.f32 %v737, %v1195
          %v1229 = vmul.f32 %v742, %v1197
          %v1230 = vmul.f32 %v667, %v958
          %v1231 = vmul.f32 %v672, %v959
          %v1232 = vmul.f32 %v677, %v960
          %v1233 = vmul.f32 %v682, %v961
          %v1234 = vmul.f32 %v687, %v962
          %v1235 = vmul.f32 %v692, %v963
          %v1236 = vmul.f32 %v697, %v964
          %v1237 = vmul.f32 %v702, %v965
          %v1238 = vmul.f32 %v707, %v966
          %v1239 = vmul.f32 %v712, %v967
          %v1240 = vmul.f32 %v717, %v968
          %v1241 = vmul.f32 %v722, %v969
          %v1242 = vmul.f32 %v727, %v970
          %v1243 = vmul.f32 %v732, %v971
          %v1244 = vmul.f32 %v737, %v972
          %v1245 = vmul.f32 %v742, %v973
          %1262 = vrot.lane.b32.xlu0 %v1230, 8
          %v1263 = vpop.permute.xlu0 %1262
          %1264 = vrot.lane.b32.xlu0 %v1231, 8
          %v1265 = vpop.permute.xlu0 %1264
          %1266 = vrot.lane.b32.xlu0 %v1232, 8
          %v1267 = vpop.permute.xlu0 %1266
          %1268 = vrot.lane.b32.xlu0 %v1233, 8
          %v1269 = vpop.permute.xlu0 %1268
          %1270 = vrot.lane.b32.xlu0 %v1234, 8
          %v1271 = vpop.permute.xlu0 %1270
          %1272 = vrot.lane.b32.xlu0 %v1235, 8
          %v1273 = vpop.permute.xlu0 %1272
          %1274 = vrot.lane.b32.xlu0 %v1236, 8
          %v1275 = vpop.permute.xlu0 %1274
          %1276 = vrot.lane.b32.xlu0 %v1237, 8
          %v1277 = vpop.permute.xlu0 %1276
          %1278 = vrot.lane.b32.xlu0 %v1238, 8
          %v1279 = vpop.permute.xlu0 %1278
          %1280 = vrot.lane.b32.xlu0 %v1239, 8
          %v1281 = vpop.permute.xlu0 %1280
          %1282 = vrot.lane.b32.xlu0 %v1240, 8
          %v1283 = vpop.permute.xlu0 %1282
          %1284 = vrot.lane.b32.xlu0 %v1241, 8
          %v1285 = vpop.permute.xlu0 %1284
          %1286 = vrot.lane.b32.xlu0 %v1242, 8
          %v1287 = vpop.permute.xlu0 %1286
          %1288 = vrot.lane.b32.xlu0 %v1243, 8
          %v1289 = vpop.permute.xlu0 %1288
          %1290 = vrot.lane.b32.xlu0 %v1244, 8
          %v1291 = vpop.permute.xlu0 %1290
          %1292 = vrot.lane.b32.xlu0 %v1245, 8
          %v1293 = vpop.permute.xlu0 %1292
          %v1310 = vadd.f32 %v1214, %v1263
          %v1311 = vadd.f32 %v1215, %v1265
          %v1312 = vadd.f32 %v1216, %v1267
          %v1313 = vadd.f32 %v1217, %v1269
          %v1314 = vadd.f32 %v1218, %v1271
          %v1315 = vadd.f32 %v1219, %v1273
          %v1316 = vadd.f32 %v1220, %v1275
          %v1317 = vadd.f32 %v1221, %v1277
          %v1318 = vadd.f32 %v1222, %v1279
          %v1319 = vadd.f32 %v1223, %v1281
          %v1320 = vadd.f32 %v1224, %v1283
          %v1321 = vadd.f32 %v1225, %v1285
          %v1322 = vadd.f32 %v1226, %v1287
          %v1323 = vadd.f32 %v1227, %v1289
          %v1324 = vadd.f32 %v1228, %v1291
          %v1325 = vadd.f32 %v1229, %v1293
          %vm1326 = vcmask 64512
          %v1327 = vsel %vm1326, %v1134, %v1310
          %v1328 = vsel %vm1326, %v1135, %v1311
          %v1329 = vsel %vm1326, %v1136, %v1312
          %v1330 = vsel %vm1326, %v1137, %v1313
          %v1331 = vsel %vm1326, %v1138, %v1314
          %v1332 = vsel %vm1326, %v1139, %v1315
          %v1333 = vsel %vm1326, %v1140, %v1316
          %v1334 = vsel %vm1326, %v1141, %v1317
          %v1335 = vsel %vm1326, %v1142, %v1318
          %v1336 = vsel %vm1326, %v1143, %v1319
          %v1337 = vsel %vm1326, %v1144, %v1320
          %v1338 = vsel %vm1326, %v1145, %v1321
          %v1339 = vsel %vm1326, %v1146, %v1322
          %v1340 = vsel %vm1326, %v1147, %v1323
          %v1341 = vsel %vm1326, %v1148, %v1324
          %v1342 = vsel %vm1326, %v1149, %v1325
          %1343 = vrot.lane.b32.xlu0 %v942, 16
          %v1344 = vpop.permute.xlu0 %1343
          %1345 = vrot.lane.b32.xlu0 %v943, 16
          %v1346 = vpop.permute.xlu0 %1345
          %1347 = vrot.lane.b32.xlu0 %v944, 16
          %v1348 = vpop.permute.xlu0 %1347
          %1349 = vrot.lane.b32.xlu0 %v945, 16
          %v1350 = vpop.permute.xlu0 %1349
          %1351 = vrot.lane.b32.xlu0 %v946, 16
          %v1352 = vpop.permute.xlu0 %1351
          %1353 = vrot.lane.b32.xlu0 %v947, 16
          %v1354 = vpop.permute.xlu0 %1353
          %1355 = vrot.lane.b32.xlu0 %v948, 16
          %v1356 = vpop.permute.xlu0 %1355
          %1357 = vrot.lane.b32.xlu0 %v949, 16
          %v1358 = vpop.permute.xlu0 %1357
          %1359 = vrot.lane.b32.xlu0 %v950, 16
          %v1360 = vpop.permute.xlu0 %1359
          %1361 = vrot.lane.b32.xlu0 %v951, 16
          %v1362 = vpop.permute.xlu0 %1361
          %1363 = vrot.lane.b32.xlu0 %v952, 16
          %v1364 = vpop.permute.xlu0 %1363
          %1365 = vrot.lane.b32.xlu0 %v953, 16
          %v1366 = vpop.permute.xlu0 %1365
          %1367 = vrot.lane.b32.xlu0 %v954, 16
          %v1368 = vpop.permute.xlu0 %1367
          %1369 = vrot.lane.b32.xlu0 %v955, 16
          %v1370 = vpop.permute.xlu0 %1369
          %1371 = vrot.lane.b32.xlu0 %v956, 16
          %v1372 = vpop.permute.xlu0 %1371
          %1373 = vrot.lane.b32.xlu0 %v957, 16
          %v1374 = vpop.permute.xlu0 %1373
          %v1391 = vmul.f32 %v667, %v1344
          %v1392 = vmul.f32 %v672, %v1346
          %v1393 = vmul.f32 %v677, %v1348
          %v1394 = vmul.f32 %v682, %v1350
          %v1395 = vmul.f32 %v687, %v1352
          %v1396 = vmul.f32 %v692, %v1354
          %v1397 = vmul.f32 %v697, %v1356
          %v1398 = vmul.f32 %v702, %v1358
          %v1399 = vmul.f32 %v707, %v1360
          %v1400 = vmul.f32 %v712, %v1362
          %v1401 = vmul.f32 %v717, %v1364
          %v1402 = vmul.f32 %v722, %v1366
          %v1403 = vmul.f32 %v727, %v1368
          %v1404 = vmul.f32 %v732, %v1370
          %v1405 = vmul.f32 %v737, %v1372
          %v1406 = vmul.f32 %v742, %v1374
          %1407 = vrot.lane.b32.xlu0 %v958, 24
          %v1408 = vpop.permute.xlu0 %1407
          %1409 = vrot.lane.b32.xlu0 %v959, 24
          %v1410 = vpop.permute.xlu0 %1409
          %1411 = vrot.lane.b32.xlu0 %v960, 24
          %v1412 = vpop.permute.xlu0 %1411
          %1413 = vrot.lane.b32.xlu0 %v961, 24
          %v1414 = vpop.permute.xlu0 %1413
          %1415 = vrot.lane.b32.xlu0 %v962, 24
          %v1416 = vpop.permute.xlu0 %1415
          %1417 = vrot.lane.b32.xlu0 %v963, 24
          %v1418 = vpop.permute.xlu0 %1417
          %1419 = vrot.lane.b32.xlu0 %v964, 24
          %v1420 = vpop.permute.xlu0 %1419
          %1421 = vrot.lane.b32.xlu0 %v965, 24
          %v1422 = vpop.permute.xlu0 %1421
          %1423 = vrot.lane.b32.xlu0 %v966, 24
          %v1424 = vpop.permute.xlu0 %1423
          %1425 = vrot.lane.b32.xlu0 %v967, 24
          %v1426 = vpop.permute.xlu0 %1425
          %1427 = vrot.lane.b32.xlu0 %v968, 24
          %v1428 = vpop.permute.xlu0 %1427
          %1429 = vrot.lane.b32.xlu0 %v969, 24
          %v1430 = vpop.permute.xlu0 %1429
          %1431 = vrot.lane.b32.xlu0 %v970, 24
          %v1432 = vpop.permute.xlu0 %1431
          %1433 = vrot.lane.b32.xlu0 %v971, 24
          %v1434 = vpop.permute.xlu0 %1433
          %1435 = vrot.lane.b32.xlu0 %v972, 24
          %v1436 = vpop.permute.xlu0 %1435
          %1437 = vrot.lane.b32.xlu0 %v973, 24
          %v1438 = vpop.permute.xlu0 %1437
          %v1455 = vmul.f32 %v667, %v1408
          %v1456 = vmul.f32 %v672, %v1410
          %v1457 = vmul.f32 %v677, %v1412
          %v1458 = vmul.f32 %v682, %v1414
          %v1459 = vmul.f32 %v687, %v1416
          %v1460 = vmul.f32 %v692, %v1418
          %v1461 = vmul.f32 %v697, %v1420
          %v1462 = vmul.f32 %v702, %v1422
          %v1463 = vmul.f32 %v707, %v1424
          %v1464 = vmul.f32 %v712, %v1426
          %v1465 = vmul.f32 %v717, %v1428
          %v1466 = vmul.f32 %v722, %v1430
          %v1467 = vmul.f32 %v727, %v1432
          %v1468 = vmul.f32 %v732, %v1434
          %v1469 = vmul.f32 %v737, %v1436
          %v1470 = vmul.f32 %v742, %v1438
          %1487 = vrot.lane.b32.xlu0 %v1455, 120
          %v1488 = vpop.permute.xlu0 %1487
          %1489 = vrot.lane.b32.xlu0 %v1456, 120
          %v1490 = vpop.permute.xlu0 %1489
          %1491 = vrot.lane.b32.xlu0 %v1457, 120
          %v1492 = vpop.permute.xlu0 %1491
          %1493 = vrot.lane.b32.xlu0 %v1458, 120
          %v1494 = vpop.permute.xlu0 %1493
          %1495 = vrot.lane.b32.xlu0 %v1459, 120
          %v1496 = vpop.permute.xlu0 %1495
          %1497 = vrot.lane.b32.xlu0 %v1460, 120
          %v1498 = vpop.permute.xlu0 %1497
          %1499 = vrot.lane.b32.xlu0 %v1461, 120
          %v1500 = vpop.permute.xlu0 %1499
          %1501 = vrot.lane.b32.xlu0 %v1462, 120
          %v1502 = vpop.permute.xlu0 %1501
          %1503 = vrot.lane.b32.xlu0 %v1463, 120
          %v1504 = vpop.permute.xlu0 %1503
          %1505 = vrot.lane.b32.xlu0 %v1464, 120
          %v1506 = vpop.permute.xlu0 %1505
          %1507 = vrot.lane.b32.xlu0 %v1465, 120
          %v1508 = vpop.permute.xlu0 %1507
          %1509 = vrot.lane.b32.xlu0 %v1466, 120
          %v1510 = vpop.permute.xlu0 %1509
          %1511 = vrot.lane.b32.xlu0 %v1467, 120
          %v1512 = vpop.permute.xlu0 %1511
          %1513 = vrot.lane.b32.xlu0 %v1468, 120
          %v1514 = vpop.permute.xlu0 %1513
          %1515 = vrot.lane.b32.xlu0 %v1469, 120
          %v1516 = vpop.permute.xlu0 %1515
          %1517 = vrot.lane.b32.xlu0 %v1470, 120
          %v1518 = vpop.permute.xlu0 %1517
          %v1535 = vsub.f32 %v1391, %v1488
          %v1536 = vsub.f32 %v1392, %v1490
          %v1537 = vsub.f32 %v1393, %v1492
          %v1538 = vsub.f32 %v1394, %v1494
          %v1539 = vsub.f32 %v1395, %v1496
          %v1540 = vsub.f32 %v1396, %v1498
          %v1541 = vsub.f32 %v1397, %v1500
          %v1542 = vsub.f32 %v1398, %v1502
          %v1543 = vsub.f32 %v1399, %v1504
          %v1544 = vsub.f32 %v1400, %v1506
          %v1545 = vsub.f32 %v1401, %v1508
          %v1546 = vsub.f32 %v1402, %v1510
          %v1547 = vsub.f32 %v1403, %v1512
          %v1548 = vsub.f32 %v1404, %v1514
          %v1549 = vsub.f32 %v1405, %v1516
          %v1550 = vsub.f32 %v1406, %v1518
          %1551 = vrot.lane.b32.xlu0 %v942, 24
          %v1552 = vpop.permute.xlu0 %1551
          %1553 = vrot.lane.b32.xlu0 %v943, 24
          %v1554 = vpop.permute.xlu0 %1553
          %1555 = vrot.lane.b32.xlu0 %v944, 24
          %v1556 = vpop.permute.xlu0 %1555
          %1557 = vrot.lane.b32.xlu0 %v945, 24
          %v1558 = vpop.permute.xlu0 %1557
          %1559 = vrot.lane.b32.xlu0 %v946, 24
          %v1560 = vpop.permute.xlu0 %1559
          %1561 = vrot.lane.b32.xlu0 %v947, 24
          %v1562 = vpop.permute.xlu0 %1561
          %1563 = vrot.lane.b32.xlu0 %v948, 24
          %v1564 = vpop.permute.xlu0 %1563
          %1565 = vrot.lane.b32.xlu0 %v949, 24
          %v1566 = vpop.permute.xlu0 %1565
          %1567 = vrot.lane.b32.xlu0 %v950, 24
          %v1568 = vpop.permute.xlu0 %1567
          %1569 = vrot.lane.b32.xlu0 %v951, 24
          %v1570 = vpop.permute.xlu0 %1569
          %1571 = vrot.lane.b32.xlu0 %v952, 24
          %v1572 = vpop.permute.xlu0 %1571
          %1573 = vrot.lane.b32.xlu0 %v953, 24
          %v1574 = vpop.permute.xlu0 %1573
          %1575 = vrot.lane.b32.xlu0 %v954, 24
          %v1576 = vpop.permute.xlu0 %1575
          %1577 = vrot.lane.b32.xlu0 %v955, 24
          %v1578 = vpop.permute.xlu0 %1577
          %1579 = vrot.lane.b32.xlu0 %v956, 24
          %v1580 = vpop.permute.xlu0 %1579
          %1581 = vrot.lane.b32.xlu0 %v957, 24
          %v1582 = vpop.permute.xlu0 %1581
          %v1599 = vmul.f32 %v667, %v1552
          %v1600 = vmul.f32 %v672, %v1554
          %v1601 = vmul.f32 %v677, %v1556
          %v1602 = vmul.f32 %v682, %v1558
          %v1603 = vmul.f32 %v687, %v1560
          %v1604 = vmul.f32 %v692, %v1562
          %v1605 = vmul.f32 %v697, %v1564
          %v1606 = vmul.f32 %v702, %v1566
          %v1607 = vmul.f32 %v707, %v1568
          %v1608 = vmul.f32 %v712, %v1570
          %v1609 = vmul.f32 %v717, %v1572
          %v1610 = vmul.f32 %v722, %v1574
          %v1611 = vmul.f32 %v727, %v1576
          %v1612 = vmul.f32 %v732, %v1578
          %v1613 = vmul.f32 %v737, %v1580
          %v1614 = vmul.f32 %v742, %v1582
          %1615 = vrot.lane.b32.xlu0 %v958, 16
          %v1616 = vpop.permute.xlu0 %1615
          %1617 = vrot.lane.b32.xlu0 %v959, 16
          %v1618 = vpop.permute.xlu0 %1617
          %1619 = vrot.lane.b32.xlu0 %v960, 16
          %v1620 = vpop.permute.xlu0 %1619
          %1621 = vrot.lane.b32.xlu0 %v961, 16
          %v1622 = vpop.permute.xlu0 %1621
          %1623 = vrot.lane.b32.xlu0 %v962, 16
          %v1624 = vpop.permute.xlu0 %1623
          %1625 = vrot.lane.b32.xlu0 %v963, 16
          %v1626 = vpop.permute.xlu0 %1625
          %1627 = vrot.lane.b32.xlu0 %v964, 16
          %v1628 = vpop.permute.xlu0 %1627
          %1629 = vrot.lane.b32.xlu0 %v965, 16
          %v1630 = vpop.permute.xlu0 %1629
          %1631 = vrot.lane.b32.xlu0 %v966, 16
          %v1632 = vpop.permute.xlu0 %1631
          %1633 = vrot.lane.b32.xlu0 %v967, 16
          %v1634 = vpop.permute.xlu0 %1633
          %1635 = vrot.lane.b32.xlu0 %v968, 16
          %v1636 = vpop.permute.xlu0 %1635
          %1637 = vrot.lane.b32.xlu0 %v969, 16
          %v1638 = vpop.permute.xlu0 %1637
          %1639 = vrot.lane.b32.xlu0 %v970, 16
          %v1640 = vpop.permute.xlu0 %1639
          %1641 = vrot.lane.b32.xlu0 %v971, 16
          %v1642 = vpop.permute.xlu0 %1641
          %1643 = vrot.lane.b32.xlu0 %v972, 16
          %v1644 = vpop.permute.xlu0 %1643
          %1645 = vrot.lane.b32.xlu0 %v973, 16
          %v1646 = vpop.permute.xlu0 %1645
          %v1663 = vmul.f32 %v667, %v1616
          %v1664 = vmul.f32 %v672, %v1618
          %v1665 = vmul.f32 %v677, %v1620
          %v1666 = vmul.f32 %v682, %v1622
          %v1667 = vmul.f32 %v687, %v1624
          %v1668 = vmul.f32 %v692, %v1626
          %v1669 = vmul.f32 %v697, %v1628
          %v1670 = vmul.f32 %v702, %v1630
          %v1671 = vmul.f32 %v707, %v1632
          %v1672 = vmul.f32 %v712, %v1634
          %v1673 = vmul.f32 %v717, %v1636
          %v1674 = vmul.f32 %v722, %v1638
          %v1675 = vmul.f32 %v727, %v1640
          %v1676 = vmul.f32 %v732, %v1642
          %v1677 = vmul.f32 %v737, %v1644
          %v1678 = vmul.f32 %v742, %v1646
          %1695 = vrot.lane.b32.xlu0 %v1663, 8
          %v1696 = vpop.permute.xlu0 %1695
          %1697 = vrot.lane.b32.xlu0 %v1664, 8
          %v1698 = vpop.permute.xlu0 %1697
          %1699 = vrot.lane.b32.xlu0 %v1665, 8
          %v1700 = vpop.permute.xlu0 %1699
          %1701 = vrot.lane.b32.xlu0 %v1666, 8
          %v1702 = vpop.permute.xlu0 %1701
          %1703 = vrot.lane.b32.xlu0 %v1667, 8
          %v1704 = vpop.permute.xlu0 %1703
          %1705 = vrot.lane.b32.xlu0 %v1668, 8
          %v1706 = vpop.permute.xlu0 %1705
          %1707 = vrot.lane.b32.xlu0 %v1669, 8
          %v1708 = vpop.permute.xlu0 %1707
          %1709 = vrot.lane.b32.xlu0 %v1670, 8
          %v1710 = vpop.permute.xlu0 %1709
          %1711 = vrot.lane.b32.xlu0 %v1671, 8
          %v1712 = vpop.permute.xlu0 %1711
          %1713 = vrot.lane.b32.xlu0 %v1672, 8
          %v1714 = vpop.permute.xlu0 %1713
          %1715 = vrot.lane.b32.xlu0 %v1673, 8
          %v1716 = vpop.permute.xlu0 %1715
          %1717 = vrot.lane.b32.xlu0 %v1674, 8
          %v1718 = vpop.permute.xlu0 %1717
          %1719 = vrot.lane.b32.xlu0 %v1675, 8
          %v1720 = vpop.permute.xlu0 %1719
          %1721 = vrot.lane.b32.xlu0 %v1676, 8
          %v1722 = vpop.permute.xlu0 %1721
          %1723 = vrot.lane.b32.xlu0 %v1677, 8
          %v1724 = vpop.permute.xlu0 %1723
          %1725 = vrot.lane.b32.xlu0 %v1678, 8
          %v1726 = vpop.permute.xlu0 %1725
          %v1743 = vadd.f32 %v1599, %v1696
          %v1744 = vadd.f32 %v1600, %v1698
          %v1745 = vadd.f32 %v1601, %v1700
          %v1746 = vadd.f32 %v1602, %v1702
          %v1747 = vadd.f32 %v1603, %v1704
          %v1748 = vadd.f32 %v1604, %v1706
          %v1749 = vadd.f32 %v1605, %v1708
          %v1750 = vadd.f32 %v1606, %v1710
          %v1751 = vadd.f32 %v1607, %v1712
          %v1752 = vadd.f32 %v1608, %v1714
          %v1753 = vadd.f32 %v1609, %v1716
          %v1754 = vadd.f32 %v1610, %v1718
          %v1755 = vadd.f32 %v1611, %v1720
          %v1756 = vadd.f32 %v1612, %v1722
          %v1757 = vadd.f32 %v1613, %v1724
          %v1758 = vadd.f32 %v1614, %v1726
          %1775 = vrot.lane.b32.xlu0 %v1535, 112
          %v1776 = vpop.permute.xlu0 %1775
          %1777 = vrot.lane.b32.xlu0 %v1536, 112
          %v1778 = vpop.permute.xlu0 %1777
          %1779 = vrot.lane.b32.xlu0 %v1537, 112
          %v1780 = vpop.permute.xlu0 %1779
          %1781 = vrot.lane.b32.xlu0 %v1538, 112
          %v1782 = vpop.permute.xlu0 %1781
          %1783 = vrot.lane.b32.xlu0 %v1539, 112
          %v1784 = vpop.permute.xlu0 %1783
          %1785 = vrot.lane.b32.xlu0 %v1540, 112
          %v1786 = vpop.permute.xlu0 %1785
          %1787 = vrot.lane.b32.xlu0 %v1541, 112
          %v1788 = vpop.permute.xlu0 %1787
          %1789 = vrot.lane.b32.xlu0 %v1542, 112
          %v1790 = vpop.permute.xlu0 %1789
          %1791 = vrot.lane.b32.xlu0 %v1543, 112
          %v1792 = vpop.permute.xlu0 %1791
          %1793 = vrot.lane.b32.xlu0 %v1544, 112
          %v1794 = vpop.permute.xlu0 %1793
          %1795 = vrot.lane.b32.xlu0 %v1545, 112
          %v1796 = vpop.permute.xlu0 %1795
          %1797 = vrot.lane.b32.xlu0 %v1546, 112
          %v1798 = vpop.permute.xlu0 %1797
          %1799 = vrot.lane.b32.xlu0 %v1547, 112
          %v1800 = vpop.permute.xlu0 %1799
          %1801 = vrot.lane.b32.xlu0 %v1548, 112
          %v1802 = vpop.permute.xlu0 %1801
          %1803 = vrot.lane.b32.xlu0 %v1549, 112
          %v1804 = vpop.permute.xlu0 %1803
          %1805 = vrot.lane.b32.xlu0 %v1550, 112
          %v1806 = vpop.permute.xlu0 %1805
          %1839 = vrot.lane.b32.xlu0 %v1743, 112
          %v1840 = vpop.permute.xlu0 %1839
          %1841 = vrot.lane.b32.xlu0 %v1744, 112
          %v1842 = vpop.permute.xlu0 %1841
          %1843 = vrot.lane.b32.xlu0 %v1745, 112
          %v1844 = vpop.permute.xlu0 %1843
          %1845 = vrot.lane.b32.xlu0 %v1746, 112
          %v1846 = vpop.permute.xlu0 %1845
          %1847 = vrot.lane.b32.xlu0 %v1747, 112
          %v1848 = vpop.permute.xlu0 %1847
          %1849 = vrot.lane.b32.xlu0 %v1748, 112
          %v1850 = vpop.permute.xlu0 %1849
          %1851 = vrot.lane.b32.xlu0 %v1749, 112
          %v1852 = vpop.permute.xlu0 %1851
          %1853 = vrot.lane.b32.xlu0 %v1750, 112
          %v1854 = vpop.permute.xlu0 %1853
          %1855 = vrot.lane.b32.xlu0 %v1751, 112
          %v1856 = vpop.permute.xlu0 %1855
          %1857 = vrot.lane.b32.xlu0 %v1752, 112
          %v1858 = vpop.permute.xlu0 %1857
          %1859 = vrot.lane.b32.xlu0 %v1753, 112
          %v1860 = vpop.permute.xlu0 %1859
          %1861 = vrot.lane.b32.xlu0 %v1754, 112
          %v1862 = vpop.permute.xlu0 %1861
          %1863 = vrot.lane.b32.xlu0 %v1755, 112
          %v1864 = vpop.permute.xlu0 %1863
          %1865 = vrot.lane.b32.xlu0 %v1756, 112
          %v1866 = vpop.permute.xlu0 %1865
          %1867 = vrot.lane.b32.xlu0 %v1757, 112
          %v1868 = vpop.permute.xlu0 %1867
          %1869 = vrot.lane.b32.xlu0 %v1758, 112
          %v1870 = vpop.permute.xlu0 %1869
          %v1887 = vsel %vm1326, %v1776, %v1840
          %v1888 = vsel %vm1326, %v1778, %v1842
          %v1889 = vsel %vm1326, %v1780, %v1844
          %v1890 = vsel %vm1326, %v1782, %v1846
          %v1891 = vsel %vm1326, %v1784, %v1848
          %v1892 = vsel %vm1326, %v1786, %v1850
          %v1893 = vsel %vm1326, %v1788, %v1852
          %v1894 = vsel %vm1326, %v1790, %v1854
          %v1895 = vsel %vm1326, %v1792, %v1856
          %v1896 = vsel %vm1326, %v1794, %v1858
          %v1897 = vsel %vm1326, %v1796, %v1860
          %v1898 = vsel %vm1326, %v1798, %v1862
          %v1899 = vsel %vm1326, %v1800, %v1864
          %v1900 = vsel %vm1326, %v1802, %v1866
          %v1901 = vsel %vm1326, %v1804, %v1868
          %v1902 = vsel %vm1326, %v1806, %v1870
          %vm1903 = vcmask 130048
          %v1905 = vsel %vm1903, %v1327, 0
          %v1908 = vsel %vm1903, %v1328, 0
          %v1911 = vsel %vm1903, %v1329, 0
          %v1914 = vsel %vm1903, %v1330, 0
          %v1917 = vsel %vm1903, %v1331, 0
          %v1920 = vsel %vm1903, %v1332, 0
          %v1923 = vsel %vm1903, %v1333, 0
          %v1926 = vsel %vm1903, %v1334, 0
          %v1929 = vsel %vm1903, %v1335, 0
          %v1932 = vsel %vm1903, %v1336, 0
          %v1935 = vsel %vm1903, %v1337, 0
          %v1938 = vsel %vm1903, %v1338, 0
          %v1941 = vsel %vm1903, %v1339, 0
          %v1944 = vsel %vm1903, %v1340, 0
          %v1947 = vsel %vm1903, %v1341, 0
          %v1950 = vsel %vm1903, %v1342, 0
          %v1953 = vsel %vm1903, %v1887, 0
          %v1956 = vsel %vm1903, %v1888, 0
          %v1959 = vsel %vm1903, %v1889, 0
          %v1962 = vsel %vm1903, %v1890, 0
          %v1965 = vsel %vm1903, %v1891, 0
          %v1968 = vsel %vm1903, %v1892, 0
          %v1971 = vsel %vm1903, %v1893, 0
          %v1974 = vsel %vm1903, %v1894, 0
          %v1977 = vsel %vm1903, %v1895, 0
          %v1980 = vsel %vm1903, %v1896, 0
          %v1983 = vsel %vm1903, %v1897, 0
          %v1986 = vsel %vm1903, %v1898, 0
          %v1989 = vsel %vm1903, %v1899, 0
          %v1992 = vsel %vm1903, %v1900, 0
          %v1995 = vsel %vm1903, %v1901, 0
          %v1998 = vsel %vm1903, %v1902, 0
          %2000 = vmatprep.subr.mxu0 0.0
          %2001 = vmatpush1.xpose.msra.mxu0 %v1953
          %2002 = vmatprep.subr.mxu0 0.0
          %2003 = vmatpush1.xpose.msra.mxu0 %v1956
          %2004 = vmatprep.subr.mxu0 0.0
          %2005 = vmatpush1.xpose.msra.mxu0 %v1959
          %2006 = vmatprep.subr.mxu0 0.0
          %2007 = vmatpush1.xpose.msra.mxu0 %v1962
          %2008 = vmatprep.subr.mxu0 0.0
          %2009 = vmatpush1.xpose.msra.mxu0 %v1965
          %2010 = vmatprep.subr.mxu0 0.0
          %2011 = vmatpush1.xpose.msra.mxu0 %v1968
          %2012 = vmatprep.subr.mxu0 0.0
          %2013 = vmatpush1.xpose.msra.mxu0 %v1971
          %2014 = vmatprep.subr.mxu0 0.0
          %2015 = vmatpush1.xpose.msra.mxu0 %v1974
          %2016 = vmatprep.subr.mxu0 0.0
          %2017 = vmatpush1.xpose.msra.mxu0 %v1977
          %2018 = vmatprep.subr.mxu0 0.0
          %2019 = vmatpush1.xpose.msra.mxu0 %v1980
          %2020 = vmatprep.subr.mxu0 0.0
          %2021 = vmatpush1.xpose.msra.mxu0 %v1983
          %2022 = vmatprep.subr.mxu0 0.0
          %2023 = vmatpush1.xpose.msra.mxu0 %v1986
          %2024 = vmatprep.subr.mxu0 0.0
          %2025 = vmatpush1.xpose.msra.mxu0 %v1989
          %2026 = vmatprep.subr.mxu0 0.0
          %2027 = vmatpush1.xpose.msra.mxu0 %v1992
          %2028 = vmatprep.subr.mxu0 0.0
          %2029 = vmatpush1.xpose.msra.mxu0 %v1995
          %2030 = vmatprep.subr.mxu0 0.0
          %2031 = vmatpush1.xpose.msra.mxu0 %v1998
          %2032 = vmatprep.subr.mxu0 0.0
          %2033 = vmatpush1.xpose.msra.mxu0 0.0
          %2034 = vmatprep.subr.mxu0 0.0
          %2035 = vmatpush1.xpose.msra.mxu0 0.0
          %2036 = vmatprep.subr.mxu0 0.0
          %2037 = vmatpush1.xpose.msra.mxu0 0.0
          %2038 = vmatprep.subr.mxu0 0.0
          %2039 = vmatpush1.xpose.msra.mxu0 0.0
          %2040 = vmatprep.subr.mxu0 0.0
          %2041 = vmatpush1.xpose.msra.mxu0 0.0
          %2042 = vmatprep.subr.mxu0 0.0
          %2043 = vmatpush1.xpose.msra.mxu0 0.0
          %2044 = vmatprep.subr.mxu0 0.0
          %2045 = vmatpush1.xpose.msra.mxu0 0.0
          %2046 = vmatprep.subr.mxu0 0.0
          %2047 = vmatpush1.xpose.msra.mxu0 0.0
          %2048 = vmatprep.subr.mxu0 0.0
          %2049 = vmatpush1.xpose.msra.mxu0 0.0
          %2050 = vmatprep.subr.mxu0 0.0
          %2051 = vmatpush1.xpose.msra.mxu0 0.0
          %2052 = vmatprep.subr.mxu0 0.0
          %2053 = vmatpush1.xpose.msra.mxu0 0.0
          %2054 = vmatprep.subr.mxu0 0.0
          %2055 = vmatpush1.xpose.msra.mxu0 0.0
          %2056 = vmatprep.subr.mxu0 0.0
          %2057 = vmatpush1.xpose.msra.mxu0 0.0
          %2058 = vmatprep.subr.mxu0 0.0
          %2059 = vmatpush1.xpose.msra.mxu0 0.0
          %2060 = vmatprep.subr.mxu0 0.0
          %2061 = vmatpush1.xpose.msra.mxu0 0.0
          %2062 = vmatprep.subr.mxu0 0.0
          %2063 = vmatpush1.xpose.msra.mxu0 0.0
          %2064 = vmatprep.mubr.f32.mxu0 0.0
          %2065 = vmatmul.mubr.f32.gmra.mrb[0].mxu0 %v1905
          %v2066 = vpop.f32.mrb[0].mxu0
          %v2067 = vadd.f32 0.0, %v2066
          %v2068 = vpop.f32.mrb[0].mxu0
          %2069 = vmatprep.mubr.f32.mxu0 0.0
          %2070 = vmatmul.mubr.f32.gmra.mrb[0].mxu0 %v1908
          %v2071 = vpop.f32.mrb[0].mxu0
          %v2072 = vadd.f32 0.0, %v2071
          %v2073 = vpop.f32.mrb[0].mxu0
          %2074 = vmatprep.mubr.f32.mxu0 0.0
          %2075 = vmatmul.mubr.f32.gmra.mrb[0].mxu0 %v1911
          %v2076 = vpop.f32.mrb[0].mxu0
          %v2077 = vadd.f32 0.0, %v2076
          %v2078 = vpop.f32.mrb[0].mxu0
          %2079 = vmatprep.mubr.f32.mxu0 0.0
          %2080 = vmatmul.mubr.f32.gmra.mrb[0].mxu0 %v1914
          %v2081 = vpop.f32.mrb[0].mxu0
          %v2082 = vadd.f32 0.0, %v2081
          %v2083 = vpop.f32.mrb[0].mxu0
          %2084 = vmatprep.mubr.f32.mxu0 0.0
          %2085 = vmatmul.mubr.f32.gmra.mrb[0].mxu0 %v1917
          %v2086 = vpop.f32.mrb[0].mxu0
          %v2087 = vadd.f32 0.0, %v2086
          %v2088 = vpop.f32.mrb[0].mxu0
          %2089 = vmatprep.mubr.f32.mxu0 0.0
          %2090 = vmatmul.mubr.f32.gmra.mrb[0].mxu0 %v1920
          %v2091 = vpop.f32.mrb[0].mxu0
          %v2092 = vadd.f32 0.0, %v2091
          %v2093 = vpop.f32.mrb[0].mxu0
          %2094 = vmatprep.mubr.f32.mxu0 0.0
          %2095 = vmatmul.mubr.f32.gmra.mrb[0].mxu0 %v1923
          %v2096 = vpop.f32.mrb[0].mxu0
          %v2097 = vadd.f32 0.0, %v2096
          %v2098 = vpop.f32.mrb[0].mxu0
          %2099 = vmatprep.mubr.f32.mxu0 0.0
          %2100 = vmatmul.mubr.f32.gmra.mrb[0].mxu0 %v1926
          %v2101 = vpop.f32.mrb[0].mxu0
          %v2102 = vadd.f32 0.0, %v2101
          %v2103 = vpop.f32.mrb[0].mxu0
          %2104 = vmatprep.mubr.f32.mxu0 0.0
          %2105 = vmatmul.mubr.f32.gmra.mrb[0].mxu0 %v1929
          %v2106 = vpop.f32.mrb[0].mxu0
          %v2107 = vadd.f32 0.0, %v2106
          %v2108 = vpop.f32.mrb[0].mxu0
          %2109 = vmatprep.mubr.f32.mxu0 0.0
          %2110 = vmatmul.mubr.f32.gmra.mrb[0].mxu0 %v1932
          %v2111 = vpop.f32.mrb[0].mxu0
          %v2112 = vadd.f32 0.0, %v2111
          %v2113 = vpop.f32.mrb[0].mxu0
          %2114 = vmatprep.mubr.f32.mxu0 0.0
          %2115 = vmatmul.mubr.f32.gmra.mrb[0].mxu0 %v1935
          %v2116 = vpop.f32.mrb[0].mxu0
          %v2117 = vadd.f32 0.0, %v2116
          %v2118 = vpop.f32.mrb[0].mxu0
          %2119 = vmatprep.mubr.f32.mxu0 0.0
          %2120 = vmatmul.mubr.f32.gmra.mrb[0].mxu0 %v1938
          %v2121 = vpop.f32.mrb[0].mxu0
          %v2122 = vadd.f32 0.0, %v2121
          %v2123 = vpop.f32.mrb[0].mxu0
          %2124 = vmatprep.mubr.f32.mxu0 0.0
          %2125 = vmatmul.mubr.f32.gmra.mrb[0].mxu0 %v1941
          %v2126 = vpop.f32.mrb[0].mxu0
          %v2127 = vadd.f32 0.0, %v2126
          %v2128 = vpop.f32.mrb[0].mxu0
          %2129 = vmatprep.mubr.f32.mxu0 0.0
          %2130 = vmatmul.mubr.f32.gmra.mrb[0].mxu0 %v1944
          %v2131 = vpop.f32.mrb[0].mxu0
          %v2132 = vadd.f32 0.0, %v2131
          %v2133 = vpop.f32.mrb[0].mxu0
          %2134 = vmatprep.mubr.f32.mxu0 0.0
          %2135 = vmatmul.mubr.f32.gmra.mrb[0].mxu0 %v1947
          %v2136 = vpop.f32.mrb[0].mxu0
          %v2137 = vadd.f32 0.0, %v2136
          %v2138 = vpop.f32.mrb[0].mxu0
          %2139 = vmatprep.mubr.f32.mxu0 0.0
          %2140 = vmatmul.mubr.f32.gmra.mrb[0].mxu0 %v1950
          %v2141 = vpop.f32.mrb[0].mxu0
          %v2142 = vadd.f32 0.0, %v2141
          %v2143 = vpop.f32.mrb[0].mxu0
          %2144 = vdwg.mxu0
          %v2145 = vld [vmem:[%s443] sm:$0xff]
          %v2146 = vld [vmem:[%s443 + $0x8] sm:$0xff]
          %v2147 = vld [vmem:[%s443 + $0x10] sm:$0xff]
          %v2148 = vld [vmem:[%s443 + $0x18] sm:$0xff]
          %v2149 = vld [vmem:[%s443 + $0x20] sm:$0xff]
          %v2150 = vld [vmem:[%s443 + $0x28] sm:$0xff]
          %v2151 = vld [vmem:[%s443 + $0x30] sm:$0xff]
          %v2152 = vld [vmem:[%s443 + $0x38] sm:$0xff]
          %v2153 = vld [vmem:[%s443 + $0x40] sm:$0xff]
          %v2154 = vld [vmem:[%s443 + $0x48] sm:$0xff]
          %v2155 = vld [vmem:[%s443 + $0x50] sm:$0xff]
          %v2156 = vld [vmem:[%s443 + $0x58] sm:$0xff]
          %v2157 = vld [vmem:[%s443 + $0x60] sm:$0xff]
          %v2158 = vld [vmem:[%s443 + $0x68] sm:$0xff]
          %v2159 = vld [vmem:[%s443 + $0x70] sm:$0xff]
          %v2160 = vld [vmem:[%s443 + $0x78] sm:$0xff]
          %v2161 = vld [vmem:[%s451] sm:$0x1]
          %2163 = vset.pattern.permute.xlu0 0
          %2164 = vperm.xlu0 %2163, %v2145
          %v2165 = vpop.permute.xlu0 %2164
          %2168 = vset.pattern.permute.xlu0 0
          %2169 = vperm.xlu0 %2168, %v2146
          %v2170 = vpop.permute.xlu0 %2169
          %2173 = vset.pattern.permute.xlu0 0
          %2174 = vperm.xlu0 %2173, %v2147
          %v2175 = vpop.permute.xlu0 %2174
          %2178 = vset.pattern.permute.xlu0 0
          %2179 = vperm.xlu0 %2178, %v2148
          %v2180 = vpop.permute.xlu0 %2179
          %2183 = vset.pattern.permute.xlu0 0
          %2184 = vperm.xlu0 %2183, %v2149
          %v2185 = vpop.permute.xlu0 %2184
          %2188 = vset.pattern.permute.xlu0 0
          %2189 = vperm.xlu0 %2188, %v2150
          %v2190 = vpop.permute.xlu0 %2189
          %2193 = vset.pattern.permute.xlu0 0
          %2194 = vperm.xlu0 %2193, %v2151
          %v2195 = vpop.permute.xlu0 %2194
          %2198 = vset.pattern.permute.xlu0 0
          %2199 = vperm.xlu0 %2198, %v2152
          %v2200 = vpop.permute.xlu0 %2199
          %2203 = vset.pattern.permute.xlu0 0
          %2204 = vperm.xlu0 %2203, %v2153
          %v2205 = vpop.permute.xlu0 %2204
          %2208 = vset.pattern.permute.xlu0 0
          %2209 = vperm.xlu0 %2208, %v2154
          %v2210 = vpop.permute.xlu0 %2209
          %2213 = vset.pattern.permute.xlu0 0
          %2214 = vperm.xlu0 %2213, %v2155
          %v2215 = vpop.permute.xlu0 %2214
          %2218 = vset.pattern.permute.xlu0 0
          %2219 = vperm.xlu0 %2218, %v2156
          %v2220 = vpop.permute.xlu0 %2219
          %2223 = vset.pattern.permute.xlu0 0
          %2224 = vperm.xlu0 %2223, %v2157
          %v2225 = vpop.permute.xlu0 %2224
          %2228 = vset.pattern.permute.xlu0 0
          %2229 = vperm.xlu0 %2228, %v2158
          %v2230 = vpop.permute.xlu0 %2229
          %2233 = vset.pattern.permute.xlu0 0
          %2234 = vperm.xlu0 %2233, %v2159
          %v2235 = vpop.permute.xlu0 %2234
          %2238 = vset.pattern.permute.xlu0 0
          %2239 = vperm.xlu0 %2238, %v2160
          %v2240 = vpop.permute.xlu0 %2239
          %v2243 = vlaneseq
          %v2244 = vshrl.u32 %v2243, 7
          %v2245 = vsub.s32 0, %v2244
          %v2246 = vrot.slane %v2161, %v2245
          %v2248 = vmul.f32 %v2165, %v2246
          %v2249 = vmul.f32 %v2170, %v2246
          %v2250 = vmul.f32 %v2175, %v2246
          %v2251 = vmul.f32 %v2180, %v2246
          %v2252 = vmul.f32 %v2185, %v2246
          %v2253 = vmul.f32 %v2190, %v2246
          %v2254 = vmul.f32 %v2195, %v2246
          %v2255 = vmul.f32 %v2200, %v2246
          %v2256 = vmul.f32 %v2205, %v2246
          %v2257 = vmul.f32 %v2210, %v2246
          %v2258 = vmul.f32 %v2215, %v2246
          %v2259 = vmul.f32 %v2220, %v2246
          %v2260 = vmul.f32 %v2225, %v2246
          %v2261 = vmul.f32 %v2230, %v2246
          %v2262 = vmul.f32 %v2235, %v2246
          %v2263 = vmul.f32 %v2240, %v2246
          %v2264 = vlaneseq
          %v2265 = vshrl.u32 %v2264, 7
          %v2266 = vadd.s32 %v2265, 8
          %v2267 = vadd.s32 %v2265, 16
          %v2268 = vadd.s32 %v2265, 24
          %v2269 = vadd.s32 %v2265, 32
          %v2270 = vadd.s32 %v2265, 40
          %v2271 = vadd.s32 %v2265, 48
          %v2272 = vadd.s32 %v2265, 56
          %v2273 = vadd.s32 %v2265, 64
          %v2274 = vadd.s32 %v2265, 72
          %v2275 = vadd.s32 %v2265, 80
          %v2276 = vadd.s32 %v2265, 88
          %v2277 = vadd.s32 %v2265, 96
          %v2278 = vadd.s32 %v2265, 104
          %v2279 = vadd.s32 %v2265, 112
          %v2280 = vadd.s32 %v2265, 120
          %v2281 = vlaneseq
          %v2282 = vand.u32 %v2281, 127
          %vm2283 = vcmp.gt.s32.totalorder %v2265, %v2282
          %vm2284 = vcmp.gt.s32.totalorder %v2266, %v2282
          %vm2285 = vcmp.gt.s32.totalorder %v2267, %v2282
          %vm2286 = vcmp.gt.s32.totalorder %v2268, %v2282
          %vm2287 = vcmp.gt.s32.totalorder %v2269, %v2282
          %vm2288 = vcmp.gt.s32.totalorder %v2270, %v2282
          %vm2289 = vcmp.gt.s32.totalorder %v2271, %v2282
          %vm2290 = vcmp.gt.s32.totalorder %v2272, %v2282
          %vm2291 = vcmp.gt.s32.totalorder %v2273, %v2282
          %vm2292 = vcmp.gt.s32.totalorder %v2274, %v2282
          %vm2293 = vcmp.gt.s32.totalorder %v2275, %v2282
          %vm2294 = vcmp.gt.s32.totalorder %v2276, %v2282
          %vm2295 = vcmp.gt.s32.totalorder %v2277, %v2282
          %vm2296 = vcmp.gt.s32.totalorder %v2278, %v2282
          %vm2297 = vcmp.gt.s32.totalorder %v2279, %v2282
          %vm2298 = vcmp.gt.s32.totalorder %v2280, %v2282
          %v2299 = vsel %vm2283, 1e+12, 0.0
          %v2300 = vsel %vm2284, 1e+12, 0.0
          %v2301 = vsel %vm2285, 1e+12, 0.0
          %v2302 = vsel %vm2286, 1e+12, 0.0
          %v2303 = vsel %vm2287, 1e+12, 0.0
          %v2304 = vsel %vm2288, 1e+12, 0.0
          %v2305 = vsel %vm2289, 1e+12, 0.0
          %v2306 = vsel %vm2290, 1e+12, 0.0
          %v2307 = vsel %vm2291, 1e+12, 0.0
          %v2308 = vsel %vm2292, 1e+12, 0.0
          %v2309 = vsel %vm2293, 1e+12, 0.0
          %v2310 = vsel %vm2294, 1e+12, 0.0
          %v2311 = vsel %vm2295, 1e+12, 0.0
          %v2312 = vsel %vm2296, 1e+12, 0.0
          %v2313 = vsel %vm2297, 1e+12, 0.0
          %v2314 = vsel %vm2298, 1e+12, 0.0
          %2315 = vst [vmem:[#allocation3] sm:$0xff] %v2248
          %2316 = vst [vmem:[#allocation3 + $0x8] sm:$0xff] %v2249
          %2317 = vst [vmem:[#allocation3 + $0x10] sm:$0xff] %v2250
          %2318 = vst [vmem:[#allocation3 + $0x18] sm:$0xff] %v2251
          %2319 = vst [vmem:[#allocation3 + $0x20] sm:$0xff] %v2252
          %2320 = vst [vmem:[#allocation3 + $0x28] sm:$0xff] %v2253
          %2321 = vst [vmem:[#allocation3 + $0x30] sm:$0xff] %v2254
          %2322 = vst [vmem:[#allocation3 + $0x38] sm:$0xff] %v2255
          %2323 = vst [vmem:[#allocation3 + $0x40] sm:$0xff] %v2256
          %2324 = vst [vmem:[#allocation3 + $0x48] sm:$0xff] %v2257
          %2325 = vst [vmem:[#allocation3 + $0x50] sm:$0xff] %v2258
          %2326 = vst [vmem:[#allocation3 + $0x58] sm:$0xff] %v2259
          %2327 = vst [vmem:[#allocation3 + $0x60] sm:$0xff] %v2260
          %2328 = vst [vmem:[#allocation3 + $0x68] sm:$0xff] %v2261
          %2329 = vst [vmem:[#allocation3 + $0x70] sm:$0xff] %v2262
          %2330 = vst [vmem:[#allocation3 + $0x78] sm:$0xff] %v2263
          %v2331 = vmul.f32 %v2067, %v2248
          %v2332 = vmul.f32 %v2072, %v2249
          %v2333 = vmul.f32 %v2077, %v2250
          %v2334 = vmul.f32 %v2082, %v2251
          %v2335 = vmul.f32 %v2087, %v2252
          %v2336 = vmul.f32 %v2092, %v2253
          %v2337 = vmul.f32 %v2097, %v2254
          %v2338 = vmul.f32 %v2102, %v2255
          %v2339 = vmul.f32 %v2107, %v2256
          %v2340 = vmul.f32 %v2112, %v2257
          %v2341 = vmul.f32 %v2117, %v2258
          %v2342 = vmul.f32 %v2122, %v2259
          %v2343 = vmul.f32 %v2127, %v2260
          %v2344 = vmul.f32 %v2132, %v2261
          %v2345 = vmul.f32 %v2137, %v2262
          %v2346 = vmul.f32 %v2142, %v2263
          %v2347 = vsub.f32 %v2248, 1.0
          %v2348 = vsub.f32 %v2249, 1.0
          %v2349 = vsub.f32 %v2250, 1.0
          %v2350 = vsub.f32 %v2251, 1.0
          %v2351 = vsub.f32 %v2252, 1.0
          %v2352 = vsub.f32 %v2253, 1.0
          %v2353 = vsub.f32 %v2254, 1.0
          %v2354 = vsub.f32 %v2255, 1.0
          %v2355 = vsub.f32 %v2256, 1.0
          %v2356 = vsub.f32 %v2257, 1.0
          %v2357 = vsub.f32 %v2258, 1.0
          %v2358 = vsub.f32 %v2259, 1.0
          %v2359 = vsub.f32 %v2260, 1.0
          %v2360 = vsub.f32 %v2261, 1.0
          %v2361 = vsub.f32 %v2262, 1.0
          %v2362 = vsub.f32 %v2263, 1.0
          %v2363 = vmul.f32 %v2347, 1e+12
          %v2364 = vmul.f32 %v2348, 1e+12
          %v2365 = vmul.f32 %v2349, 1e+12
          %v2366 = vmul.f32 %v2350, 1e+12
          %v2367 = vmul.f32 %v2351, 1e+12
          %v2368 = vmul.f32 %v2352, 1e+12
          %v2369 = vmul.f32 %v2353, 1e+12
          %v2370 = vmul.f32 %v2354, 1e+12
          %v2371 = vmul.f32 %v2355, 1e+12
          %v2372 = vmul.f32 %v2356, 1e+12
          %v2373 = vmul.f32 %v2357, 1e+12
          %v2374 = vmul.f32 %v2358, 1e+12
          %v2375 = vmul.f32 %v2359, 1e+12
          %v2376 = vmul.f32 %v2360, 1e+12
          %v2377 = vmul.f32 %v2361, 1e+12
          %v2378 = vmul.f32 %v2362, 1e+12
          %v2379 = vadd.f32 %v2331, %v2363
          %v2380 = vadd.f32 %v2332, %v2364
          %v2381 = vadd.f32 %v2333, %v2365
          %v2382 = vadd.f32 %v2334, %v2366
          %v2383 = vadd.f32 %v2335, %v2367
          %v2384 = vadd.f32 %v2336, %v2368
          %v2385 = vadd.f32 %v2337, %v2369
          %v2386 = vadd.f32 %v2338, %v2370
          %v2387 = vadd.f32 %v2339, %v2371
          %v2388 = vadd.f32 %v2340, %v2372
          %v2389 = vadd.f32 %v2341, %v2373
          %v2390 = vadd.f32 %v2342, %v2374
          %v2391 = vadd.f32 %v2343, %v2375
          %v2392 = vadd.f32 %v2344, %v2376
          %v2393 = vadd.f32 %v2345, %v2377
          %v2394 = vadd.f32 %v2346, %v2378
          %v2395 = vsub.f32 %v2379, %v2299
          %v2396 = vsub.f32 %v2380, %v2300
          %v2397 = vsub.f32 %v2381, %v2301
          %v2398 = vsub.f32 %v2382, %v2302
          %v2399 = vsub.f32 %v2383, %v2303
          %v2400 = vsub.f32 %v2384, %v2304
          %v2401 = vsub.f32 %v2385, %v2305
          %v2402 = vsub.f32 %v2386, %v2306
          %v2403 = vsub.f32 %v2387, %v2307
          %v2404 = vsub.f32 %v2388, %v2308
          %v2405 = vsub.f32 %v2389, %v2309
          %v2406 = vsub.f32 %v2390, %v2310
          %v2407 = vsub.f32 %v2391, %v2311
          %v2408 = vsub.f32 %v2392, %v2312
          %v2409 = vsub.f32 %v2393, %v2313
          %v2410 = vsub.f32 %v2394, %v2314
          %2411 = vst [vmem:[#allocation2] sm:$0xff] %v2395
          %2412 = vst [vmem:[#allocation2 + $0x8] sm:$0xff] %v2396
          %2413 = vst [vmem:[#allocation2 + $0x10] sm:$0xff] %v2397
          %2414 = vst [vmem:[#allocation2 + $0x18] sm:$0xff] %v2398
          %2415 = vst [vmem:[#allocation2 + $0x20] sm:$0xff] %v2399
          %2416 = vst [vmem:[#allocation2 + $0x28] sm:$0xff] %v2400
          %2417 = vst [vmem:[#allocation2 + $0x30] sm:$0xff] %v2401
          %2418 = vst [vmem:[#allocation2 + $0x38] sm:$0xff] %v2402
          %2419 = vst [vmem:[#allocation2 + $0x40] sm:$0xff] %v2403
          %2420 = vst [vmem:[#allocation2 + $0x48] sm:$0xff] %v2404
          %2421 = vst [vmem:[#allocation2 + $0x50] sm:$0xff] %v2405
          %2422 = vst [vmem:[#allocation2 + $0x58] sm:$0xff] %v2406
          %2423 = vst [vmem:[#allocation2 + $0x60] sm:$0xff] %v2407
          %2424 = vst [vmem:[#allocation2 + $0x68] sm:$0xff] %v2408
          %2425 = vst [vmem:[#allocation2 + $0x70] sm:$0xff] %v2409
          %2426 = vst [vmem:[#allocation2 + $0x78] sm:$0xff] %v2410
        $region96: #{tpu_custom_call.1} parent=55 // pred_fallthru
          _
        %v2427 = vlaneseq
        %v2428 = vand.u32 %v2427, 127
        %s2429 = smul.u32 %s37, 4
        %s2430 = scalar_lea.vmem [#allocation4], %s2429
        %v2431 = vld [vmem:[%s2430] sm:$0x1]
        %v2432 = vstv %s2429
        %vm2433 = vcmp.eq.s32.totalorder %v2428, %v2432
        %v2434 = vld [vmem:[#allocation5] sm:$0xff]
        %v2435 = vld [vmem:[#allocation5 + $0x8] sm:$0xff]
        %v2436 = vld [vmem:[#allocation5 + $0x10] sm:$0xff]
        %v2437 = vld [vmem:[#allocation5 + $0x18] sm:$0xff]
        %v2438 = vld [vmem:[#allocation5 + $0x20] sm:$0xff]
        %v2439 = vld [vmem:[#allocation5 + $0x28] sm:$0xff]
        %v2440 = vld [vmem:[#allocation5 + $0x30] sm:$0xff]
        %v2441 = vld [vmem:[#allocation5 + $0x38] sm:$0xff]
        %v2442 = vld [vmem:[#allocation5 + $0x40] sm:$0xff]
        %v2443 = vld [vmem:[#allocation5 + $0x48] sm:$0xff]
        %v2444 = vld [vmem:[#allocation5 + $0x50] sm:$0xff]
        %v2445 = vld [vmem:[#allocation5 + $0x58] sm:$0xff]
        %v2446 = vld [vmem:[#allocation5 + $0x60] sm:$0xff]
        %v2447 = vld [vmem:[#allocation5 + $0x68] sm:$0xff]
        %v2448 = vld [vmem:[#allocation5 + $0x70] sm:$0xff]
        %v2449 = vld [vmem:[#allocation5 + $0x78] sm:$0xff]
        %v2450 = vsel %vm2433, %v2434, 0.0
        %v2451 = vsel %vm2433, %v2435, 0.0
        %v2452 = vsel %vm2433, %v2436, 0.0
        %v2453 = vsel %vm2433, %v2437, 0.0
        %v2454 = vsel %vm2433, %v2438, 0.0
        %v2455 = vsel %vm2433, %v2439, 0.0
        %v2456 = vsel %vm2433, %v2440, 0.0
        %v2457 = vsel %vm2433, %v2441, 0.0
        %v2458 = vsel %vm2433, %v2442, 0.0
        %v2459 = vsel %vm2433, %v2443, 0.0
        %v2460 = vsel %vm2433, %v2444, 0.0
        %v2461 = vsel %vm2433, %v2445, 0.0
        %v2462 = vsel %vm2433, %v2446, 0.0
        %v2463 = vsel %vm2433, %v2447, 0.0
        %v2464 = vsel %vm2433, %v2448, 0.0
        %v2465 = vsel %vm2433, %v2449, 0.0
        %vm2466 = vcmask 31744
        %v2467 = vsel %vm2466, %v2450, 0.0
        %2468 = vadd.xlane.f32.xlu0 %v2467
        %v2469 = vpop.xlane.xlu0 %2468
        %v2470 = vsel %vm2466, %v2451, 0.0
        %2471 = vadd.xlane.f32.xlu0 %v2470
        %v2472 = vpop.xlane.xlu0 %2471
        %v2473 = vsel %vm2466, %v2452, 0.0
        %2474 = vadd.xlane.f32.xlu0 %v2473
        %v2475 = vpop.xlane.xlu0 %2474
        %v2476 = vsel %vm2466, %v2453, 0.0
        %2477 = vadd.xlane.f32.xlu0 %v2476
        %v2478 = vpop.xlane.xlu0 %2477
        %v2479 = vsel %vm2466, %v2454, 0.0
        %2480 = vadd.xlane.f32.xlu0 %v2479
        %v2481 = vpop.xlane.xlu0 %2480
        %v2482 = vsel %vm2466, %v2455, 0.0
        %2483 = vadd.xlane.f32.xlu0 %v2482
        %v2484 = vpop.xlane.xlu0 %2483
        %v2485 = vsel %vm2466, %v2456, 0.0
        %2486 = vadd.xlane.f32.xlu0 %v2485
        %v2487 = vpop.xlane.xlu0 %2486
        %v2488 = vsel %vm2466, %v2457, 0.0
        %2489 = vadd.xlane.f32.xlu0 %v2488
        %v2490 = vpop.xlane.xlu0 %2489
        %v2491 = vsel %vm2466, %v2458, 0.0
        %2492 = vadd.xlane.f32.xlu0 %v2491
        %v2493 = vpop.xlane.xlu0 %2492
        %v2494 = vsel %vm2466, %v2459, 0.0
        %2495 = vadd.xlane.f32.xlu0 %v2494
        %v2496 = vpop.xlane.xlu0 %2495
        %v2497 = vsel %vm2466, %v2460, 0.0
        %2498 = vadd.xlane.f32.xlu0 %v2497
        %v2499 = vpop.xlane.xlu0 %2498
        %v2500 = vsel %vm2466, %v2461, 0.0
        %2501 = vadd.xlane.f32.xlu0 %v2500
        %v2502 = vpop.xlane.xlu0 %2501
        %v2503 = vsel %vm2466, %v2462, 0.0
        %2504 = vadd.xlane.f32.xlu0 %v2503
        %v2505 = vpop.xlane.xlu0 %2504
        %v2506 = vsel %vm2466, %v2463, 0.0
        %2507 = vadd.xlane.f32.xlu0 %v2506
        %v2508 = vpop.xlane.xlu0 %2507
        %v2509 = vsel %vm2466, %v2464, 0.0
        %2510 = vadd.xlane.f32.xlu0 %v2509
        %v2511 = vpop.xlane.xlu0 %2510
        %v2512 = vsel %vm2466, %v2465, 0.0
        %2513 = vadd.xlane.f32.xlu0 %v2512
        %v2514 = vpop.xlane.xlu0 %2513
        %v2515 = vlaneseq
        %v2516 = vshrl.u32 %v2515, 7
        %v2517 = vsub.s32 0, %v2516
        %v2518 = vrot.slane %v2431, %v2517
        %v2519 = vadd.f32 %v2518, %v2469
        %v2520 = vadd.f32 %v2518, %v2472
        %v2521 = vadd.f32 %v2518, %v2475
        %v2522 = vadd.f32 %v2518, %v2478
        %v2523 = vadd.f32 %v2518, %v2481
        %v2524 = vadd.f32 %v2518, %v2484
        %v2525 = vadd.f32 %v2518, %v2487
        %v2526 = vadd.f32 %v2518, %v2490
        %v2527 = vadd.f32 %v2518, %v2493
        %v2528 = vadd.f32 %v2518, %v2496
        %v2529 = vadd.f32 %v2518, %v2499
        %v2530 = vadd.f32 %v2518, %v2502
        %v2531 = vadd.f32 %v2518, %v2505
        %v2532 = vadd.f32 %v2518, %v2508
        %v2533 = vadd.f32 %v2518, %v2511
        %v2534 = vadd.f32 %v2518, %v2514
        %v2535 = vld [vmem:[#allocation3] sm:$0xff]
        %v2536 = vld [vmem:[#allocation3 + $0x8] sm:$0xff]
        %v2537 = vld [vmem:[#allocation3 + $0x10] sm:$0xff]
        %v2538 = vld [vmem:[#allocation3 + $0x18] sm:$0xff]
        %v2539 = vld [vmem:[#allocation3 + $0x20] sm:$0xff]
        %v2540 = vld [vmem:[#allocation3 + $0x28] sm:$0xff]
        %v2541 = vld [vmem:[#allocation3 + $0x30] sm:$0xff]
        %v2542 = vld [vmem:[#allocation3 + $0x38] sm:$0xff]
        %v2543 = vld [vmem:[#allocation3 + $0x40] sm:$0xff]
        %v2544 = vld [vmem:[#allocation3 + $0x48] sm:$0xff]
        %v2545 = vld [vmem:[#allocation3 + $0x50] sm:$0xff]
        %v2546 = vld [vmem:[#allocation3 + $0x58] sm:$0xff]
        %v2547 = vld [vmem:[#allocation3 + $0x60] sm:$0xff]
        %v2548 = vld [vmem:[#allocation3 + $0x68] sm:$0xff]
        %v2549 = vld [vmem:[#allocation3 + $0x70] sm:$0xff]
        %v2550 = vld [vmem:[#allocation3 + $0x78] sm:$0xff]
        %v2551 = vmul.f32 %v2519, %v2535
        %v2552 = vmul.f32 %v2520, %v2536
        %v2553 = vmul.f32 %v2521, %v2537
        %v2554 = vmul.f32 %v2522, %v2538
        %v2555 = vmul.f32 %v2523, %v2539
        %v2556 = vmul.f32 %v2524, %v2540
        %v2557 = vmul.f32 %v2525, %v2541
        %v2558 = vmul.f32 %v2526, %v2542
        %v2559 = vmul.f32 %v2527, %v2543
        %v2560 = vmul.f32 %v2528, %v2544
        %v2561 = vmul.f32 %v2529, %v2545
        %v2562 = vmul.f32 %v2530, %v2546
        %v2563 = vmul.f32 %v2531, %v2547
        %v2564 = vmul.f32 %v2532, %v2548
        %v2565 = vmul.f32 %v2533, %v2549
        %v2566 = vmul.f32 %v2534, %v2550
        %v2567 = vld [vmem:[#allocation2] sm:$0xff]
        %v2568 = vld [vmem:[#allocation2 + $0x8] sm:$0xff]
        %v2569 = vld [vmem:[#allocation2 + $0x10] sm:$0xff]
        %v2570 = vld [vmem:[#allocation2 + $0x18] sm:$0xff]
        %v2571 = vld [vmem:[#allocation2 + $0x20] sm:$0xff]
        %v2572 = vld [vmem:[#allocation2 + $0x28] sm:$0xff]
        %v2573 = vld [vmem:[#allocation2 + $0x30] sm:$0xff]
        %v2574 = vld [vmem:[#allocation2 + $0x38] sm:$0xff]
        %v2575 = vld [vmem:[#allocation2 + $0x40] sm:$0xff]
        %v2576 = vld [vmem:[#allocation2 + $0x48] sm:$0xff]
        %v2577 = vld [vmem:[#allocation2 + $0x50] sm:$0xff]
        %v2578 = vld [vmem:[#allocation2 + $0x58] sm:$0xff]
        %v2579 = vld [vmem:[#allocation2 + $0x60] sm:$0xff]
        %v2580 = vld [vmem:[#allocation2 + $0x68] sm:$0xff]
        %v2581 = vld [vmem:[#allocation2 + $0x70] sm:$0xff]
        %v2582 = vld [vmem:[#allocation2 + $0x78] sm:$0xff]
        %v2583 = vadd.f32 %v2551, %v2567
        %v2584 = vadd.f32 %v2552, %v2568
        %v2585 = vadd.f32 %v2553, %v2569
        %v2586 = vadd.f32 %v2554, %v2570
        %v2587 = vadd.f32 %v2555, %v2571
        %v2588 = vadd.f32 %v2556, %v2572
        %v2589 = vadd.f32 %v2557, %v2573
        %v2590 = vadd.f32 %v2558, %v2574
        %v2591 = vadd.f32 %v2559, %v2575
        %v2592 = vadd.f32 %v2560, %v2576
        %v2593 = vadd.f32 %v2561, %v2577
        %v2594 = vadd.f32 %v2562, %v2578
        %v2595 = vadd.f32 %v2563, %v2579
        %v2596 = vadd.f32 %v2564, %v2580
        %v2597 = vadd.f32 %v2565, %v2581
        %v2598 = vadd.f32 %v2566, %v2582
        %2599 = vst [vmem:[%s518] sm:$0xff] %v2583
        %2600 = vst [vmem:[%s518 + $0x8] sm:$0xff] %v2584
        %2601 = vst [vmem:[%s518 + $0x10] sm:$0xff] %v2585
        %2602 = vst [vmem:[%s518 + $0x18] sm:$0xff] %v2586
        %2603 = vst [vmem:[%s518 + $0x20] sm:$0xff] %v2587
        %2604 = vst [vmem:[%s518 + $0x28] sm:$0xff] %v2588
        %2605 = vst [vmem:[%s518 + $0x30] sm:$0xff] %v2589
        %2606 = vst [vmem:[%s518 + $0x38] sm:$0xff] %v2590
        %2607 = vst [vmem:[%s518 + $0x40] sm:$0xff] %v2591
        %2608 = vst [vmem:[%s518 + $0x48] sm:$0xff] %v2592
        %2609 = vst [vmem:[%s518 + $0x50] sm:$0xff] %v2593
        %2610 = vst [vmem:[%s518 + $0x58] sm:$0xff] %v2594
        %2611 = vst [vmem:[%s518 + $0x60] sm:$0xff] %v2595
        %2612 = vst [vmem:[%s518 + $0x68] sm:$0xff] %v2596
        %2613 = vst [vmem:[%s518 + $0x70] sm:$0xff] %v2597
        %2614 = vst [vmem:[%s518 + $0x78] sm:$0xff] %v2598
        %s2615 = sadd.s32 %s2429, 1
        %s2616 = scalar_lea.vmem [#allocation4], %s2615
        %v2617 = vld [vmem:[%s2616] sm:$0x1]
        %v2618 = vstv %s2615
        %vm2619 = vcmp.eq.s32.totalorder %v2428, %v2618
        %v2620 = vld [vmem:[#allocation5] sm:$0xff]
        %v2621 = vld [vmem:[#allocation5 + $0x8] sm:$0xff]
        %v2622 = vld [vmem:[#allocation5 + $0x10] sm:$0xff]
        %v2623 = vld [vmem:[#allocation5 + $0x18] sm:$0xff]
        %v2624 = vld [vmem:[#allocation5 + $0x20] sm:$0xff]
        %v2625 = vld [vmem:[#allocation5 + $0x28] sm:$0xff]
        %v2626 = vld [vmem:[#allocation5 + $0x30] sm:$0xff]
        %v2627 = vld [vmem:[#allocation5 + $0x38] sm:$0xff]
        %v2628 = vld [vmem:[#allocation5 + $0x40] sm:$0xff]
        %v2629 = vld [vmem:[#allocation5 + $0x48] sm:$0xff]
        %v2630 = vld [vmem:[#allocation5 + $0x50] sm:$0xff]
        %v2631 = vld [vmem:[#allocation5 + $0x58] sm:$0xff]
        %v2632 = vld [vmem:[#allocation5 + $0x60] sm:$0xff]
        %v2633 = vld [vmem:[#allocation5 + $0x68] sm:$0xff]
        %v2634 = vld [vmem:[#allocation5 + $0x70] sm:$0xff]
        %v2635 = vld [vmem:[#allocation5 + $0x78] sm:$0xff]
        %v2636 = vsel %vm2619, %v2620, 0.0
        %v2637 = vsel %vm2619, %v2621, 0.0
        %v2638 = vsel %vm2619, %v2622, 0.0
        %v2639 = vsel %vm2619, %v2623, 0.0
        %v2640 = vsel %vm2619, %v2624, 0.0
        %v2641 = vsel %vm2619, %v2625, 0.0
        %v2642 = vsel %vm2619, %v2626, 0.0
        %v2643 = vsel %vm2619, %v2627, 0.0
        %v2644 = vsel %vm2619, %v2628, 0.0
        %v2645 = vsel %vm2619, %v2629, 0.0
        %v2646 = vsel %vm2619, %v2630, 0.0
        %v2647 = vsel %vm2619, %v2631, 0.0
        %v2648 = vsel %vm2619, %v2632, 0.0
        %v2649 = vsel %vm2619, %v2633, 0.0
        %v2650 = vsel %vm2619, %v2634, 0.0
        %v2651 = vsel %vm2619, %v2635, 0.0
        %v2652 = vsel %vm2466, %v2636, 0.0
        %2653 = vadd.xlane.f32.xlu0 %v2652
        %v2654 = vpop.xlane.xlu0 %2653
        %v2655 = vsel %vm2466, %v2637, 0.0
        %2656 = vadd.xlane.f32.xlu0 %v2655
        %v2657 = vpop.xlane.xlu0 %2656
        %v2658 = vsel %vm2466, %v2638, 0.0
        %2659 = vadd.xlane.f32.xlu0 %v2658
        %v2660 = vpop.xlane.xlu0 %2659
        %v2661 = vsel %vm2466, %v2639, 0.0
        %2662 = vadd.xlane.f32.xlu0 %v2661
        %v2663 = vpop.xlane.xlu0 %2662
        %v2664 = vsel %vm2466, %v2640, 0.0
        %2665 = vadd.xlane.f32.xlu0 %v2664
        %v2666 = vpop.xlane.xlu0 %2665
        %v2667 = vsel %vm2466, %v2641, 0.0
        %2668 = vadd.xlane.f32.xlu0 %v2667
        %v2669 = vpop.xlane.xlu0 %2668
        %v2670 = vsel %vm2466, %v2642, 0.0
        %2671 = vadd.xlane.f32.xlu0 %v2670
        %v2672 = vpop.xlane.xlu0 %2671
        %v2673 = vsel %vm2466, %v2643, 0.0
        %2674 = vadd.xlane.f32.xlu0 %v2673
        %v2675 = vpop.xlane.xlu0 %2674
        %v2676 = vsel %vm2466, %v2644, 0.0
        %2677 = vadd.xlane.f32.xlu0 %v2676
        %v2678 = vpop.xlane.xlu0 %2677
        %v2679 = vsel %vm2466, %v2645, 0.0
        %2680 = vadd.xlane.f32.xlu0 %v2679
        %v2681 = vpop.xlane.xlu0 %2680
        %v2682 = vsel %vm2466, %v2646, 0.0
        %2683 = vadd.xlane.f32.xlu0 %v2682
        %v2684 = vpop.xlane.xlu0 %2683
        %v2685 = vsel %vm2466, %v2647, 0.0
        %2686 = vadd.xlane.f32.xlu0 %v2685
        %v2687 = vpop.xlane.xlu0 %2686
        %v2688 = vsel %vm2466, %v2648, 0.0
        %2689 = vadd.xlane.f32.xlu0 %v2688
        %v2690 = vpop.xlane.xlu0 %2689
        %v2691 = vsel %vm2466, %v2649, 0.0
        %2692 = vadd.xlane.f32.xlu0 %v2691
        %v2693 = vpop.xlane.xlu0 %2692
        %v2694 = vsel %vm2466, %v2650, 0.0
        %2695 = vadd.xlane.f32.xlu0 %v2694
        %v2696 = vpop.xlane.xlu0 %2695
        %v2697 = vsel %vm2466, %v2651, 0.0
        %2698 = vadd.xlane.f32.xlu0 %v2697
        %v2699 = vpop.xlane.xlu0 %2698
        %v2700 = vlaneseq
        %v2701 = vshrl.u32 %v2700, 7
        %v2702 = vsub.s32 0, %v2701
        %v2703 = vrot.slane %v2617, %v2702
        %v2704 = vadd.f32 %v2703, %v2654
        %v2705 = vadd.f32 %v2703, %v2657
        %v2706 = vadd.f32 %v2703, %v2660
        %v2707 = vadd.f32 %v2703, %v2663
        %v2708 = vadd.f32 %v2703, %v2666
        %v2709 = vadd.f32 %v2703, %v2669
        %v2710 = vadd.f32 %v2703, %v2672
        %v2711 = vadd.f32 %v2703, %v2675
        %v2712 = vadd.f32 %v2703, %v2678
        %v2713 = vadd.f32 %v2703, %v2681
        %v2714 = vadd.f32 %v2703, %v2684
        %v2715 = vadd.f32 %v2703, %v2687
        %v2716 = vadd.f32 %v2703, %v2690
        %v2717 = vadd.f32 %v2703, %v2693
        %v2718 = vadd.f32 %v2703, %v2696
        %v2719 = vadd.f32 %v2703, %v2699
        %v2720 = vld [vmem:[#allocation3] sm:$0xff]
        %v2721 = vld [vmem:[#allocation3 + $0x8] sm:$0xff]
        %v2722 = vld [vmem:[#allocation3 + $0x10] sm:$0xff]
        %v2723 = vld [vmem:[#allocation3 + $0x18] sm:$0xff]
        %v2724 = vld [vmem:[#allocation3 + $0x20] sm:$0xff]
        %v2725 = vld [vmem:[#allocation3 + $0x28] sm:$0xff]
        %v2726 = vld [vmem:[#allocation3 + $0x30] sm:$0xff]
        %v2727 = vld [vmem:[#allocation3 + $0x38] sm:$0xff]
        %v2728 = vld [vmem:[#allocation3 + $0x40] sm:$0xff]
        %v2729 = vld [vmem:[#allocation3 + $0x48] sm:$0xff]
        %v2730 = vld [vmem:[#allocation3 + $0x50] sm:$0xff]
        %v2731 = vld [vmem:[#allocation3 + $0x58] sm:$0xff]
        %v2732 = vld [vmem:[#allocation3 + $0x60] sm:$0xff]
        %v2733 = vld [vmem:[#allocation3 + $0x68] sm:$0xff]
        %v2734 = vld [vmem:[#allocation3 + $0x70] sm:$0xff]
        %v2735 = vld [vmem:[#allocation3 + $0x78] sm:$0xff]
        %v2736 = vmul.f32 %v2704, %v2720
        %v2737 = vmul.f32 %v2705, %v2721
        %v2738 = vmul.f32 %v2706, %v2722
        %v2739 = vmul.f32 %v2707, %v2723
        %v2740 = vmul.f32 %v2708, %v2724
        %v2741 = vmul.f32 %v2709, %v2725
        %v2742 = vmul.f32 %v2710, %v2726
        %v2743 = vmul.f32 %v2711, %v2727
        %v2744 = vmul.f32 %v2712, %v2728
        %v2745 = vmul.f32 %v2713, %v2729
        %v2746 = vmul.f32 %v2714, %v2730
        %v2747 = vmul.f32 %v2715, %v2731
        %v2748 = vmul.f32 %v2716, %v2732
        %v2749 = vmul.f32 %v2717, %v2733
        %v2750 = vmul.f32 %v2718, %v2734
        %v2751 = vmul.f32 %v2719, %v2735
        %v2752 = vld [vmem:[#allocation2] sm:$0xff]
        %v2753 = vld [vmem:[#allocation2 + $0x8] sm:$0xff]
        %v2754 = vld [vmem:[#allocation2 + $0x10] sm:$0xff]
        %v2755 = vld [vmem:[#allocation2 + $0x18] sm:$0xff]
        %v2756 = vld [vmem:[#allocation2 + $0x20] sm:$0xff]
        %v2757 = vld [vmem:[#allocation2 + $0x28] sm:$0xff]
        %v2758 = vld [vmem:[#allocation2 + $0x30] sm:$0xff]
        %v2759 = vld [vmem:[#allocation2 + $0x38] sm:$0xff]
        %v2760 = vld [vmem:[#allocation2 + $0x40] sm:$0xff]
        %v2761 = vld [vmem:[#allocation2 + $0x48] sm:$0xff]
        %v2762 = vld [vmem:[#allocation2 + $0x50] sm:$0xff]
        %v2763 = vld [vmem:[#allocation2 + $0x58] sm:$0xff]
        %v2764 = vld [vmem:[#allocation2 + $0x60] sm:$0xff]
        %v2765 = vld [vmem:[#allocation2 + $0x68] sm:$0xff]
        %v2766 = vld [vmem:[#allocation2 + $0x70] sm:$0xff]
        %v2767 = vld [vmem:[#allocation2 + $0x78] sm:$0xff]
        %v2768 = vadd.f32 %v2736, %v2752
        %v2769 = vadd.f32 %v2737, %v2753
        %v2770 = vadd.f32 %v2738, %v2754
        %v2771 = vadd.f32 %v2739, %v2755
        %v2772 = vadd.f32 %v2740, %v2756
        %v2773 = vadd.f32 %v2741, %v2757
        %v2774 = vadd.f32 %v2742, %v2758
        %v2775 = vadd.f32 %v2743, %v2759
        %v2776 = vadd.f32 %v2744, %v2760
        %v2777 = vadd.f32 %v2745, %v2761
        %v2778 = vadd.f32 %v2746, %v2762
        %v2779 = vadd.f32 %v2747, %v2763
        %v2780 = vadd.f32 %v2748, %v2764
        %v2781 = vadd.f32 %v2749, %v2765
        %v2782 = vadd.f32 %v2750, %v2766
        %v2783 = vadd.f32 %v2751, %v2767
        %s2784 = scalar_lea.vmem %s518, 128 [#allocation21]
        %2785 = vst [vmem:[%s2784] sm:$0xff] %v2768
        %2786 = vst [vmem:[%s2784 + $0x8] sm:$0xff] %v2769
        %2787 = vst [vmem:[%s2784 + $0x10] sm:$0xff] %v2770
        %2788 = vst [vmem:[%s2784 + $0x18] sm:$0xff] %v2771
        %2789 = vst [vmem:[%s2784 + $0x20] sm:$0xff] %v2772
        %2790 = vst [vmem:[%s2784 + $0x28] sm:$0xff] %v2773
        %2791 = vst [vmem:[%s2784 + $0x30] sm:$0xff] %v2774
        %2792 = vst [vmem:[%s2784 + $0x38] sm:$0xff] %v2775
        %2793 = vst [vmem:[%s2784 + $0x40] sm:$0xff] %v2776
        %2794 = vst [vmem:[%s2784 + $0x48] sm:$0xff] %v2777
        %2795 = vst [vmem:[%s2784 + $0x50] sm:$0xff] %v2778
        %2796 = vst [vmem:[%s2784 + $0x58] sm:$0xff] %v2779
        %2797 = vst [vmem:[%s2784 + $0x60] sm:$0xff] %v2780
        %2798 = vst [vmem:[%s2784 + $0x68] sm:$0xff] %v2781
        %2799 = vst [vmem:[%s2784 + $0x70] sm:$0xff] %v2782
        %2800 = vst [vmem:[%s2784 + $0x78] sm:$0xff] %v2783
        %s2801 = sadd.s32 %s2429, 2
        %s2802 = scalar_lea.vmem [#allocation4], %s2801
        %v2803 = vld [vmem:[%s2802] sm:$0x1]
        %v2804 = vstv %s2801
        %vm2805 = vcmp.eq.s32.totalorder %v2428, %v2804
        %v2806 = vld [vmem:[#allocation5] sm:$0xff]
        %v2807 = vld [vmem:[#allocation5 + $0x8] sm:$0xff]
        %v2808 = vld [vmem:[#allocation5 + $0x10] sm:$0xff]
        %v2809 = vld [vmem:[#allocation5 + $0x18] sm:$0xff]
        %v2810 = vld [vmem:[#allocation5 + $0x20] sm:$0xff]
        %v2811 = vld [vmem:[#allocation5 + $0x28] sm:$0xff]
        %v2812 = vld [vmem:[#allocation5 + $0x30] sm:$0xff]
        %v2813 = vld [vmem:[#allocation5 + $0x38] sm:$0xff]
        %v2814 = vld [vmem:[#allocation5 + $0x40] sm:$0xff]
        %v2815 = vld [vmem:[#allocation5 + $0x48] sm:$0xff]
        %v2816 = vld [vmem:[#allocation5 + $0x50] sm:$0xff]
        %v2817 = vld [vmem:[#allocation5 + $0x58] sm:$0xff]
        %v2818 = vld [vmem:[#allocation5 + $0x60] sm:$0xff]
        %v2819 = vld [vmem:[#allocation5 + $0x68] sm:$0xff]
        %v2820 = vld [vmem:[#allocation5 + $0x70] sm:$0xff]
        %v2821 = vld [vmem:[#allocation5 + $0x78] sm:$0xff]
        %v2822 = vsel %vm2805, %v2806, 0.0
        %v2823 = vsel %vm2805, %v2807, 0.0
        %v2824 = vsel %vm2805, %v2808, 0.0
        %v2825 = vsel %vm2805, %v2809, 0.0
        %v2826 = vsel %vm2805, %v2810, 0.0
        %v2827 = vsel %vm2805, %v2811, 0.0
        %v2828 = vsel %vm2805, %v2812, 0.0
        %v2829 = vsel %vm2805, %v2813, 0.0
        %v2830 = vsel %vm2805, %v2814, 0.0
        %v2831 = vsel %vm2805, %v2815, 0.0
        %v2832 = vsel %vm2805, %v2816, 0.0
        %v2833 = vsel %vm2805, %v2817, 0.0
        %v2834 = vsel %vm2805, %v2818, 0.0
        %v2835 = vsel %vm2805, %v2819, 0.0
        %v2836 = vsel %vm2805, %v2820, 0.0
        %v2837 = vsel %vm2805, %v2821, 0.0
        %v2838 = vsel %vm2466, %v2822, 0.0
        %2839 = vadd.xlane.f32.xlu0 %v2838
        %v2840 = vpop.xlane.xlu0 %2839
        %v2841 = vsel %vm2466, %v2823, 0.0
        %2842 = vadd.xlane.f32.xlu0 %v2841
        %v2843 = vpop.xlane.xlu0 %2842
        %v2844 = vsel %vm2466, %v2824, 0.0
        %2845 = vadd.xlane.f32.xlu0 %v2844
        %v2846 = vpop.xlane.xlu0 %2845
        %v2847 = vsel %vm2466, %v2825, 0.0
        %2848 = vadd.xlane.f32.xlu0 %v2847
        %v2849 = vpop.xlane.xlu0 %2848
        %v2850 = vsel %vm2466, %v2826, 0.0
        %2851 = vadd.xlane.f32.xlu0 %v2850
        %v2852 = vpop.xlane.xlu0 %2851
        %v2853 = vsel %vm2466, %v2827, 0.0
        %2854 = vadd.xlane.f32.xlu0 %v2853
        %v2855 = vpop.xlane.xlu0 %2854
        %v2856 = vsel %vm2466, %v2828, 0.0
        %2857 = vadd.xlane.f32.xlu0 %v2856
        %v2858 = vpop.xlane.xlu0 %2857
        %v2859 = vsel %vm2466, %v2829, 0.0
        %2860 = vadd.xlane.f32.xlu0 %v2859
        %v2861 = vpop.xlane.xlu0 %2860
        %v2862 = vsel %vm2466, %v2830, 0.0
        %2863 = vadd.xlane.f32.xlu0 %v2862
        %v2864 = vpop.xlane.xlu0 %2863
        %v2865 = vsel %vm2466, %v2831, 0.0
        %2866 = vadd.xlane.f32.xlu0 %v2865
        %v2867 = vpop.xlane.xlu0 %2866
        %v2868 = vsel %vm2466, %v2832, 0.0
        %2869 = vadd.xlane.f32.xlu0 %v2868
        %v2870 = vpop.xlane.xlu0 %2869
        %v2871 = vsel %vm2466, %v2833, 0.0
        %2872 = vadd.xlane.f32.xlu0 %v2871
        %v2873 = vpop.xlane.xlu0 %2872
        %v2874 = vsel %vm2466, %v2834, 0.0
        %2875 = vadd.xlane.f32.xlu0 %v2874
        %v2876 = vpop.xlane.xlu0 %2875
        %v2877 = vsel %vm2466, %v2835, 0.0
        %2878 = vadd.xlane.f32.xlu0 %v2877
        %v2879 = vpop.xlane.xlu0 %2878
        %v2880 = vsel %vm2466, %v2836, 0.0
        %2881 = vadd.xlane.f32.xlu0 %v2880
        %v2882 = vpop.xlane.xlu0 %2881
        %v2883 = vsel %vm2466, %v2837, 0.0
        %2884 = vadd.xlane.f32.xlu0 %v2883
        %v2885 = vpop.xlane.xlu0 %2884
        %v2886 = vlaneseq
        %v2887 = vshrl.u32 %v2886, 7
        %v2888 = vsub.s32 0, %v2887
        %v2889 = vrot.slane %v2803, %v2888
        %v2890 = vadd.f32 %v2889, %v2840
        %v2891 = vadd.f32 %v2889, %v2843
        %v2892 = vadd.f32 %v2889, %v2846
        %v2893 = vadd.f32 %v2889, %v2849
        %v2894 = vadd.f32 %v2889, %v2852
        %v2895 = vadd.f32 %v2889, %v2855
        %v2896 = vadd.f32 %v2889, %v2858
        %v2897 = vadd.f32 %v2889, %v2861
        %v2898 = vadd.f32 %v2889, %v2864
        %v2899 = vadd.f32 %v2889, %v2867
        %v2900 = vadd.f32 %v2889, %v2870
        %v2901 = vadd.f32 %v2889, %v2873
        %v2902 = vadd.f32 %v2889, %v2876
        %v2903 = vadd.f32 %v2889, %v2879
        %v2904 = vadd.f32 %v2889, %v2882
        %v2905 = vadd.f32 %v2889, %v2885
        %v2906 = vld [vmem:[#allocation3] sm:$0xff]
        %v2907 = vld [vmem:[#allocation3 + $0x8] sm:$0xff]
        %v2908 = vld [vmem:[#allocation3 + $0x10] sm:$0xff]
        %v2909 = vld [vmem:[#allocation3 + $0x18] sm:$0xff]
        %v2910 = vld [vmem:[#allocation3 + $0x20] sm:$0xff]
        %v2911 = vld [vmem:[#allocation3 + $0x28] sm:$0xff]
        %v2912 = vld [vmem:[#allocation3 + $0x30] sm:$0xff]
        %v2913 = vld [vmem:[#allocation3 + $0x38] sm:$0xff]
        %v2914 = vld [vmem:[#allocation3 + $0x40] sm:$0xff]
        %v2915 = vld [vmem:[#allocation3 + $0x48] sm:$0xff]
        %v2916 = vld [vmem:[#allocation3 + $0x50] sm:$0xff]
        %v2917 = vld [vmem:[#allocation3 + $0x58] sm:$0xff]
        %v2918 = vld [vmem:[#allocation3 + $0x60] sm:$0xff]
        %v2919 = vld [vmem:[#allocation3 + $0x68] sm:$0xff]
        %v2920 = vld [vmem:[#allocation3 + $0x70] sm:$0xff]
        %v2921 = vld [vmem:[#allocation3 + $0x78] sm:$0xff]
        %v2922 = vmul.f32 %v2890, %v2906
        %v2923 = vmul.f32 %v2891, %v2907
        %v2924 = vmul.f32 %v2892, %v2908
        %v2925 = vmul.f32 %v2893, %v2909
        %v2926 = vmul.f32 %v2894, %v2910
        %v2927 = vmul.f32 %v2895, %v2911
        %v2928 = vmul.f32 %v2896, %v2912
        %v2929 = vmul.f32 %v2897, %v2913
        %v2930 = vmul.f32 %v2898, %v2914
        %v2931 = vmul.f32 %v2899, %v2915
        %v2932 = vmul.f32 %v2900, %v2916
        %v2933 = vmul.f32 %v2901, %v2917
        %v2934 = vmul.f32 %v2902, %v2918
        %v2935 = vmul.f32 %v2903, %v2919
        %v2936 = vmul.f32 %v2904, %v2920
        %v2937 = vmul.f32 %v2905, %v2921
        %v2938 = vld [vmem:[#allocation2] sm:$0xff]
        %v2939 = vld [vmem:[#allocation2 + $0x8] sm:$0xff]
        %v2940 = vld [vmem:[#allocation2 + $0x10] sm:$0xff]
        %v2941 = vld [vmem:[#allocation2 + $0x18] sm:$0xff]
        %v2942 = vld [vmem:[#allocation2 + $0x20] sm:$0xff]
        %v2943 = vld [vmem:[#allocation2 + $0x28] sm:$0xff]
        %v2944 = vld [vmem:[#allocation2 + $0x30] sm:$0xff]
        %v2945 = vld [vmem:[#allocation2 + $0x38] sm:$0xff]
        %v2946 = vld [vmem:[#allocation2 + $0x40] sm:$0xff]
        %v2947 = vld [vmem:[#allocation2 + $0x48] sm:$0xff]
        %v2948 = vld [vmem:[#allocation2 + $0x50] sm:$0xff]
        %v2949 = vld [vmem:[#allocation2 + $0x58] sm:$0xff]
        %v2950 = vld [vmem:[#allocation2 + $0x60] sm:$0xff]
        %v2951 = vld [vmem:[#allocation2 + $0x68] sm:$0xff]
        %v2952 = vld [vmem:[#allocation2 + $0x70] sm:$0xff]
        %v2953 = vld [vmem:[#allocation2 + $0x78] sm:$0xff]
        %v2954 = vadd.f32 %v2922, %v2938
        %v2955 = vadd.f32 %v2923, %v2939
        %v2956 = vadd.f32 %v2924, %v2940
        %v2957 = vadd.f32 %v2925, %v2941
        %v2958 = vadd.f32 %v2926, %v2942
        %v2959 = vadd.f32 %v2927, %v2943
        %v2960 = vadd.f32 %v2928, %v2944
        %v2961 = vadd.f32 %v2929, %v2945
        %v2962 = vadd.f32 %v2930, %v2946
        %v2963 = vadd.f32 %v2931, %v2947
        %v2964 = vadd.f32 %v2932, %v2948
        %v2965 = vadd.f32 %v2933, %v2949
        %v2966 = vadd.f32 %v2934, %v2950
        %v2967 = vadd.f32 %v2935, %v2951
        %v2968 = vadd.f32 %v2936, %v2952
        %v2969 = vadd.f32 %v2937, %v2953
        %s2970 = scalar_lea.vmem %s518, 256 [#allocation21]
        %2971 = vst [vmem:[%s2970] sm:$0xff] %v2954
        %2972 = vst [vmem:[%s2970 + $0x8] sm:$0xff] %v2955
        %2973 = vst [vmem:[%s2970 + $0x10] sm:$0xff] %v2956
        %2974 = vst [vmem:[%s2970 + $0x18] sm:$0xff] %v2957
        %2975 = vst [vmem:[%s2970 + $0x20] sm:$0xff] %v2958
        %2976 = vst [vmem:[%s2970 + $0x28] sm:$0xff] %v2959
        %2977 = vst [vmem:[%s2970 + $0x30] sm:$0xff] %v2960
        %2978 = vst [vmem:[%s2970 + $0x38] sm:$0xff] %v2961
        %2979 = vst [vmem:[%s2970 + $0x40] sm:$0xff] %v2962
        %2980 = vst [vmem:[%s2970 + $0x48] sm:$0xff] %v2963
        %2981 = vst [vmem:[%s2970 + $0x50] sm:$0xff] %v2964
        %2982 = vst [vmem:[%s2970 + $0x58] sm:$0xff] %v2965
        %2983 = vst [vmem:[%s2970 + $0x60] sm:$0xff] %v2966
        %2984 = vst [vmem:[%s2970 + $0x68] sm:$0xff] %v2967
        %2985 = vst [vmem:[%s2970 + $0x70] sm:$0xff] %v2968
        %2986 = vst [vmem:[%s2970 + $0x78] sm:$0xff] %v2969
        %s2987 = sadd.s32 %s2429, 3
        %s2988 = scalar_lea.vmem [#allocation4], %s2987
        %v2989 = vld [vmem:[%s2988] sm:$0x1]
        %v2990 = vstv %s2987
        %vm2991 = vcmp.eq.s32.totalorder %v2428, %v2990
        %v2992 = vld [vmem:[#allocation5] sm:$0xff]
        %v2993 = vld [vmem:[#allocation5 + $0x8] sm:$0xff]
        %v2994 = vld [vmem:[#allocation5 + $0x10] sm:$0xff]
        %v2995 = vld [vmem:[#allocation5 + $0x18] sm:$0xff]
        %v2996 = vld [vmem:[#allocation5 + $0x20] sm:$0xff]
        %v2997 = vld [vmem:[#allocation5 + $0x28] sm:$0xff]
        %v2998 = vld [vmem:[#allocation5 + $0x30] sm:$0xff]
        %v2999 = vld [vmem:[#allocation5 + $0x38] sm:$0xff]
        %v3000 = vld [vmem:[#allocation5 + $0x40] sm:$0xff]
        %v3001 = vld [vmem:[#allocation5 + $0x48] sm:$0xff]
        %v3002 = vld [vmem:[#allocation5 + $0x50] sm:$0xff]
        %v3003 = vld [vmem:[#allocation5 + $0x58] sm:$0xff]
        %v3004 = vld [vmem:[#allocation5 + $0x60] sm:$0xff]
        %v3005 = vld [vmem:[#allocation5 + $0x68] sm:$0xff]
        %v3006 = vld [vmem:[#allocation5 + $0x70] sm:$0xff]
        %v3007 = vld [vmem:[#allocation5 + $0x78] sm:$0xff]
        %v3008 = vsel %vm2991, %v2992, 0.0
        %v3009 = vsel %vm2991, %v2993, 0.0
        %v3010 = vsel %vm2991, %v2994, 0.0
        %v3011 = vsel %vm2991, %v2995, 0.0
        %v3012 = vsel %vm2991, %v2996, 0.0
        %v3013 = vsel %vm2991, %v2997, 0.0
        %v3014 = vsel %vm2991, %v2998, 0.0
        %v3015 = vsel %vm2991, %v2999, 0.0
        %v3016 = vsel %vm2991, %v3000, 0.0
        %v3017 = vsel %vm2991, %v3001, 0.0
        %v3018 = vsel %vm2991, %v3002, 0.0
        %v3019 = vsel %vm2991, %v3003, 0.0
        %v3020 = vsel %vm2991, %v3004, 0.0
        %v3021 = vsel %vm2991, %v3005, 0.0
        %v3022 = vsel %vm2991, %v3006, 0.0
        %v3023 = vsel %vm2991, %v3007, 0.0
        %v3024 = vsel %vm2466, %v3008, 0.0
        %3025 = vadd.xlane.f32.xlu0 %v3024
        %v3026 = vpop.xlane.xlu0 %3025
        %v3027 = vsel %vm2466, %v3009, 0.0
        %3028 = vadd.xlane.f32.xlu0 %v3027
        %v3029 = vpop.xlane.xlu0 %3028
        %v3030 = vsel %vm2466, %v3010, 0.0
        %3031 = vadd.xlane.f32.xlu0 %v3030
        %v3032 = vpop.xlane.xlu0 %3031
        %v3033 = vsel %vm2466, %v3011, 0.0
        %3034 = vadd.xlane.f32.xlu0 %v3033
        %v3035 = vpop.xlane.xlu0 %3034
        %v3036 = vsel %vm2466, %v3012, 0.0
        %3037 = vadd.xlane.f32.xlu0 %v3036
        %v3038 = vpop.xlane.xlu0 %3037
        %v3039 = vsel %vm2466, %v3013, 0.0
        %3040 = vadd.xlane.f32.xlu0 %v3039
        %v3041 = vpop.xlane.xlu0 %3040
        %v3042 = vsel %vm2466, %v3014, 0.0
        %3043 = vadd.xlane.f32.xlu0 %v3042
        %v3044 = vpop.xlane.xlu0 %3043
        %v3045 = vsel %vm2466, %v3015, 0.0
        %3046 = vadd.xlane.f32.xlu0 %v3045
        %v3047 = vpop.xlane.xlu0 %3046
        %v3048 = vsel %vm2466, %v3016, 0.0
        %3049 = vadd.xlane.f32.xlu0 %v3048
        %v3050 = vpop.xlane.xlu0 %3049
        %v3051 = vsel %vm2466, %v3017, 0.0
        %3052 = vadd.xlane.f32.xlu0 %v3051
        %v3053 = vpop.xlane.xlu0 %3052
        %v3054 = vsel %vm2466, %v3018, 0.0
        %3055 = vadd.xlane.f32.xlu0 %v3054
        %v3056 = vpop.xlane.xlu0 %3055
        %v3057 = vsel %vm2466, %v3019, 0.0
        %3058 = vadd.xlane.f32.xlu0 %v3057
        %v3059 = vpop.xlane.xlu0 %3058
        %v3060 = vsel %vm2466, %v3020, 0.0
        %3061 = vadd.xlane.f32.xlu0 %v3060
        %v3062 = vpop.xlane.xlu0 %3061
        %v3063 = vsel %vm2466, %v3021, 0.0
        %3064 = vadd.xlane.f32.xlu0 %v3063
        %v3065 = vpop.xlane.xlu0 %3064
        %v3066 = vsel %vm2466, %v3022, 0.0
        %3067 = vadd.xlane.f32.xlu0 %v3066
        %v3068 = vpop.xlane.xlu0 %3067
        %v3069 = vsel %vm2466, %v3023, 0.0
        %3070 = vadd.xlane.f32.xlu0 %v3069
        %v3071 = vpop.xlane.xlu0 %3070
        %v3072 = vlaneseq
        %v3073 = vshrl.u32 %v3072, 7
        %v3074 = vsub.s32 0, %v3073
        %v3075 = vrot.slane %v2989, %v3074
        %v3076 = vadd.f32 %v3075, %v3026
        %v3077 = vadd.f32 %v3075, %v3029
        %v3078 = vadd.f32 %v3075, %v3032
        %v3079 = vadd.f32 %v3075, %v3035
        %v3080 = vadd.f32 %v3075, %v3038
        %v3081 = vadd.f32 %v3075, %v3041
        %v3082 = vadd.f32 %v3075, %v3044
        %v3083 = vadd.f32 %v3075, %v3047
        %v3084 = vadd.f32 %v3075, %v3050
        %v3085 = vadd.f32 %v3075, %v3053
        %v3086 = vadd.f32 %v3075, %v3056
        %v3087 = vadd.f32 %v3075, %v3059
        %v3088 = vadd.f32 %v3075, %v3062
        %v3089 = vadd.f32 %v3075, %v3065
        %v3090 = vadd.f32 %v3075, %v3068
        %v3091 = vadd.f32 %v3075, %v3071
        %v3092 = vld [vmem:[#allocation3] sm:$0xff]
        %v3093 = vld [vmem:[#allocation3 + $0x8] sm:$0xff]
        %v3094 = vld [vmem:[#allocation3 + $0x10] sm:$0xff]
        %v3095 = vld [vmem:[#allocation3 + $0x18] sm:$0xff]
        %v3096 = vld [vmem:[#allocation3 + $0x20] sm:$0xff]
        %v3097 = vld [vmem:[#allocation3 + $0x28] sm:$0xff]
        %v3098 = vld [vmem:[#allocation3 + $0x30] sm:$0xff]
        %v3099 = vld [vmem:[#allocation3 + $0x38] sm:$0xff]
        %v3100 = vld [vmem:[#allocation3 + $0x40] sm:$0xff]
        %v3101 = vld [vmem:[#allocation3 + $0x48] sm:$0xff]
        %v3102 = vld [vmem:[#allocation3 + $0x50] sm:$0xff]
        %v3103 = vld [vmem:[#allocation3 + $0x58] sm:$0xff]
        %v3104 = vld [vmem:[#allocation3 + $0x60] sm:$0xff]
        %v3105 = vld [vmem:[#allocation3 + $0x68] sm:$0xff]
        %v3106 = vld [vmem:[#allocation3 + $0x70] sm:$0xff]
        %v3107 = vld [vmem:[#allocation3 + $0x78] sm:$0xff]
        %v3108 = vmul.f32 %v3076, %v3092
        %v3109 = vmul.f32 %v3077, %v3093
        %v3110 = vmul.f32 %v3078, %v3094
        %v3111 = vmul.f32 %v3079, %v3095
        %v3112 = vmul.f32 %v3080, %v3096
        %v3113 = vmul.f32 %v3081, %v3097
        %v3114 = vmul.f32 %v3082, %v3098
        %v3115 = vmul.f32 %v3083, %v3099
        %v3116 = vmul.f32 %v3084, %v3100
        %v3117 = vmul.f32 %v3085, %v3101
        %v3118 = vmul.f32 %v3086, %v3102
        %v3119 = vmul.f32 %v3087, %v3103
        %v3120 = vmul.f32 %v3088, %v3104
        %v3121 = vmul.f32 %v3089, %v3105
        %v3122 = vmul.f32 %v3090, %v3106
        %v3123 = vmul.f32 %v3091, %v3107
        %v3124 = vld [vmem:[#allocation2] sm:$0xff]
        %v3125 = vld [vmem:[#allocation2 + $0x8] sm:$0xff]
        %v3126 = vld [vmem:[#allocation2 + $0x10] sm:$0xff]
        %v3127 = vld [vmem:[#allocation2 + $0x18] sm:$0xff]
        %v3128 = vld [vmem:[#allocation2 + $0x20] sm:$0xff]
        %v3129 = vld [vmem:[#allocation2 + $0x28] sm:$0xff]
        %v3130 = vld [vmem:[#allocation2 + $0x30] sm:$0xff]
        %v3131 = vld [vmem:[#allocation2 + $0x38] sm:$0xff]
        %v3132 = vld [vmem:[#allocation2 + $0x40] sm:$0xff]
        %v3133 = vld [vmem:[#allocation2 + $0x48] sm:$0xff]
        %v3134 = vld [vmem:[#allocation2 + $0x50] sm:$0xff]
        %v3135 = vld [vmem:[#allocation2 + $0x58] sm:$0xff]
        %v3136 = vld [vmem:[#allocation2 + $0x60] sm:$0xff]
        %v3137 = vld [vmem:[#allocation2 + $0x68] sm:$0xff]
        %v3138 = vld [vmem:[#allocation2 + $0x70] sm:$0xff]
        %v3139 = vld [vmem:[#allocation2 + $0x78] sm:$0xff]
        %v3140 = vadd.f32 %v3108, %v3124
        %v3141 = vadd.f32 %v3109, %v3125
        %v3142 = vadd.f32 %v3110, %v3126
        %v3143 = vadd.f32 %v3111, %v3127
        %v3144 = vadd.f32 %v3112, %v3128
        %v3145 = vadd.f32 %v3113, %v3129
        %v3146 = vadd.f32 %v3114, %v3130
        %v3147 = vadd.f32 %v3115, %v3131
        %v3148 = vadd.f32 %v3116, %v3132
        %v3149 = vadd.f32 %v3117, %v3133
        %v3150 = vadd.f32 %v3118, %v3134
        %v3151 = vadd.f32 %v3119, %v3135
        %v3152 = vadd.f32 %v3120, %v3136
        %v3153 = vadd.f32 %v3121, %v3137
        %v3154 = vadd.f32 %v3122, %v3138
        %v3155 = vadd.f32 %v3123, %v3139
        %s3156 = scalar_lea.vmem %s518, 384 [#allocation21]
        %3157 = vst [vmem:[%s3156] sm:$0xff] %v3140
        %3158 = vst [vmem:[%s3156 + $0x8] sm:$0xff] %v3141
        %3159 = vst [vmem:[%s3156 + $0x10] sm:$0xff] %v3142
        %3160 = vst [vmem:[%s3156 + $0x18] sm:$0xff] %v3143
        %3161 = vst [vmem:[%s3156 + $0x20] sm:$0xff] %v3144
        %3162 = vst [vmem:[%s3156 + $0x28] sm:$0xff] %v3145
        %3163 = vst [vmem:[%s3156 + $0x30] sm:$0xff] %v3146
        %3164 = vst [vmem:[%s3156 + $0x38] sm:$0xff] %v3147
        %3165 = vst [vmem:[%s3156 + $0x40] sm:$0xff] %v3148
        %3166 = vst [vmem:[%s3156 + $0x48] sm:$0xff] %v3149
        %3167 = vst [vmem:[%s3156 + $0x50] sm:$0xff] %v3150
        %3168 = vst [vmem:[%s3156 + $0x58] sm:$0xff] %v3151
        %3169 = vst [vmem:[%s3156 + $0x60] sm:$0xff] %v3152
        %3170 = vst [vmem:[%s3156 + $0x68] sm:$0xff] %v3153
        %3171 = vst [vmem:[%s3156 + $0x70] sm:$0xff] %v3154
        %3172 = vst [vmem:[%s3156 + $0x78] sm:$0xff] %v3155
        %s3173 = sand.u32 %s258, 1
        %s3174 = scalar_lea.sflag [#allocation8], %s3173
        %s3175 = sand.u32 %s258, 1
        %s3176 = smul.addr %s3175, 512
        %s3177 = scalar_lea.vmem [#allocation21], %s3176
        // Predicated region
        $region97: #{tpu_custom_call.1} parent=55 // pred_check
          %p3178 = pneg %p268
        $region98: #{tpu_custom_call.1} parent=55 // pred_check_branch
          %3180 = sbr.rel (%p3178) target = $region100
        $region99: #{tpu_custom_call.1} parent=55 // pred_region
          %s3181 = smul.u32 4, %s37
          %s3183 = ssub.s32 8192, 8192
          %3184 = vsyncadd %s3174, %s3183
          %s3185 = smul.addr %s3181, 16
          %s3186 = smul.addr %s36, 64
          %s3187 = sadd.s32 %s3185, %s3186
          %s3188 = smul.addr %s3187, 128
          %s3189 = scalar_lea.hbm %s9, %s3188
          %s3190 = sshll.u32 %s3177, 4
          %s3191 = int_to_ptr.vmem [resolvable:$true] %s3190
          %3196 = dma.vmem_to_hbm [thread:$0]  %s3191, 8192, %s3189, %s3174, 128, 128, 8
        $region100: #{tpu_custom_call.1} parent=55 // pred_fallthru
          _
      $region56: #{tpu_custom_call.1} parent=5 // pred_fallthru
        _
      %p3197 = scmp.le.s32.totalorder 2, %s27
      // Predicated region
      $region101: #{tpu_custom_call.1} parent=5 // pred_check
        %p3198 = pneg %p3197
      $region102: #{tpu_custom_call.1} parent=5 // pred_check_branch
        %3200 = sbr.rel (%p3198) target = $region104
      $region103: #{tpu_custom_call.1} parent=5 // pred_region
        %s3201 = ssub.s32 %s27, 2
        // Predicated region
        $region105: #{tpu_custom_call.1} parent=103 // pred_check
          %p3202 = pneg %p274
        $region106: #{tpu_custom_call.1} parent=103 // pred_check_branch
          %3204 = sbr.rel (%p3202) target = $region108
        $region107: #{tpu_custom_call.1} parent=103 // pred_region
          %s3205 = sand.u32 %s259, 1
          %s3206 = scalar_lea.sflag [#allocation8], %s3205
          %s3207 = sand.u32 %s259, 1
          %s3208 = smul.addr %s3207, 512
          %s3209 = scalar_lea.vmem [#allocation21], %s3208
          %3210 = dma.done %s3206, 8192
        $region108: #{tpu_custom_call.1} parent=103 // pred_fallthru
          _
      $region104: #{tpu_custom_call.1} parent=5 // pred_fallthru
        _
    $region6: #{tpu_custom_call.1} parent=1 // loop_footer
      %s31 = sadd.s32 1, %s27
    $region7: #{tpu_custom_call.1} parent=1 // loop_footer_branch
      %26 = sbr.rel target = $region3
    $region8: #{tpu_custom_call.1} parent=1 // loop_exit
      _
    %3211 = vsyncpa [#allocation7], 1
    %s3212 = scalar_lea.sflag [#allocation7], 1
    %3213 = vsyncpa %s3212, 1
    %3214 = vsyncpa [#allocation10], 1
    %s3215 = scalar_lea.sflag [#allocation10], 1
    %3216 = vsyncpa %s3215, 1
    %3217 = vsyncpa [#allocation13], 1
    %3218 = vsyncpa [#allocation16], 1
    %3219 = vsyncpa [#allocation19], 1
    %3220 = vsyncpa [#allocation8], 1
    %s3221 = scalar_lea.sflag [#allocation8], 1
    %3222 = vsyncpa %s3221, 1

</llo_original>
